<compile_context>
chip_gen: v7x
topology: tpu7x:2x2x1
jax: 0.10.0
libtpu: 0.0.40
codegen_flags: <defaults>
</compile_context>

<pallas_src>
import functools
import math

import numpy as np

import jax
import jax.numpy as jnp
from jax import lax
from jax.experimental import pallas as pl
from jax.experimental.pallas import tpu as pltpu


CFG = dict(
    token_dim=16,
    state_dim=8,
    num_actions=6,
    n_embd=32,
    n_head=4,
    n_layer=2,
    intermediate_size=64,
    block_size=64,
    rotary_percentage=1.0,
    condense_ratio=1,
    norm_eps=1e-5,
)

OUT_PAD = 128  # lane-dense output width


# ------------------------------ fused kernel ------------------------------- #

def fused_forward_kernel(
    states_ref, actions_ref, rewards_ref, rope_ref, bias_ref, rot_ref,
    interp_ref, sel_ref, semb_w_ref, aemb_w_ref, proj_w_ref,
    vec_td_ref, vec_c_ref, wcc_ref, w12_ref, w3_ref, head_w_ref,
    o_ref,
    *, n_layer, n_head, head_dim, eps, scale, na):
    """Single grid step: the whole batch (stacked along sublanes) in VMEM."""
    f32 = jnp.float32
    bf16 = jnp.bfloat16
    bt = states_ref.shape[0]        # b * t
    bT = bias_ref.shape[0]          # b * 3t
    C = proj_w_ref.shape[1]

    # ---- token embeddings (whole batch at once) ----
    state_emb = (jnp.dot(states_ref[...], semb_w_ref[...],
                         preferred_element_type=f32)
                 + vec_td_ref[0:1, :])                                   # (bt, td)
    rew_emb = rewards_ref[...] * vec_td_ref[1:2, :] + vec_td_ref[2:3, :]  # (bt, td)

    # action-embedding gather folded in: one_hot(actions) @ action_emb
    onehot = (lax.broadcasted_iota(jnp.int32, (bt, na), 1)
              == actions_ref[...]).astype(f32)
    act_emb = jnp.dot(onehot, aemb_w_ref[...], preferred_element_type=f32)

    # interleave [state_i, action_i, reward_i] per timestep via precomputed
    # scatter matmuls (constants; no in-kernel iota/reshape layout churn)
    seq = (jnp.dot(interp_ref[0], state_emb, preferred_element_type=f32)
           + jnp.dot(interp_ref[1], act_emb, preferred_element_type=f32)
           + jnp.dot(interp_ref[2], rew_emb, preferred_element_type=f32))  # (bT, td)
    x = (jnp.dot(seq, proj_w_ref[...], preferred_element_type=f32)
         + vec_c_ref[0:1, :])                                            # (bT, C)

    cos = rope_ref[0]                      # (bT, C)
    sin = rope_ref[1]
    rot = rot_ref[...]                     # (C, C) rotate-half-with-sign perm
    bias = bias_ref[...]                   # (bT, bT) block-diag causal additive

    lane = lax.broadcasted_iota(jnp.int32, (1, C), 1)
    hmasks = [((lane >= h * head_dim) & (lane < (h + 1) * head_dim)).astype(f32)
              for h in range(n_head)]

    def rmsnorm(v, w):
        ms = jnp.mean(v * v, axis=-1, keepdims=True)
        return v * lax.rsqrt(ms + eps) * w

    def rope(v):
        # full-width RoPE: rotate-half via constant permutation matmul (MXU)
        return v * cos + jnp.dot(v, rot, preferred_element_type=f32) * sin

    for l in range(n_layer):
        # ---- attention sub-block ----
        n1 = rmsnorm(x, vec_c_ref[2 + l:3 + l, :]).astype(bf16)           # (bT, C)
        q = rope(jnp.dot(n1, wcc_ref[l, 0], preferred_element_type=f32))
        k = rope(jnp.dot(n1, wcc_ref[l, 1], preferred_element_type=f32))
        v = jnp.dot(n1, wcc_ref[l, 2], preferred_element_type=f32)
        k_b = k.astype(bf16)

        attn = jnp.zeros((bT, C), f32)
        for h in range(n_head):
            qh = (q * hmasks[h]).astype(bf16)
            # q_h @ k_h.T via full-width masked operands (no lane slices)
            s = lax.dot_general(qh, k_b, (((1,), (1,)), ((), ())),
                                preferred_element_type=f32) * scale + bias
            s = s - jnp.max(s, axis=-1, keepdims=True)
            p = jnp.exp(s)
            p = p * pl.reciprocal(jnp.sum(p, axis=-1, keepdims=True),
                                  approx=False)
            attn = attn + jnp.dot(p.astype(bf16),
                                  (v * hmasks[h]).astype(bf16),
                                  preferred_element_type=f32)
        x = x + jnp.dot(attn.astype(bf16), wcc_ref[l, 3],
                        preferred_element_type=f32)

        # ---- SwiGLU MLP sub-block (two lane-aligned halves, no slicing) ----
        n2 = rmsnorm(x, vec_c_ref[2 + n_layer + l:3 + n_layer + l, :]).astype(bf16)
        h1 = jnp.dot(n2, w12_ref[l, 0], preferred_element_type=f32)
        h2 = jnp.dot(n2, w12_ref[l, 1], preferred_element_type=f32)
        g = (h1 * lax.logistic(h1)) * h2
        x = x + jnp.dot(g.astype(bf16), w3_ref[l], preferred_element_type=f32)

    # x[:, 0::3] (state positions) via precomputed constant select matmul
    xs = jnp.dot(sel_ref[...], x, preferred_element_type=f32)             # (bt, C)
    # TODO(synk): ln_f takes a dropout arg in the torch config; dropout is a
    # no-op at eval so it is omitted here.
    xs = rmsnorm(xs, vec_c_ref[1:2, :])
    # lane-dense (bt, 128) store; wrapper slices back to num_actions
    o_ref[...] = jnp.dot(xs, head_w_ref[...],
                         preferred_element_type=f32).astype(o_ref.dtype)


# ----------------------- host-side constant construction -------------------- #

def build_rope_cache_np(seq_len, n_elem, condense_ratio=1):
    # Match the torch reference: cache built in bfloat16, widened back to f32.
    theta = 1.0 / (10000.0 ** (np.arange(0, n_elem, 2, dtype=np.float32) / n_elem))
    seq_idx = np.arange(seq_len, dtype=np.float32) / condense_ratio
    idx = np.outer(seq_idx, theta)
    idx = np.concatenate([idx, idx], axis=-1)
    cos = np.cos(idx).astype(jnp.bfloat16).astype(np.float32)
    sin = np.sin(idx).astype(jnp.bfloat16).astype(np.float32)
    return cos, sin


def _build_constants(b, t, cfg):
    C, H = cfg["n_embd"], cfg["n_head"]
    hd = C // H
    T, bt, bT = 3 * t, b * t, 3 * t * b

    # interleave scatter matrices and state-position select matrix
    interP = np.zeros((3, bT, bt), np.float32)
    sel = np.zeros((bt, bT), np.float32)
    for i in range(b):
        for j in range(t):
            src = i * t + j
            dst = i * T + 3 * j
            interP[0, dst, src] = 1.0       # state
            interP[1, dst + 1, src] = 1.0   # action
            interP[2, dst + 2, src] = 1.0   # reward
            sel[src, dst] = 1.0

    # block-diagonal (per batch element) causal additive bias
    r = np.arange(bT)
    allowed = ((r[:, None] // T) == (r[None, :] // T)) & (r[:, None] >= r[None, :])
    bias = np.where(allowed, 0.0, -1e30).astype(np.float32)

    # rotate-half-with-sign as a (C, C) block-diagonal permutation matrix:
    # (v @ rot) == concat([-v2, v1]) per head
    rot = np.zeros((C, C), np.float32)
    half = hd // 2
    for h in range(H):
        o = h * hd
        for j in range(half):
            rot[o + j + half, o + j] = -1.0
            rot[o + j, o + j + half] = 1.0

    # RoPE cache tiled to (bT, C): identical per head, position resets per batch
    n_elem = int(cfg["rotary_percentage"] * hd)
    assert n_elem == hd, "kernel assumes rotary_percentage == 1.0"
    cos, sin = build_rope_cache_np(cfg["block_size"], n_elem, cfg["condense_ratio"])
    cos = np.tile(np.tile(cos[:T], (1, H)), (b, 1)).astype(np.float32)
    sin = np.tile(np.tile(sin[:T], (1, H)), (b, 1)).astype(np.float32)
    rope = np.stack([cos, sin])             # (2, bT, C)

    return dict(interP=interP, sel=sel, bias=bias, rot=rot, rope=rope)


# ------------------------------- parameters --------------------------------- #

def init_params(key, cfg):
    td, sd, na = cfg["token_dim"], cfg["state_dim"], cfg["num_actions"]
    C, inter, L = cfg["n_embd"], cfg["intermediate_size"], cfg["n_layer"]

    keys = iter(jax.random.split(key, 5 + 7 * L))

    def lin(fan_in, fan_out):
        std = math.sqrt(2.0 / 5.0 / fan_in)
        return jax.random.normal(next(keys), (fan_in, fan_out), jnp.float32) * std

    semb_w = lin(sd, td)
    remb_w = lin(1, td)                                           # (1, td)
    aemb_w = (jax.random.normal(next(keys), (na, td), jnp.float32)
              * math.sqrt(2.0 / 5.0 / td))
    proj_w = lin(td, C)
    head_w = lin(C, na)

    # packed tiny vectors (coalesced DMAs)
    vec_td = jnp.concatenate(
        [jnp.zeros((1, td), jnp.float32),     # state_emb bias
         remb_w,                              # reward_emb weight (as a row)
         jnp.zeros((1, td), jnp.float32)],    # reward_emb bias
        axis=0)                               # (3, td)
    vec_C = jnp.concatenate(
        [jnp.zeros((1, C), jnp.float32),      # proj bias
         jnp.ones((1, C), jnp.float32)]       # ln_f weight
        + [jnp.ones((1, C), jnp.float32) for _ in range(2 * L)],  # norm1[L], norm2[L]
        axis=0)                               # (2 + 2L, C)

    wcc, w12, w3 = [], [], []
    for _ in range(L):
        qw, kw, vw, aw = lin(C, C), lin(C, C), lin(C, C), lin(C, C)
        w1, w2 = lin(C, inter), lin(C, inter)
        w3l = (jax.random.normal(next(keys), (inter, C), jnp.float32)
               * (1.0 / math.sqrt(inter) / L))
        wcc.append(jnp.stack([qw, kw, vw, aw]))     # (4, C, C)
        w12.append(jnp.stack([w1, w2]))             # (2, C, inter)
        w3.append(w3l)

    head_pad = jnp.zeros((C, OUT_PAD), jnp.float32).at[:, :na].set(head_w)

    return dict(
        semb_w=semb_w, aemb_w=aemb_w, proj_w=proj_w,
        vec_td=vec_td, vec_C=vec_C,
        wcc=jnp.stack(wcc).astype(jnp.bfloat16),    # (L, 4, C, C)
        w12=jnp.stack(w12).astype(jnp.bfloat16),    # (L, 2, C, inter)
        w3=jnp.stack(w3).astype(jnp.bfloat16),      # (L, inter, C)
        head_pad=head_pad,
    )


# --------------------------------- forward ----------------------------------- #

def forward(params, states, actions, rewards, cfg=CFG):
    b, t, sd = states.shape
    td, C, H, L = cfg["token_dim"], cfg["n_embd"], cfg["n_head"], cfg["n_layer"]
    na = cfg["num_actions"]
    assert C % H == 0
    hd = C // H
    bt, T = b * t, 3 * t
    assert cfg["block_size"] >= T

    consts = _build_constants(b, t, cfg)          # numpy constants, baked in

    states_f = states.reshape(bt, sd)
    actions_i = actions.reshape(bt, 1).astype(jnp.int32)
    rewards_f = rewards.reshape(bt, 1)

    kern = functools.partial(
        fused_forward_kernel,
        n_layer=L, n_head=H, head_dim=hd,
        eps=cfg["norm_eps"], scale=1.0 / math.sqrt(hd), na=na)

    inputs = [
        states_f, actions_i, rewards_f,
        consts["rope"], consts["bias"], consts["rot"],
        consts["interP"], consts["sel"],
        params["semb_w"], params["aemb_w"], params["proj_w"],
        params["vec_td"], params["vec_C"],
        params["wcc"], params["w12"], params["w3"], params["head_pad"],
    ]

    def full_spec(shape):
        nd = len(shape)
        return pl.BlockSpec(shape, lambda i, nd=nd: (0,) * nd)

    # Single grid step: whole batch folded in (best on the single-TC v5e/v6e;
    # on v7x the per-core launch overhead for ~us of work exceeds a 2-TC split).
    out = pl.pallas_call(
        kern,
        grid=(1,),
        in_specs=[full_spec(np.shape(x)) for x in inputs],
        out_specs=pl.BlockSpec((bt, OUT_PAD), lambda i: (0, 0)),
        out_shape=jax.ShapeDtypeStruct((bt, OUT_PAD), jnp.float32),
        compiler_params=pltpu.CompilerParams(
            dimension_semantics=("arbitrary",)),
    )(*inputs)

    return out[:, :na].reshape(b, t, na)


# ---------------------------------- main -------------------------------------- #

if __name__ == "__main__":
    key = jax.random.PRNGKey(0)
    kp, ks, ka, kr = jax.random.split(key, 4)

    params = init_params(kp, CFG)

    b, t = 2, 8
    states = jax.random.normal(ks, (b, t, CFG["state_dim"]), jnp.float32)
    actions = jax.random.randint(ka, (b, t), 0, CFG["num_actions"], jnp.int32)
    rewards = jax.random.normal(kr, (b, t), jnp.float32)

    fwd = jax.jit(forward)
    logits = fwd(params, states, actions, rewards)
    jax.block_until_ready(logits)

    assert logits.shape == (b, t, CFG["num_actions"])
    assert bool(jnp.all(jnp.isfinite(logits)))
    print("KERNEL_OK")
</pallas_src>

<mosaic_0001>
module attributes {stable_mosaic.version = 11 : i64} {
  func.func @fused_forward_kernel(%arg0: i32, %arg1: memref<16x8xf32, #tpu.memory_space<vmem>>, %arg2: memref<16x1xi32, #tpu.memory_space<vmem>>, %arg3: memref<16x1xf32, #tpu.memory_space<vmem>>, %arg4: memref<2x48x32xf32, #tpu.memory_space<vmem>>, %arg5: memref<48x48xf32, #tpu.memory_space<vmem>>, %arg6: memref<32x32xf32, #tpu.memory_space<vmem>>, %arg7: memref<3x48x16xf32, #tpu.memory_space<vmem>>, %arg8: memref<16x48xf32, #tpu.memory_space<vmem>>, %arg9: memref<8x16xf32, #tpu.memory_space<vmem>>, %arg10: memref<6x16xf32, #tpu.memory_space<vmem>>, %arg11: memref<16x32xf32, #tpu.memory_space<vmem>>, %arg12: memref<3x16xf32, #tpu.memory_space<vmem>>, %arg13: memref<6x32xf32, #tpu.memory_space<vmem>>, %arg14: memref<2x4x32x32xbf16, #tpu.memory_space<vmem>>, %arg15: memref<2x2x32x64xbf16, #tpu.memory_space<vmem>>, %arg16: memref<2x64x32xbf16, #tpu.memory_space<vmem>>, %arg17: memref<32x128xf32, #tpu.memory_space<vmem>>, %arg18: memref<16x128xf32, #tpu.memory_space<vmem>>) attributes {dimension_semantics = [#tpu.dimension_semantics<arbitrary>], iteration_bounds = array<i64: 1>, scalar_prefetch = 0 : i64, scratch_operands = 0 : i64, tpu.core_type = #tpu.core_type<tc>, window_params = [{pipeline_mode = #tpu.pipeline_mode<synchronous>, transform_indices = @transform_0, window_bounds = array<i64: 16, 8>}, {pipeline_mode = #tpu.pipeline_mode<synchronous>, transform_indices = @transform_1, window_bounds = array<i64: 16, 1>}, {pipeline_mode = #tpu.pipeline_mode<synchronous>, transform_indices = @transform_2, window_bounds = array<i64: 16, 1>}, {pipeline_mode = #tpu.pipeline_mode<synchronous>, transform_indices = @transform_3, window_bounds = array<i64: 2, 48, 32>}, {pipeline_mode = #tpu.pipeline_mode<synchronous>, transform_indices = @transform_4, window_bounds = array<i64: 48, 48>}, {pipeline_mode = #tpu.pipeline_mode<synchronous>, transform_indices = @transform_5, window_bounds = array<i64: 32, 32>}, {pipeline_mode = #tpu.pipeline_mode<synchronous>, transform_indices = @transform_6, window_bounds = array<i64: 3, 48, 16>}, {pipeline_mode = #tpu.pipeline_mode<synchronous>, transform_indices = @transform_7, window_bounds = array<i64: 16, 48>}, {pipeline_mode = #tpu.pipeline_mode<synchronous>, transform_indices = @transform_8, window_bounds = array<i64: 8, 16>}, {pipeline_mode = #tpu.pipeline_mode<synchronous>, transform_indices = @transform_9, window_bounds = array<i64: 6, 16>}, {pipeline_mode = #tpu.pipeline_mode<synchronous>, transform_indices = @transform_10, window_bounds = array<i64: 16, 32>}, {pipeline_mode = #tpu.pipeline_mode<synchronous>, transform_indices = @transform_11, window_bounds = array<i64: 3, 16>}, {pipeline_mode = #tpu.pipeline_mode<synchronous>, transform_indices = @transform_12, window_bounds = array<i64: 6, 32>}, {pipeline_mode = #tpu.pipeline_mode<synchronous>, transform_indices = @transform_13, window_bounds = array<i64: 2, 4, 32, 32>}, {pipeline_mode = #tpu.pipeline_mode<synchronous>, transform_indices = @transform_14, window_bounds = array<i64: 2, 2, 32, 64>}, {pipeline_mode = #tpu.pipeline_mode<synchronous>, transform_indices = @transform_15, window_bounds = array<i64: 2, 64, 32>}, {pipeline_mode = #tpu.pipeline_mode<synchronous>, transform_indices = @transform_16, window_bounds = array<i64: 32, 128>}, {pipeline_mode = #tpu.pipeline_mode<synchronous>, transform_indices = @transform_17, window_bounds = array<i64: 16, 128>}]} {
    %c0 = arith.constant 0 : index
    %c0_0 = arith.constant 0 : index
    %0 = vector.load %arg1[%c0, %c0_0] : memref<16x8xf32, #tpu.memory_space<vmem>>, vector<16x8xf32>
    %c0_1 = arith.constant 0 : index
    %c0_2 = arith.constant 0 : index
    %1 = vector.load %arg9[%c0_1, %c0_2] : memref<8x16xf32, #tpu.memory_space<vmem>>, vector<8x16xf32>
    %cst = arith.constant dense<0.000000e+00> : vector<16x16xf32>
    %2 = tpu.matmul %0, %1, %cst {dimension_numbers = #tpu.dot_dimension_numbers<[1], [0], [0], [1], [0, 0, 1, 1], [], []>} : vector<16x8xf32>, vector<8x16xf32>, vector<16x16xf32> -> vector<16x16xf32>
    %c0_3 = arith.constant 0 : index
    %c0_4 = arith.constant 0 : index
    %3 = vector.load %arg12[%c0_3, %c0_4] : memref<3x16xf32, #tpu.memory_space<vmem>>, vector<1x16xf32>
    %4 = vector.broadcast %3 : vector<1x16xf32> to vector<16x16xf32>
    %5 = arith.addf %2, %4 : vector<16x16xf32>
    %c0_5 = arith.constant 0 : index
    %c0_6 = arith.constant 0 : index
    %6 = vector.load %arg3[%c0_5, %c0_6] : memref<16x1xf32, #tpu.memory_space<vmem>>, vector<16x1xf32>
    %c1 = arith.constant 1 : index
    %c0_7 = arith.constant 0 : index
    %7 = vector.load %arg12[%c1, %c0_7] : memref<3x16xf32, #tpu.memory_space<vmem>>, vector<1x16xf32>
    %8 = vector.broadcast %6 : vector<16x1xf32> to vector<16x16xf32>
    %9 = vector.broadcast %7 : vector<1x16xf32> to vector<16x16xf32>
    %10 = arith.mulf %8, %9 : vector<16x16xf32>
    %c2 = arith.constant 2 : index
    %c0_8 = arith.constant 0 : index
    %11 = vector.load %arg12[%c2, %c0_8] : memref<3x16xf32, #tpu.memory_space<vmem>>, vector<1x16xf32>
    %12 = vector.broadcast %11 : vector<1x16xf32> to vector<16x16xf32>
    %13 = arith.addf %10, %12 : vector<16x16xf32>
    %14 = tpu.iota {dimensions = array<i32: 1>} : vector<16x6xi32>
    %c0_9 = arith.constant 0 : index
    %c0_10 = arith.constant 0 : index
    %15 = vector.load %arg2[%c0_9, %c0_10] : memref<16x1xi32, #tpu.memory_space<vmem>>, vector<16x1xi32>
    %16 = vector.broadcast %15 : vector<16x1xi32> to vector<16x6xi32>
    %17 = arith.cmpi eq, %14, %16 : vector<16x6xi32>
    %18 = arith.extui %17 : vector<16x6xi1> to vector<16x6xi32>
    %19 = arith.sitofp %18 : vector<16x6xi32> to vector<16x6xf32>
    %c0_11 = arith.constant 0 : index
    %c0_12 = arith.constant 0 : index
    %20 = vector.load %arg10[%c0_11, %c0_12] : memref<6x16xf32, #tpu.memory_space<vmem>>, vector<6x16xf32>
    %cst_13 = arith.constant dense<0.000000e+00> : vector<16x16xf32>
    %21 = tpu.matmul %19, %20, %cst_13 {dimension_numbers = #tpu.dot_dimension_numbers<[1], [0], [0], [1], [0, 0, 1, 1], [], []>} : vector<16x6xf32>, vector<6x16xf32>, vector<16x16xf32> -> vector<16x16xf32>
    %c0_14 = arith.constant 0 : index
    %c0_15 = arith.constant 0 : index
    %c0_16 = arith.constant 0 : index
    %22 = vector.load %arg7[%c0_14, %c0_15, %c0_16] : memref<3x48x16xf32, #tpu.memory_space<vmem>>, vector<1x48x16xf32>
    %23 = vector.shape_cast %22 : vector<1x48x16xf32> to vector<48x16xf32>
    %cst_17 = arith.constant dense<0.000000e+00> : vector<48x16xf32>
    %24 = tpu.matmul %23, %5, %cst_17 {dimension_numbers = #tpu.dot_dimension_numbers<[1], [0], [0], [1], [0, 0, 1, 1], [], []>} : vector<48x16xf32>, vector<16x16xf32>, vector<48x16xf32> -> vector<48x16xf32>
    %c1_18 = arith.constant 1 : index
    %c0_19 = arith.constant 0 : index
    %c0_20 = arith.constant 0 : index
    %25 = vector.load %arg7[%c1_18, %c0_19, %c0_20] : memref<3x48x16xf32, #tpu.memory_space<vmem>>, vector<1x48x16xf32>
    %26 = vector.shape_cast %25 : vector<1x48x16xf32> to vector<48x16xf32>
    %cst_21 = arith.constant dense<0.000000e+00> : vector<48x16xf32>
    %27 = tpu.matmul %26, %21, %cst_21 {dimension_numbers = #tpu.dot_dimension_numbers<[1], [0], [0], [1], [0, 0, 1, 1], [], []>} : vector<48x16xf32>, vector<16x16xf32>, vector<48x16xf32> -> vector<48x16xf32>
    %28 = arith.addf %24, %27 : vector<48x16xf32>
    %c2_22 = arith.constant 2 : index
    %c0_23 = arith.constant 0 : index
    %c0_24 = arith.constant 0 : index
    %29 = vector.load %arg7[%c2_22, %c0_23, %c0_24] : memref<3x48x16xf32, #tpu.memory_space<vmem>>, vector<1x48x16xf32>
    %30 = vector.shape_cast %29 : vector<1x48x16xf32> to vector<48x16xf32>
    %cst_25 = arith.constant dense<0.000000e+00> : vector<48x16xf32>
    %31 = tpu.matmul %30, %13, %cst_25 {dimension_numbers = #tpu.dot_dimension_numbers<[1], [0], [0], [1], [0, 0, 1, 1], [], []>} : vector<48x16xf32>, vector<16x16xf32>, vector<48x16xf32> -> vector<48x16xf32>
    %32 = arith.addf %28, %31 : vector<48x16xf32>
    %c0_26 = arith.constant 0 : index
    %c0_27 = arith.constant 0 : index
    %33 = vector.load %arg11[%c0_26, %c0_27] : memref<16x32xf32, #tpu.memory_space<vmem>>, vector<16x32xf32>
    %cst_28 = arith.constant dense<0.000000e+00> : vector<48x32xf32>
    %34 = tpu.matmul %32, %33, %cst_28 {dimension_numbers = #tpu.dot_dimension_numbers<[1], [0], [0], [1], [0, 0, 1, 1], [], []>} : vector<48x16xf32>, vector<16x32xf32>, vector<48x32xf32> -> vector<48x32xf32>
    %c0_29 = arith.constant 0 : index
    %c0_30 = arith.constant 0 : index
    %35 = vector.load %arg13[%c0_29, %c0_30] : memref<6x32xf32, #tpu.memory_space<vmem>>, vector<1x32xf32>
    %36 = vector.broadcast %35 : vector<1x32xf32> to vector<48x32xf32>
    %37 = arith.addf %34, %36 : vector<48x32xf32>
    %c0_31 = arith.constant 0 : index
    %c0_32 = arith.constant 0 : index
    %c0_33 = arith.constant 0 : index
    %38 = vector.load %arg4[%c0_31, %c0_32, %c0_33] : memref<2x48x32xf32, #tpu.memory_space<vmem>>, vector<1x48x32xf32>
    %39 = vector.shape_cast %38 : vector<1x48x32xf32> to vector<48x32xf32>
    %c1_34 = arith.constant 1 : index
    %c0_35 = arith.constant 0 : index
    %c0_36 = arith.constant 0 : index
    %40 = vector.load %arg4[%c1_34, %c0_35, %c0_36] : memref<2x48x32xf32, #tpu.memory_space<vmem>>, vector<1x48x32xf32>
    %41 = vector.shape_cast %40 : vector<1x48x32xf32> to vector<48x32xf32>
    %c0_37 = arith.constant 0 : index
    %c0_38 = arith.constant 0 : index
    %42 = vector.load %arg6[%c0_37, %c0_38] : memref<32x32xf32, #tpu.memory_space<vmem>>, vector<32x32xf32>
    %c0_39 = arith.constant 0 : index
    %c0_40 = arith.constant 0 : index
    %43 = vector.load %arg5[%c0_39, %c0_40] : memref<48x48xf32, #tpu.memory_space<vmem>>, vector<48x48xf32>
    %44 = tpu.iota {dimensions = array<i32: 1>} : vector<1x32xi32>
    %c0_i32 = arith.constant 0 : i32
    %45 = vector.broadcast %c0_i32 : i32 to vector<1x32xi32>
    %46 = arith.cmpi sge, %44, %45 : vector<1x32xi32>
    %c8_i32 = arith.constant 8 : i32
    %47 = vector.broadcast %c8_i32 : i32 to vector<1x32xi32>
    %48 = arith.cmpi slt, %44, %47 : vector<1x32xi32>
    %49 = arith.andi %46, %48 : vector<1x32xi1>
    %50 = arith.extui %49 : vector<1x32xi1> to vector<1x32xi32>
    %51 = arith.sitofp %50 : vector<1x32xi32> to vector<1x32xf32>
    %c8_i32_41 = arith.constant 8 : i32
    %52 = vector.broadcast %c8_i32_41 : i32 to vector<1x32xi32>
    %53 = arith.cmpi sge, %44, %52 : vector<1x32xi32>
    %c16_i32 = arith.constant 16 : i32
    %54 = vector.broadcast %c16_i32 : i32 to vector<1x32xi32>
    %55 = arith.cmpi slt, %44, %54 : vector<1x32xi32>
    %56 = arith.andi %53, %55 : vector<1x32xi1>
    %57 = arith.extui %56 : vector<1x32xi1> to vector<1x32xi32>
    %58 = arith.sitofp %57 : vector<1x32xi32> to vector<1x32xf32>
    %c16_i32_42 = arith.constant 16 : i32
    %59 = vector.broadcast %c16_i32_42 : i32 to vector<1x32xi32>
    %60 = arith.cmpi sge, %44, %59 : vector<1x32xi32>
    %c24_i32 = arith.constant 24 : i32
    %61 = vector.broadcast %c24_i32 : i32 to vector<1x32xi32>
    %62 = arith.cmpi slt, %44, %61 : vector<1x32xi32>
    %63 = arith.andi %60, %62 : vector<1x32xi1>
    %64 = arith.extui %63 : vector<1x32xi1> to vector<1x32xi32>
    %65 = arith.sitofp %64 : vector<1x32xi32> to vector<1x32xf32>
    %c24_i32_43 = arith.constant 24 : i32
    %66 = vector.broadcast %c24_i32_43 : i32 to vector<1x32xi32>
    %67 = arith.cmpi sge, %44, %66 : vector<1x32xi32>
    %c32_i32 = arith.constant 32 : i32
    %68 = vector.broadcast %c32_i32 : i32 to vector<1x32xi32>
    %69 = arith.cmpi slt, %44, %68 : vector<1x32xi32>
    %70 = arith.andi %67, %69 : vector<1x32xi1>
    %71 = arith.extui %70 : vector<1x32xi1> to vector<1x32xi32>
    %72 = arith.sitofp %71 : vector<1x32xi32> to vector<1x32xf32>
    %c2_44 = arith.constant 2 : index
    %c0_45 = arith.constant 0 : index
    %73 = vector.load %arg13[%c2_44, %c0_45] : memref<6x32xf32, #tpu.memory_space<vmem>>, vector<1x32xf32>
    %74 = arith.mulf %37, %37 : vector<48x32xf32>
    %cst_46 = arith.constant dense<0.000000e+00> : vector<48xf32>
    %75 = vector.multi_reduction <add>, %74, %cst_46 [1] : vector<48x32xf32> to vector<48xf32>
    %76 = vector.shape_cast %75 : vector<48xf32> to vector<48x1xf32>
    %cst_47 = arith.constant 3.200000e+01 : f32
    %77 = vector.broadcast %cst_47 : f32 to vector<48x1xf32>
    %78 = arith.divf %76, %77 : vector<48x1xf32>
    %cst_48 = arith.constant 9.99999974E-6 : f32
    %79 = vector.broadcast %cst_48 : f32 to vector<48x1xf32>
    %80 = arith.addf %78, %79 : vector<48x1xf32>
    %81 = math.rsqrt %80 : vector<48x1xf32>
    %82 = vector.broadcast %81 : vector<48x1xf32> to vector<48x32xf32>
    %83 = arith.mulf %37, %82 : vector<48x32xf32>
    %84 = vector.broadcast %73 : vector<1x32xf32> to vector<48x32xf32>
    %85 = arith.mulf %83, %84 : vector<48x32xf32>
    %86 = arith.truncf %85 : vector<48x32xf32> to vector<48x32xbf16>
    %c0_49 = arith.constant 0 : index
    %c0_50 = arith.constant 0 : index
    %c0_51 = arith.constant 0 : index
    %c0_52 = arith.constant 0 : index
    %87 = vector.load %arg14[%c0_49, %c0_50, %c0_51, %c0_52] : memref<2x4x32x32xbf16, #tpu.memory_space<vmem>>, vector<1x1x32x32xbf16>
    %88 = vector.shape_cast %87 : vector<1x1x32x32xbf16> to vector<32x32xbf16>
    %cst_53 = arith.constant dense<0.000000e+00> : vector<48x32xf32>
    %89 = tpu.matmul %86, %88, %cst_53 {dimension_numbers = #tpu.dot_dimension_numbers<[1], [0], [0], [1], [0, 0, 1, 1], [], []>} : vector<48x32xbf16>, vector<32x32xbf16>, vector<48x32xf32> -> vector<48x32xf32>
    %90 = arith.mulf %89, %39 : vector<48x32xf32>
    %cst_54 = arith.constant dense<0.000000e+00> : vector<48x32xf32>
    %91 = tpu.matmul %89, %42, %cst_54 {dimension_numbers = #tpu.dot_dimension_numbers<[1], [0], [0], [1], [0, 0, 1, 1], [], []>} : vector<48x32xf32>, vector<32x32xf32>, vector<48x32xf32> -> vector<48x32xf32>
    %92 = arith.mulf %91, %41 : vector<48x32xf32>
    %93 = arith.addf %90, %92 : vector<48x32xf32>
    %c0_55 = arith.constant 0 : index
    %c1_56 = arith.constant 1 : index
    %c0_57 = arith.constant 0 : index
    %c0_58 = arith.constant 0 : index
    %94 = vector.load %arg14[%c0_55, %c1_56, %c0_57, %c0_58] : memref<2x4x32x32xbf16, #tpu.memory_space<vmem>>, vector<1x1x32x32xbf16>
    %95 = vector.shape_cast %94 : vector<1x1x32x32xbf16> to vector<32x32xbf16>
    %cst_59 = arith.constant dense<0.000000e+00> : vector<48x32xf32>
    %96 = tpu.matmul %86, %95, %cst_59 {dimension_numbers = #tpu.dot_dimension_numbers<[1], [0], [0], [1], [0, 0, 1, 1], [], []>} : vector<48x32xbf16>, vector<32x32xbf16>, vector<48x32xf32> -> vector<48x32xf32>
    %97 = arith.mulf %96, %39 : vector<48x32xf32>
    %cst_60 = arith.constant dense<0.000000e+00> : vector<48x32xf32>
    %98 = tpu.matmul %96, %42, %cst_60 {dimension_numbers = #tpu.dot_dimension_numbers<[1], [0], [0], [1], [0, 0, 1, 1], [], []>} : vector<48x32xf32>, vector<32x32xf32>, vector<48x32xf32> -> vector<48x32xf32>
    %99 = arith.mulf %98, %41 : vector<48x32xf32>
    %100 = arith.addf %97, %99 : vector<48x32xf32>
    %c0_61 = arith.constant 0 : index
    %c2_62 = arith.constant 2 : index
    %c0_63 = arith.constant 0 : index
    %c0_64 = arith.constant 0 : index
    %101 = vector.load %arg14[%c0_61, %c2_62, %c0_63, %c0_64] : memref<2x4x32x32xbf16, #tpu.memory_space<vmem>>, vector<1x1x32x32xbf16>
    %102 = vector.shape_cast %101 : vector<1x1x32x32xbf16> to vector<32x32xbf16>
    %cst_65 = arith.constant dense<0.000000e+00> : vector<48x32xf32>
    %103 = tpu.matmul %86, %102, %cst_65 {dimension_numbers = #tpu.dot_dimension_numbers<[1], [0], [0], [1], [0, 0, 1, 1], [], []>} : vector<48x32xbf16>, vector<32x32xbf16>, vector<48x32xf32> -> vector<48x32xf32>
    %104 = arith.truncf %100 : vector<48x32xf32> to vector<48x32xbf16>
    %cst_66 = arith.constant 0.000000e+00 : f32
    %105 = vector.broadcast %cst_66 : f32 to vector<48x32xf32>
    %106 = vector.broadcast %51 : vector<1x32xf32> to vector<48x32xf32>
    %107 = arith.mulf %93, %106 : vector<48x32xf32>
    %108 = arith.truncf %107 : vector<48x32xf32> to vector<48x32xbf16>
    %cst_67 = arith.constant dense<0.000000e+00> : vector<48x48xf32>
    %109 = tpu.matmul %108, %104, %cst_67 {dimension_numbers = #tpu.dot_dimension_numbers<[1], [1], [0], [0], [0, 0, 1, 0], [], []>} : vector<48x32xbf16>, vector<48x32xbf16>, vector<48x48xf32> -> vector<48x48xf32>
    %cst_68 = arith.constant 0.353553385 : f32
    %110 = vector.broadcast %cst_68 : f32 to vector<48x48xf32>
    %111 = arith.mulf %109, %110 : vector<48x48xf32>
    %112 = arith.addf %111, %43 : vector<48x48xf32>
    %cst_69 = arith.constant dense<0xFF800000> : vector<48xf32>
    %113 = vector.multi_reduction <maximumf>, %112, %cst_69 [1] : vector<48x48xf32> to vector<48xf32>
    %114 = vector.shape_cast %113 : vector<48xf32> to vector<48x1xf32>
    %115 = vector.broadcast %114 : vector<48x1xf32> to vector<48x48xf32>
    %116 = arith.subf %112, %115 : vector<48x48xf32>
    %117 = math.exp %116 : vector<48x48xf32>
    %cst_70 = arith.constant dense<0.000000e+00> : vector<48xf32>
    %118 = vector.multi_reduction <add>, %117, %cst_70 [1] : vector<48x48xf32> to vector<48xf32>
    %119 = vector.shape_cast %118 : vector<48xf32> to vector<48x1xf32>
    %120 = tpu.reciprocal %119 : vector<48x1xf32> -> vector<48x1xf32>
    %121 = vector.broadcast %120 : vector<48x1xf32> to vector<48x48xf32>
    %122 = arith.mulf %117, %121 : vector<48x48xf32>
    %123 = arith.truncf %122 : vector<48x48xf32> to vector<48x48xbf16>
    %124 = vector.broadcast %51 : vector<1x32xf32> to vector<48x32xf32>
    %125 = arith.mulf %103, %124 : vector<48x32xf32>
    %126 = arith.truncf %125 : vector<48x32xf32> to vector<48x32xbf16>
    %cst_71 = arith.constant dense<0.000000e+00> : vector<48x32xf32>
    %127 = tpu.matmul %123, %126, %cst_71 {dimension_numbers = #tpu.dot_dimension_numbers<[1], [0], [0], [1], [0, 0, 1, 1], [], []>} : vector<48x48xbf16>, vector<48x32xbf16>, vector<48x32xf32> -> vector<48x32xf32>
    %128 = arith.addf %105, %127 : vector<48x32xf32>
    %129 = vector.broadcast %58 : vector<1x32xf32> to vector<48x32xf32>
    %130 = arith.mulf %93, %129 : vector<48x32xf32>
    %131 = arith.truncf %130 : vector<48x32xf32> to vector<48x32xbf16>
    %cst_72 = arith.constant dense<0.000000e+00> : vector<48x48xf32>
    %132 = tpu.matmul %131, %104, %cst_72 {dimension_numbers = #tpu.dot_dimension_numbers<[1], [1], [0], [0], [0, 0, 1, 0], [], []>} : vector<48x32xbf16>, vector<48x32xbf16>, vector<48x48xf32> -> vector<48x48xf32>
    %cst_73 = arith.constant 0.353553385 : f32
    %133 = vector.broadcast %cst_73 : f32 to vector<48x48xf32>
    %134 = arith.mulf %132, %133 : vector<48x48xf32>
    %135 = arith.addf %134, %43 : vector<48x48xf32>
    %cst_74 = arith.constant dense<0xFF800000> : vector<48xf32>
    %136 = vector.multi_reduction <maximumf>, %135, %cst_74 [1] : vector<48x48xf32> to vector<48xf32>
    %137 = vector.shape_cast %136 : vector<48xf32> to vector<48x1xf32>
    %138 = vector.broadcast %137 : vector<48x1xf32> to vector<48x48xf32>
    %139 = arith.subf %135, %138 : vector<48x48xf32>
    %140 = math.exp %139 : vector<48x48xf32>
    %cst_75 = arith.constant dense<0.000000e+00> : vector<48xf32>
    %141 = vector.multi_reduction <add>, %140, %cst_75 [1] : vector<48x48xf32> to vector<48xf32>
    %142 = vector.shape_cast %141 : vector<48xf32> to vector<48x1xf32>
    %143 = tpu.reciprocal %142 : vector<48x1xf32> -> vector<48x1xf32>
    %144 = vector.broadcast %143 : vector<48x1xf32> to vector<48x48xf32>
    %145 = arith.mulf %140, %144 : vector<48x48xf32>
    %146 = arith.truncf %145 : vector<48x48xf32> to vector<48x48xbf16>
    %147 = vector.broadcast %58 : vector<1x32xf32> to vector<48x32xf32>
    %148 = arith.mulf %103, %147 : vector<48x32xf32>
    %149 = arith.truncf %148 : vector<48x32xf32> to vector<48x32xbf16>
    %cst_76 = arith.constant dense<0.000000e+00> : vector<48x32xf32>
    %150 = tpu.matmul %146, %149, %cst_76 {dimension_numbers = #tpu.dot_dimension_numbers<[1], [0], [0], [1], [0, 0, 1, 1], [], []>} : vector<48x48xbf16>, vector<48x32xbf16>, vector<48x32xf32> -> vector<48x32xf32>
    %151 = arith.addf %128, %150 : vector<48x32xf32>
    %152 = vector.broadcast %65 : vector<1x32xf32> to vector<48x32xf32>
    %153 = arith.mulf %93, %152 : vector<48x32xf32>
    %154 = arith.truncf %153 : vector<48x32xf32> to vector<48x32xbf16>
    %cst_77 = arith.constant dense<0.000000e+00> : vector<48x48xf32>
    %155 = tpu.matmul %154, %104, %cst_77 {dimension_numbers = #tpu.dot_dimension_numbers<[1], [1], [0], [0], [0, 0, 1, 0], [], []>} : vector<48x32xbf16>, vector<48x32xbf16>, vector<48x48xf32> -> vector<48x48xf32>
    %cst_78 = arith.constant 0.353553385 : f32
    %156 = vector.broadcast %cst_78 : f32 to vector<48x48xf32>
    %157 = arith.mulf %155, %156 : vector<48x48xf32>
    %158 = arith.addf %157, %43 : vector<48x48xf32>
    %cst_79 = arith.constant dense<0xFF800000> : vector<48xf32>
    %159 = vector.multi_reduction <maximumf>, %158, %cst_79 [1] : vector<48x48xf32> to vector<48xf32>
    %160 = vector.shape_cast %159 : vector<48xf32> to vector<48x1xf32>
    %161 = vector.broadcast %160 : vector<48x1xf32> to vector<48x48xf32>
    %162 = arith.subf %158, %161 : vector<48x48xf32>
    %163 = math.exp %162 : vector<48x48xf32>
    %cst_80 = arith.constant dense<0.000000e+00> : vector<48xf32>
    %164 = vector.multi_reduction <add>, %163, %cst_80 [1] : vector<48x48xf32> to vector<48xf32>
    %165 = vector.shape_cast %164 : vector<48xf32> to vector<48x1xf32>
    %166 = tpu.reciprocal %165 : vector<48x1xf32> -> vector<48x1xf32>
    %167 = vector.broadcast %166 : vector<48x1xf32> to vector<48x48xf32>
    %168 = arith.mulf %163, %167 : vector<48x48xf32>
    %169 = arith.truncf %168 : vector<48x48xf32> to vector<48x48xbf16>
    %170 = vector.broadcast %65 : vector<1x32xf32> to vector<48x32xf32>
    %171 = arith.mulf %103, %170 : vector<48x32xf32>
    %172 = arith.truncf %171 : vector<48x32xf32> to vector<48x32xbf16>
    %cst_81 = arith.constant dense<0.000000e+00> : vector<48x32xf32>
    %173 = tpu.matmul %169, %172, %cst_81 {dimension_numbers = #tpu.dot_dimension_numbers<[1], [0], [0], [1], [0, 0, 1, 1], [], []>} : vector<48x48xbf16>, vector<48x32xbf16>, vector<48x32xf32> -> vector<48x32xf32>
    %174 = arith.addf %151, %173 : vector<48x32xf32>
    %175 = vector.broadcast %72 : vector<1x32xf32> to vector<48x32xf32>
    %176 = arith.mulf %93, %175 : vector<48x32xf32>
    %177 = arith.truncf %176 : vector<48x32xf32> to vector<48x32xbf16>
    %cst_82 = arith.constant dense<0.000000e+00> : vector<48x48xf32>
    %178 = tpu.matmul %177, %104, %cst_82 {dimension_numbers = #tpu.dot_dimension_numbers<[1], [1], [0], [0], [0, 0, 1, 0], [], []>} : vector<48x32xbf16>, vector<48x32xbf16>, vector<48x48xf32> -> vector<48x48xf32>
    %cst_83 = arith.constant 0.353553385 : f32
    %179 = vector.broadcast %cst_83 : f32 to vector<48x48xf32>
    %180 = arith.mulf %178, %179 : vector<48x48xf32>
    %181 = arith.addf %180, %43 : vector<48x48xf32>
    %cst_84 = arith.constant dense<0xFF800000> : vector<48xf32>
    %182 = vector.multi_reduction <maximumf>, %181, %cst_84 [1] : vector<48x48xf32> to vector<48xf32>
    %183 = vector.shape_cast %182 : vector<48xf32> to vector<48x1xf32>
    %184 = vector.broadcast %183 : vector<48x1xf32> to vector<48x48xf32>
    %185 = arith.subf %181, %184 : vector<48x48xf32>
    %186 = math.exp %185 : vector<48x48xf32>
    %cst_85 = arith.constant dense<0.000000e+00> : vector<48xf32>
    %187 = vector.multi_reduction <add>, %186, %cst_85 [1] : vector<48x48xf32> to vector<48xf32>
    %188 = vector.shape_cast %187 : vector<48xf32> to vector<48x1xf32>
    %189 = tpu.reciprocal %188 : vector<48x1xf32> -> vector<48x1xf32>
    %190 = vector.broadcast %189 : vector<48x1xf32> to vector<48x48xf32>
    %191 = arith.mulf %186, %190 : vector<48x48xf32>
    %192 = arith.truncf %191 : vector<48x48xf32> to vector<48x48xbf16>
    %193 = vector.broadcast %72 : vector<1x32xf32> to vector<48x32xf32>
    %194 = arith.mulf %103, %193 : vector<48x32xf32>
    %195 = arith.truncf %194 : vector<48x32xf32> to vector<48x32xbf16>
    %cst_86 = arith.constant dense<0.000000e+00> : vector<48x32xf32>
    %196 = tpu.matmul %192, %195, %cst_86 {dimension_numbers = #tpu.dot_dimension_numbers<[1], [0], [0], [1], [0, 0, 1, 1], [], []>} : vector<48x48xbf16>, vector<48x32xbf16>, vector<48x32xf32> -> vector<48x32xf32>
    %197 = arith.addf %174, %196 : vector<48x32xf32>
    %198 = arith.truncf %197 : vector<48x32xf32> to vector<48x32xbf16>
    %c0_87 = arith.constant 0 : index
    %c3 = arith.constant 3 : index
    %c0_88 = arith.constant 0 : index
    %c0_89 = arith.constant 0 : index
    %199 = vector.load %arg14[%c0_87, %c3, %c0_88, %c0_89] : memref<2x4x32x32xbf16, #tpu.memory_space<vmem>>, vector<1x1x32x32xbf16>
    %200 = vector.shape_cast %199 : vector<1x1x32x32xbf16> to vector<32x32xbf16>
    %cst_90 = arith.constant dense<0.000000e+00> : vector<48x32xf32>
    %201 = tpu.matmul %198, %200, %cst_90 {dimension_numbers = #tpu.dot_dimension_numbers<[1], [0], [0], [1], [0, 0, 1, 1], [], []>} : vector<48x32xbf16>, vector<32x32xbf16>, vector<48x32xf32> -> vector<48x32xf32>
    %202 = arith.addf %37, %201 : vector<48x32xf32>
    %c4 = arith.constant 4 : index
    %c0_91 = arith.constant 0 : index
    %203 = vector.load %arg13[%c4, %c0_91] : memref<6x32xf32, #tpu.memory_space<vmem>>, vector<1x32xf32>
    %204 = arith.mulf %202, %202 : vector<48x32xf32>
    %cst_92 = arith.constant dense<0.000000e+00> : vector<48xf32>
    %205 = vector.multi_reduction <add>, %204, %cst_92 [1] : vector<48x32xf32> to vector<48xf32>
    %206 = vector.shape_cast %205 : vector<48xf32> to vector<48x1xf32>
    %cst_93 = arith.constant 3.200000e+01 : f32
    %207 = vector.broadcast %cst_93 : f32 to vector<48x1xf32>
    %208 = arith.divf %206, %207 : vector<48x1xf32>
    %cst_94 = arith.constant 9.99999974E-6 : f32
    %209 = vector.broadcast %cst_94 : f32 to vector<48x1xf32>
    %210 = arith.addf %208, %209 : vector<48x1xf32>
    %211 = math.rsqrt %210 : vector<48x1xf32>
    %212 = vector.broadcast %211 : vector<48x1xf32> to vector<48x32xf32>
    %213 = arith.mulf %202, %212 : vector<48x32xf32>
    %214 = vector.broadcast %203 : vector<1x32xf32> to vector<48x32xf32>
    %215 = arith.mulf %213, %214 : vector<48x32xf32>
    %216 = arith.truncf %215 : vector<48x32xf32> to vector<48x32xbf16>
    %c0_95 = arith.constant 0 : index
    %c0_96 = arith.constant 0 : index
    %c0_97 = arith.constant 0 : index
    %c0_98 = arith.constant 0 : index
    %217 = vector.load %arg15[%c0_95, %c0_96, %c0_97, %c0_98] : memref<2x2x32x64xbf16, #tpu.memory_space<vmem>>, vector<1x1x32x64xbf16>
    %218 = vector.shape_cast %217 : vector<1x1x32x64xbf16> to vector<32x64xbf16>
    %cst_99 = arith.constant dense<0.000000e+00> : vector<48x64xf32>
    %219 = tpu.matmul %216, %218, %cst_99 {dimension_numbers = #tpu.dot_dimension_numbers<[1], [0], [0], [1], [0, 0, 1, 1], [], []>} : vector<48x32xbf16>, vector<32x64xbf16>, vector<48x64xf32> -> vector<48x64xf32>
    %c0_100 = arith.constant 0 : index
    %c1_101 = arith.constant 1 : index
    %c0_102 = arith.constant 0 : index
    %c0_103 = arith.constant 0 : index
    %220 = vector.load %arg15[%c0_100, %c1_101, %c0_102, %c0_103] : memref<2x2x32x64xbf16, #tpu.memory_space<vmem>>, vector<1x1x32x64xbf16>
    %221 = vector.shape_cast %220 : vector<1x1x32x64xbf16> to vector<32x64xbf16>
    %cst_104 = arith.constant dense<0.000000e+00> : vector<48x64xf32>
    %222 = tpu.matmul %216, %221, %cst_104 {dimension_numbers = #tpu.dot_dimension_numbers<[1], [0], [0], [1], [0, 0, 1, 1], [], []>} : vector<48x32xbf16>, vector<32x64xbf16>, vector<48x64xf32> -> vector<48x64xf32>
    %223 = arith.negf %219 : vector<48x64xf32>
    %224 = math.exp %223 : vector<48x64xf32>
    %cst_105 = arith.constant 1.000000e+00 : f32
    %225 = vector.broadcast %cst_105 : f32 to vector<48x64xf32>
    %226 = arith.addf %225, %224 : vector<48x64xf32>
    %227 = arith.divf %225, %226 : vector<48x64xf32>
    %228 = arith.mulf %219, %227 : vector<48x64xf32>
    %229 = arith.mulf %228, %222 : vector<48x64xf32>
    %230 = arith.truncf %229 : vector<48x64xf32> to vector<48x64xbf16>
    %c0_106 = arith.constant 0 : index
    %c0_107 = arith.constant 0 : index
    %c0_108 = arith.constant 0 : index
    %231 = vector.load %arg16[%c0_106, %c0_107, %c0_108] : memref<2x64x32xbf16, #tpu.memory_space<vmem>>, vector<1x64x32xbf16>
    %232 = vector.shape_cast %231 : vector<1x64x32xbf16> to vector<64x32xbf16>
    %cst_109 = arith.constant dense<0.000000e+00> : vector<48x32xf32>
    %233 = tpu.matmul %230, %232, %cst_109 {dimension_numbers = #tpu.dot_dimension_numbers<[1], [0], [0], [1], [0, 0, 1, 1], [], []>} : vector<48x64xbf16>, vector<64x32xbf16>, vector<48x32xf32> -> vector<48x32xf32>
    %234 = arith.addf %202, %233 : vector<48x32xf32>
    %c3_110 = arith.constant 3 : index
    %c0_111 = arith.constant 0 : index
    %235 = vector.load %arg13[%c3_110, %c0_111] : memref<6x32xf32, #tpu.memory_space<vmem>>, vector<1x32xf32>
    %236 = arith.mulf %234, %234 : vector<48x32xf32>
    %cst_112 = arith.constant dense<0.000000e+00> : vector<48xf32>
    %237 = vector.multi_reduction <add>, %236, %cst_112 [1] : vector<48x32xf32> to vector<48xf32>
    %238 = vector.shape_cast %237 : vector<48xf32> to vector<48x1xf32>
    %cst_113 = arith.constant 3.200000e+01 : f32
    %239 = vector.broadcast %cst_113 : f32 to vector<48x1xf32>
    %240 = arith.divf %238, %239 : vector<48x1xf32>
    %cst_114 = arith.constant 9.99999974E-6 : f32
    %241 = vector.broadcast %cst_114 : f32 to vector<48x1xf32>
    %242 = arith.addf %240, %241 : vector<48x1xf32>
    %243 = math.rsqrt %242 : vector<48x1xf32>
    %244 = vector.broadcast %243 : vector<48x1xf32> to vector<48x32xf32>
    %245 = arith.mulf %234, %244 : vector<48x32xf32>
    %246 = vector.broadcast %235 : vector<1x32xf32> to vector<48x32xf32>
    %247 = arith.mulf %245, %246 : vector<48x32xf32>
    %248 = arith.truncf %247 : vector<48x32xf32> to vector<48x32xbf16>
    %c1_115 = arith.constant 1 : index
    %c0_116 = arith.constant 0 : index
    %c0_117 = arith.constant 0 : index
    %c0_118 = arith.constant 0 : index
    %249 = vector.load %arg14[%c1_115, %c0_116, %c0_117, %c0_118] : memref<2x4x32x32xbf16, #tpu.memory_space<vmem>>, vector<1x1x32x32xbf16>
    %250 = vector.shape_cast %249 : vector<1x1x32x32xbf16> to vector<32x32xbf16>
    %cst_119 = arith.constant dense<0.000000e+00> : vector<48x32xf32>
    %251 = tpu.matmul %248, %250, %cst_119 {dimension_numbers = #tpu.dot_dimension_numbers<[1], [0], [0], [1], [0, 0, 1, 1], [], []>} : vector<48x32xbf16>, vector<32x32xbf16>, vector<48x32xf32> -> vector<48x32xf32>
    %252 = arith.mulf %251, %39 : vector<48x32xf32>
    %cst_120 = arith.constant dense<0.000000e+00> : vector<48x32xf32>
    %253 = tpu.matmul %251, %42, %cst_120 {dimension_numbers = #tpu.dot_dimension_numbers<[1], [0], [0], [1], [0, 0, 1, 1], [], []>} : vector<48x32xf32>, vector<32x32xf32>, vector<48x32xf32> -> vector<48x32xf32>
    %254 = arith.mulf %253, %41 : vector<48x32xf32>
    %255 = arith.addf %252, %254 : vector<48x32xf32>
    %c1_121 = arith.constant 1 : index
    %c1_122 = arith.constant 1 : index
    %c0_123 = arith.constant 0 : index
    %c0_124 = arith.constant 0 : index
    %256 = vector.load %arg14[%c1_121, %c1_122, %c0_123, %c0_124] : memref<2x4x32x32xbf16, #tpu.memory_space<vmem>>, vector<1x1x32x32xbf16>
    %257 = vector.shape_cast %256 : vector<1x1x32x32xbf16> to vector<32x32xbf16>
    %cst_125 = arith.constant dense<0.000000e+00> : vector<48x32xf32>
    %258 = tpu.matmul %248, %257, %cst_125 {dimension_numbers = #tpu.dot_dimension_numbers<[1], [0], [0], [1], [0, 0, 1, 1], [], []>} : vector<48x32xbf16>, vector<32x32xbf16>, vector<48x32xf32> -> vector<48x32xf32>
    %259 = arith.mulf %258, %39 : vector<48x32xf32>
    %cst_126 = arith.constant dense<0.000000e+00> : vector<48x32xf32>
    %260 = tpu.matmul %258, %42, %cst_126 {dimension_numbers = #tpu.dot_dimension_numbers<[1], [0], [0], [1], [0, 0, 1, 1], [], []>} : vector<48x32xf32>, vector<32x32xf32>, vector<48x32xf32> -> vector<48x32xf32>
    %261 = arith.mulf %260, %41 : vector<48x32xf32>
    %262 = arith.addf %259, %261 : vector<48x32xf32>
    %c1_127 = arith.constant 1 : index
    %c2_128 = arith.constant 2 : index
    %c0_129 = arith.constant 0 : index
    %c0_130 = arith.constant 0 : index
    %263 = vector.load %arg14[%c1_127, %c2_128, %c0_129, %c0_130] : memref<2x4x32x32xbf16, #tpu.memory_space<vmem>>, vector<1x1x32x32xbf16>
    %264 = vector.shape_cast %263 : vector<1x1x32x32xbf16> to vector<32x32xbf16>
    %cst_131 = arith.constant dense<0.000000e+00> : vector<48x32xf32>
    %265 = tpu.matmul %248, %264, %cst_131 {dimension_numbers = #tpu.dot_dimension_numbers<[1], [0], [0], [1], [0, 0, 1, 1], [], []>} : vector<48x32xbf16>, vector<32x32xbf16>, vector<48x32xf32> -> vector<48x32xf32>
    %266 = arith.truncf %262 : vector<48x32xf32> to vector<48x32xbf16>
    %cst_132 = arith.constant 0.000000e+00 : f32
    %267 = vector.broadcast %cst_132 : f32 to vector<48x32xf32>
    %268 = vector.broadcast %51 : vector<1x32xf32> to vector<48x32xf32>
    %269 = arith.mulf %255, %268 : vector<48x32xf32>
    %270 = arith.truncf %269 : vector<48x32xf32> to vector<48x32xbf16>
    %cst_133 = arith.constant dense<0.000000e+00> : vector<48x48xf32>
    %271 = tpu.matmul %270, %266, %cst_133 {dimension_numbers = #tpu.dot_dimension_numbers<[1], [1], [0], [0], [0, 0, 1, 0], [], []>} : vector<48x32xbf16>, vector<48x32xbf16>, vector<48x48xf32> -> vector<48x48xf32>
    %cst_134 = arith.constant 0.353553385 : f32
    %272 = vector.broadcast %cst_134 : f32 to vector<48x48xf32>
    %273 = arith.mulf %271, %272 : vector<48x48xf32>
    %274 = arith.addf %273, %43 : vector<48x48xf32>
    %cst_135 = arith.constant dense<0xFF800000> : vector<48xf32>
    %275 = vector.multi_reduction <maximumf>, %274, %cst_135 [1] : vector<48x48xf32> to vector<48xf32>
    %276 = vector.shape_cast %275 : vector<48xf32> to vector<48x1xf32>
    %277 = vector.broadcast %276 : vector<48x1xf32> to vector<48x48xf32>
    %278 = arith.subf %274, %277 : vector<48x48xf32>
    %279 = math.exp %278 : vector<48x48xf32>
    %cst_136 = arith.constant dense<0.000000e+00> : vector<48xf32>
    %280 = vector.multi_reduction <add>, %279, %cst_136 [1] : vector<48x48xf32> to vector<48xf32>
    %281 = vector.shape_cast %280 : vector<48xf32> to vector<48x1xf32>
    %282 = tpu.reciprocal %281 : vector<48x1xf32> -> vector<48x1xf32>
    %283 = vector.broadcast %282 : vector<48x1xf32> to vector<48x48xf32>
    %284 = arith.mulf %279, %283 : vector<48x48xf32>
    %285 = arith.truncf %284 : vector<48x48xf32> to vector<48x48xbf16>
    %286 = vector.broadcast %51 : vector<1x32xf32> to vector<48x32xf32>
    %287 = arith.mulf %265, %286 : vector<48x32xf32>
    %288 = arith.truncf %287 : vector<48x32xf32> to vector<48x32xbf16>
    %cst_137 = arith.constant dense<0.000000e+00> : vector<48x32xf32>
    %289 = tpu.matmul %285, %288, %cst_137 {dimension_numbers = #tpu.dot_dimension_numbers<[1], [0], [0], [1], [0, 0, 1, 1], [], []>} : vector<48x48xbf16>, vector<48x32xbf16>, vector<48x32xf32> -> vector<48x32xf32>
    %290 = arith.addf %267, %289 : vector<48x32xf32>
    %291 = vector.broadcast %58 : vector<1x32xf32> to vector<48x32xf32>
    %292 = arith.mulf %255, %291 : vector<48x32xf32>
    %293 = arith.truncf %292 : vector<48x32xf32> to vector<48x32xbf16>
    %cst_138 = arith.constant dense<0.000000e+00> : vector<48x48xf32>
    %294 = tpu.matmul %293, %266, %cst_138 {dimension_numbers = #tpu.dot_dimension_numbers<[1], [1], [0], [0], [0, 0, 1, 0], [], []>} : vector<48x32xbf16>, vector<48x32xbf16>, vector<48x48xf32> -> vector<48x48xf32>
    %cst_139 = arith.constant 0.353553385 : f32
    %295 = vector.broadcast %cst_139 : f32 to vector<48x48xf32>
    %296 = arith.mulf %294, %295 : vector<48x48xf32>
    %297 = arith.addf %296, %43 : vector<48x48xf32>
    %cst_140 = arith.constant dense<0xFF800000> : vector<48xf32>
    %298 = vector.multi_reduction <maximumf>, %297, %cst_140 [1] : vector<48x48xf32> to vector<48xf32>
    %299 = vector.shape_cast %298 : vector<48xf32> to vector<48x1xf32>
    %300 = vector.broadcast %299 : vector<48x1xf32> to vector<48x48xf32>
    %301 = arith.subf %297, %300 : vector<48x48xf32>
    %302 = math.exp %301 : vector<48x48xf32>
    %cst_141 = arith.constant dense<0.000000e+00> : vector<48xf32>
    %303 = vector.multi_reduction <add>, %302, %cst_141 [1] : vector<48x48xf32> to vector<48xf32>
    %304 = vector.shape_cast %303 : vector<48xf32> to vector<48x1xf32>
    %305 = tpu.reciprocal %304 : vector<48x1xf32> -> vector<48x1xf32>
    %306 = vector.broadcast %305 : vector<48x1xf32> to vector<48x48xf32>
    %307 = arith.mulf %302, %306 : vector<48x48xf32>
    %308 = arith.truncf %307 : vector<48x48xf32> to vector<48x48xbf16>
    %309 = vector.broadcast %58 : vector<1x32xf32> to vector<48x32xf32>
    %310 = arith.mulf %265, %309 : vector<48x32xf32>
    %311 = arith.truncf %310 : vector<48x32xf32> to vector<48x32xbf16>
    %cst_142 = arith.constant dense<0.000000e+00> : vector<48x32xf32>
    %312 = tpu.matmul %308, %311, %cst_142 {dimension_numbers = #tpu.dot_dimension_numbers<[1], [0], [0], [1], [0, 0, 1, 1], [], []>} : vector<48x48xbf16>, vector<48x32xbf16>, vector<48x32xf32> -> vector<48x32xf32>
    %313 = arith.addf %290, %312 : vector<48x32xf32>
    %314 = vector.broadcast %65 : vector<1x32xf32> to vector<48x32xf32>
    %315 = arith.mulf %255, %314 : vector<48x32xf32>
    %316 = arith.truncf %315 : vector<48x32xf32> to vector<48x32xbf16>
    %cst_143 = arith.constant dense<0.000000e+00> : vector<48x48xf32>
    %317 = tpu.matmul %316, %266, %cst_143 {dimension_numbers = #tpu.dot_dimension_numbers<[1], [1], [0], [0], [0, 0, 1, 0], [], []>} : vector<48x32xbf16>, vector<48x32xbf16>, vector<48x48xf32> -> vector<48x48xf32>
    %cst_144 = arith.constant 0.353553385 : f32
    %318 = vector.broadcast %cst_144 : f32 to vector<48x48xf32>
    %319 = arith.mulf %317, %318 : vector<48x48xf32>
    %320 = arith.addf %319, %43 : vector<48x48xf32>
    %cst_145 = arith.constant dense<0xFF800000> : vector<48xf32>
    %321 = vector.multi_reduction <maximumf>, %320, %cst_145 [1] : vector<48x48xf32> to vector<48xf32>
    %322 = vector.shape_cast %321 : vector<48xf32> to vector<48x1xf32>
    %323 = vector.broadcast %322 : vector<48x1xf32> to vector<48x48xf32>
    %324 = arith.subf %320, %323 : vector<48x48xf32>
    %325 = math.exp %324 : vector<48x48xf32>
    %cst_146 = arith.constant dense<0.000000e+00> : vector<48xf32>
    %326 = vector.multi_reduction <add>, %325, %cst_146 [1] : vector<48x48xf32> to vector<48xf32>
    %327 = vector.shape_cast %326 : vector<48xf32> to vector<48x1xf32>
    %328 = tpu.reciprocal %327 : vector<48x1xf32> -> vector<48x1xf32>
    %329 = vector.broadcast %328 : vector<48x1xf32> to vector<48x48xf32>
    %330 = arith.mulf %325, %329 : vector<48x48xf32>
    %331 = arith.truncf %330 : vector<48x48xf32> to vector<48x48xbf16>
    %332 = vector.broadcast %65 : vector<1x32xf32> to vector<48x32xf32>
    %333 = arith.mulf %265, %332 : vector<48x32xf32>
    %334 = arith.truncf %333 : vector<48x32xf32> to vector<48x32xbf16>
    %cst_147 = arith.constant dense<0.000000e+00> : vector<48x32xf32>
    %335 = tpu.matmul %331, %334, %cst_147 {dimension_numbers = #tpu.dot_dimension_numbers<[1], [0], [0], [1], [0, 0, 1, 1], [], []>} : vector<48x48xbf16>, vector<48x32xbf16>, vector<48x32xf32> -> vector<48x32xf32>
    %336 = arith.addf %313, %335 : vector<48x32xf32>
    %337 = vector.broadcast %72 : vector<1x32xf32> to vector<48x32xf32>
    %338 = arith.mulf %255, %337 : vector<48x32xf32>
    %339 = arith.truncf %338 : vector<48x32xf32> to vector<48x32xbf16>
    %cst_148 = arith.constant dense<0.000000e+00> : vector<48x48xf32>
    %340 = tpu.matmul %339, %266, %cst_148 {dimension_numbers = #tpu.dot_dimension_numbers<[1], [1], [0], [0], [0, 0, 1, 0], [], []>} : vector<48x32xbf16>, vector<48x32xbf16>, vector<48x48xf32> -> vector<48x48xf32>
    %cst_149 = arith.constant 0.353553385 : f32
    %341 = vector.broadcast %cst_149 : f32 to vector<48x48xf32>
    %342 = arith.mulf %340, %341 : vector<48x48xf32>
    %343 = arith.addf %342, %43 : vector<48x48xf32>
    %cst_150 = arith.constant dense<0xFF800000> : vector<48xf32>
    %344 = vector.multi_reduction <maximumf>, %343, %cst_150 [1] : vector<48x48xf32> to vector<48xf32>
    %345 = vector.shape_cast %344 : vector<48xf32> to vector<48x1xf32>
    %346 = vector.broadcast %345 : vector<48x1xf32> to vector<48x48xf32>
    %347 = arith.subf %343, %346 : vector<48x48xf32>
    %348 = math.exp %347 : vector<48x48xf32>
    %cst_151 = arith.constant dense<0.000000e+00> : vector<48xf32>
    %349 = vector.multi_reduction <add>, %348, %cst_151 [1] : vector<48x48xf32> to vector<48xf32>
    %350 = vector.shape_cast %349 : vector<48xf32> to vector<48x1xf32>
    %351 = tpu.reciprocal %350 : vector<48x1xf32> -> vector<48x1xf32>
    %352 = vector.broadcast %351 : vector<48x1xf32> to vector<48x48xf32>
    %353 = arith.mulf %348, %352 : vector<48x48xf32>
    %354 = arith.truncf %353 : vector<48x48xf32> to vector<48x48xbf16>
    %355 = vector.broadcast %72 : vector<1x32xf32> to vector<48x32xf32>
    %356 = arith.mulf %265, %355 : vector<48x32xf32>
    %357 = arith.truncf %356 : vector<48x32xf32> to vector<48x32xbf16>
    %cst_152 = arith.constant dense<0.000000e+00> : vector<48x32xf32>
    %358 = tpu.matmul %354, %357, %cst_152 {dimension_numbers = #tpu.dot_dimension_numbers<[1], [0], [0], [1], [0, 0, 1, 1], [], []>} : vector<48x48xbf16>, vector<48x32xbf16>, vector<48x32xf32> -> vector<48x32xf32>
    %359 = arith.addf %336, %358 : vector<48x32xf32>
    %360 = arith.truncf %359 : vector<48x32xf32> to vector<48x32xbf16>
    %c1_153 = arith.constant 1 : index
    %c3_154 = arith.constant 3 : index
    %c0_155 = arith.constant 0 : index
    %c0_156 = arith.constant 0 : index
    %361 = vector.load %arg14[%c1_153, %c3_154, %c0_155, %c0_156] : memref<2x4x32x32xbf16, #tpu.memory_space<vmem>>, vector<1x1x32x32xbf16>
    %362 = vector.shape_cast %361 : vector<1x1x32x32xbf16> to vector<32x32xbf16>
    %cst_157 = arith.constant dense<0.000000e+00> : vector<48x32xf32>
    %363 = tpu.matmul %360, %362, %cst_157 {dimension_numbers = #tpu.dot_dimension_numbers<[1], [0], [0], [1], [0, 0, 1, 1], [], []>} : vector<48x32xbf16>, vector<32x32xbf16>, vector<48x32xf32> -> vector<48x32xf32>
    %364 = arith.addf %234, %363 : vector<48x32xf32>
    %c5 = arith.constant 5 : index
    %c0_158 = arith.constant 0 : index
    %365 = vector.load %arg13[%c5, %c0_158] : memref<6x32xf32, #tpu.memory_space<vmem>>, vector<1x32xf32>
    %366 = arith.mulf %364, %364 : vector<48x32xf32>
    %cst_159 = arith.constant dense<0.000000e+00> : vector<48xf32>
    %367 = vector.multi_reduction <add>, %366, %cst_159 [1] : vector<48x32xf32> to vector<48xf32>
    %368 = vector.shape_cast %367 : vector<48xf32> to vector<48x1xf32>
    %cst_160 = arith.constant 3.200000e+01 : f32
    %369 = vector.broadcast %cst_160 : f32 to vector<48x1xf32>
    %370 = arith.divf %368, %369 : vector<48x1xf32>
    %cst_161 = arith.constant 9.99999974E-6 : f32
    %371 = vector.broadcast %cst_161 : f32 to vector<48x1xf32>
    %372 = arith.addf %370, %371 : vector<48x1xf32>
    %373 = math.rsqrt %372 : vector<48x1xf32>
    %374 = vector.broadcast %373 : vector<48x1xf32> to vector<48x32xf32>
    %375 = arith.mulf %364, %374 : vector<48x32xf32>
    %376 = vector.broadcast %365 : vector<1x32xf32> to vector<48x32xf32>
    %377 = arith.mulf %375, %376 : vector<48x32xf32>
    %378 = arith.truncf %377 : vector<48x32xf32> to vector<48x32xbf16>
    %c1_162 = arith.constant 1 : index
    %c0_163 = arith.constant 0 : index
    %c0_164 = arith.constant 0 : index
    %c0_165 = arith.constant 0 : index
    %379 = vector.load %arg15[%c1_162, %c0_163, %c0_164, %c0_165] : memref<2x2x32x64xbf16, #tpu.memory_space<vmem>>, vector<1x1x32x64xbf16>
    %380 = vector.shape_cast %379 : vector<1x1x32x64xbf16> to vector<32x64xbf16>
    %cst_166 = arith.constant dense<0.000000e+00> : vector<48x64xf32>
    %381 = tpu.matmul %378, %380, %cst_166 {dimension_numbers = #tpu.dot_dimension_numbers<[1], [0], [0], [1], [0, 0, 1, 1], [], []>} : vector<48x32xbf16>, vector<32x64xbf16>, vector<48x64xf32> -> vector<48x64xf32>
    %c1_167 = arith.constant 1 : index
    %c1_168 = arith.constant 1 : index
    %c0_169 = arith.constant 0 : index
    %c0_170 = arith.constant 0 : index
    %382 = vector.load %arg15[%c1_167, %c1_168, %c0_169, %c0_170] : memref<2x2x32x64xbf16, #tpu.memory_space<vmem>>, vector<1x1x32x64xbf16>
    %383 = vector.shape_cast %382 : vector<1x1x32x64xbf16> to vector<32x64xbf16>
    %cst_171 = arith.constant dense<0.000000e+00> : vector<48x64xf32>
    %384 = tpu.matmul %378, %383, %cst_171 {dimension_numbers = #tpu.dot_dimension_numbers<[1], [0], [0], [1], [0, 0, 1, 1], [], []>} : vector<48x32xbf16>, vector<32x64xbf16>, vector<48x64xf32> -> vector<48x64xf32>
    %385 = arith.negf %381 : vector<48x64xf32>
    %386 = math.exp %385 : vector<48x64xf32>
    %cst_172 = arith.constant 1.000000e+00 : f32
    %387 = vector.broadcast %cst_172 : f32 to vector<48x64xf32>
    %388 = arith.addf %387, %386 : vector<48x64xf32>
    %389 = arith.divf %387, %388 : vector<48x64xf32>
    %390 = arith.mulf %381, %389 : vector<48x64xf32>
    %391 = arith.mulf %390, %384 : vector<48x64xf32>
    %392 = arith.truncf %391 : vector<48x64xf32> to vector<48x64xbf16>
    %c1_173 = arith.constant 1 : index
    %c0_174 = arith.constant 0 : index
    %c0_175 = arith.constant 0 : index
    %393 = vector.load %arg16[%c1_173, %c0_174, %c0_175] : memref<2x64x32xbf16, #tpu.memory_space<vmem>>, vector<1x64x32xbf16>
    %394 = vector.shape_cast %393 : vector<1x64x32xbf16> to vector<64x32xbf16>
    %cst_176 = arith.constant dense<0.000000e+00> : vector<48x32xf32>
    %395 = tpu.matmul %392, %394, %cst_176 {dimension_numbers = #tpu.dot_dimension_numbers<[1], [0], [0], [1], [0, 0, 1, 1], [], []>} : vector<48x64xbf16>, vector<64x32xbf16>, vector<48x32xf32> -> vector<48x32xf32>
    %396 = arith.addf %364, %395 : vector<48x32xf32>
    %c0_177 = arith.constant 0 : index
    %c0_178 = arith.constant 0 : index
    %397 = vector.load %arg8[%c0_177, %c0_178] : memref<16x48xf32, #tpu.memory_space<vmem>>, vector<16x48xf32>
    %cst_179 = arith.constant dense<0.000000e+00> : vector<16x32xf32>
    %398 = tpu.matmul %397, %396, %cst_179 {dimension_numbers = #tpu.dot_dimension_numbers<[1], [0], [0], [1], [0, 0, 1, 1], [], []>} : vector<16x48xf32>, vector<48x32xf32>, vector<16x32xf32> -> vector<16x32xf32>
    %c1_180 = arith.constant 1 : index
    %c0_181 = arith.constant 0 : index
    %399 = vector.load %arg13[%c1_180, %c0_181] : memref<6x32xf32, #tpu.memory_space<vmem>>, vector<1x32xf32>
    %400 = arith.mulf %398, %398 : vector<16x32xf32>
    %cst_182 = arith.constant dense<0.000000e+00> : vector<16xf32>
    %401 = vector.multi_reduction <add>, %400, %cst_182 [1] : vector<16x32xf32> to vector<16xf32>
    %402 = vector.shape_cast %401 : vector<16xf32> to vector<16x1xf32>
    %cst_183 = arith.constant 3.200000e+01 : f32
    %403 = vector.broadcast %cst_183 : f32 to vector<16x1xf32>
    %404 = arith.divf %402, %403 : vector<16x1xf32>
    %cst_184 = arith.constant 9.99999974E-6 : f32
    %405 = vector.broadcast %cst_184 : f32 to vector<16x1xf32>
    %406 = arith.addf %404, %405 : vector<16x1xf32>
    %407 = math.rsqrt %406 : vector<16x1xf32>
    %408 = vector.broadcast %407 : vector<16x1xf32> to vector<16x32xf32>
    %409 = arith.mulf %398, %408 : vector<16x32xf32>
    %410 = vector.broadcast %399 : vector<1x32xf32> to vector<16x32xf32>
    %411 = arith.mulf %409, %410 : vector<16x32xf32>
    %c0_185 = arith.constant 0 : index
    %c0_186 = arith.constant 0 : index
    %412 = vector.load %arg17[%c0_185, %c0_186] : memref<32x128xf32, #tpu.memory_space<vmem>>, vector<32x128xf32>
    %cst_187 = arith.constant dense<0.000000e+00> : vector<16x128xf32>
    %413 = tpu.matmul %411, %412, %cst_187 {dimension_numbers = #tpu.dot_dimension_numbers<[1], [0], [0], [1], [0, 0, 1, 1], [], []>} : vector<16x32xf32>, vector<32x128xf32>, vector<16x128xf32> -> vector<16x128xf32>
    %c0_188 = arith.constant 0 : index
    %c0_189 = arith.constant 0 : index
    %414 = vector.load %arg18[%c0_188, %c0_189] : memref<16x128xf32, #tpu.memory_space<vmem>>, vector<16x128xf32>
    tpu.vector_store %arg18[%c0_188, %c0_189], %413 {strides = array<i32>} : memref<16x128xf32, #tpu.memory_space<vmem>>, vector<16x128xf32>,
    return
  }
  func.func @transform_0(%arg0: i32) -> (i32, i32) {
    %c0_i32 = arith.constant 0 : i32
    %c0_i32_0 = arith.constant 0 : i32
    %c0_i32_1 = arith.constant 0 : i32
    return %c0_i32, %c0_i32_0 : i32, i32
  }
  func.func @transform_1(%arg0: i32) -> (i32, i32) {
    %c0_i32 = arith.constant 0 : i32
    %c0_i32_0 = arith.constant 0 : i32
    %c0_i32_1 = arith.constant 0 : i32
    return %c0_i32, %c0_i32_0 : i32, i32
  }
  func.func @transform_2(%arg0: i32) -> (i32, i32) {
    %c0_i32 = arith.constant 0 : i32
    %c0_i32_0 = arith.constant 0 : i32
    %c0_i32_1 = arith.constant 0 : i32
    return %c0_i32, %c0_i32_0 : i32, i32
  }
  func.func @transform_3(%arg0: i32) -> (i32, i32, i32) {
    %c0_i32 = arith.constant 0 : i32
    %c0_i32_0 = arith.constant 0 : i32
    %c0_i32_1 = arith.constant 0 : i32
    %c0_i32_2 = arith.constant 0 : i32
    return %c0_i32, %c0_i32_0, %c0_i32_1 : i32, i32, i32
  }
  func.func @transform_4(%arg0: i32) -> (i32, i32) {
    %c0_i32 = arith.constant 0 : i32
    %c0_i32_0 = arith.constant 0 : i32
    %c0_i32_1 = arith.constant 0 : i32
    return %c0_i32, %c0_i32_0 : i32, i32
  }
  func.func @transform_5(%arg0: i32) -> (i32, i32) {
    %c0_i32 = arith.constant 0 : i32
    %c0_i32_0 = arith.constant 0 : i32
    %c0_i32_1 = arith.constant 0 : i32
    return %c0_i32, %c0_i32_0 : i32, i32
  }
  func.func @transform_6(%arg0: i32) -> (i32, i32, i32) {
    %c0_i32 = arith.constant 0 : i32
    %c0_i32_0 = arith.constant 0 : i32
    %c0_i32_1 = arith.constant 0 : i32
    %c0_i32_2 = arith.constant 0 : i32
    return %c0_i32, %c0_i32_0, %c0_i32_1 : i32, i32, i32
  }
  func.func @transform_7(%arg0: i32) -> (i32, i32) {
    %c0_i32 = arith.constant 0 : i32
    %c0_i32_0 = arith.constant 0 : i32
    %c0_i32_1 = arith.constant 0 : i32
    return %c0_i32, %c0_i32_0 : i32, i32
  }
  func.func @transform_8(%arg0: i32) -> (i32, i32) {
    %c0_i32 = arith.constant 0 : i32
    %c0_i32_0 = arith.constant 0 : i32
    %c0_i32_1 = arith.constant 0 : i32
    return %c0_i32, %c0_i32_0 : i32, i32
  }
  func.func @transform_9(%arg0: i32) -> (i32, i32) {
    %c0_i32 = arith.constant 0 : i32
    %c0_i32_0 = arith.constant 0 : i32
    %c0_i32_1 = arith.constant 0 : i32
    return %c0_i32, %c0_i32_0 : i32, i32
  }
  func.func @transform_10(%arg0: i32) -> (i32, i32) {
    %c0_i32 = arith.constant 0 : i32
    %c0_i32_0 = arith.constant 0 : i32
    %c0_i32_1 = arith.constant 0 : i32
    return %c0_i32, %c0_i32_0 : i32, i32
  }
  func.func @transform_11(%arg0: i32) -> (i32, i32) {
    %c0_i32 = arith.constant 0 : i32
    %c0_i32_0 = arith.constant 0 : i32
    %c0_i32_1 = arith.constant 0 : i32
    return %c0_i32, %c0_i32_0 : i32, i32
  }
  func.func @transform_12(%arg0: i32) -> (i32, i32) {
    %c0_i32 = arith.constant 0 : i32
    %c0_i32_0 = arith.constant 0 : i32
    %c0_i32_1 = arith.constant 0 : i32
    return %c0_i32, %c0_i32_0 : i32, i32
  }
  func.func @transform_13(%arg0: i32) -> (i32, i32, i32, i32) {
    %c0_i32 = arith.constant 0 : i32
    %c0_i32_0 = arith.constant 0 : i32
    %c0_i32_1 = arith.constant 0 : i32
    %c0_i32_2 = arith.constant 0 : i32
    %c0_i32_3 = arith.constant 0 : i32
    return %c0_i32, %c0_i32_0, %c0_i32_1, %c0_i32_2 : i32, i32, i32, i32
  }
  func.func @transform_14(%arg0: i32) -> (i32, i32, i32, i32) {
    %c0_i32 = arith.constant 0 : i32
    %c0_i32_0 = arith.constant 0 : i32
    %c0_i32_1 = arith.constant 0 : i32
    %c0_i32_2 = arith.constant 0 : i32
    %c0_i32_3 = arith.constant 0 : i32
    return %c0_i32, %c0_i32_0, %c0_i32_1, %c0_i32_2 : i32, i32, i32, i32
  }
  func.func @transform_15(%arg0: i32) -> (i32, i32, i32) {
    %c0_i32 = arith.constant 0 : i32
    %c0_i32_0 = arith.constant 0 : i32
    %c0_i32_1 = arith.constant 0 : i32
    %c0_i32_2 = arith.constant 0 : i32
    return %c0_i32, %c0_i32_0, %c0_i32_1 : i32, i32, i32
  }
  func.func @transform_16(%arg0: i32) -> (i32, i32) {
    %c0_i32 = arith.constant 0 : i32
    %c0_i32_0 = arith.constant 0 : i32
    %c0_i32_1 = arith.constant 0 : i32
    return %c0_i32, %c0_i32_0 : i32, i32
  }
  func.func @transform_17(%arg0: i32) -> (i32, i32) {
    %c0_i32 = arith.constant 0 : i32
    %c0_i32_0 = arith.constant 0 : i32
    %c0_i32_1 = arith.constant 0 : i32
    return %c0_i32, %c0_i32_0 : i32, i32
  }
}

</mosaic_0001>

<llo_original>
// kernel: forward.1
$region0: #{forward.1}
  #allocation0 [shape = 'u32[]', space=smem, size = 0x4, offset = 0x4, fixed_abs, tag = 'smem constant byte address 0x4 - core index']
  #allocation1 [shape = 'u32[144,128]{1,0:T(1,128)}', space=vmem, size = 0x12000, scoped, tag = 'internal scratch']
  %s0 = inlined_call_operand.hbm [shape: f32[16,8], index: 0, kind: input, shape index: {}]
  %s1 = inlined_call_operand.vmem [shape: s32[16,1], index: 1, kind: input, shape index: {}]
  %s2 = inlined_call_operand.vmem [shape: f32[16,1], index: 2, kind: input, shape index: {}]
  %s3 = inlined_call_operand.hbm [shape: f32[2,48,32], index: 3, kind: input, shape index: {}]
  %s4 = inlined_call_operand.vmem [shape: f32[48,48], index: 4, kind: input, shape index: {}]
  %s5 = inlined_call_operand.hbm [shape: f32[32,32], index: 5, kind: input, shape index: {}]
  %s6 = inlined_call_operand.vmem [shape: f32[3,48,16], index: 6, kind: input, shape index: {}]
  %s7 = inlined_call_operand.hbm [shape: f32[16,48], index: 7, kind: input, shape index: {}]
  %s8 = inlined_call_operand.hbm [shape: f32[8,16], index: 8, kind: input, shape index: {}]
  %s9 = inlined_call_operand.hbm [shape: f32[6,16], index: 9, kind: input, shape index: {}]
  %s10 = inlined_call_operand.hbm [shape: f32[16,32], index: 10, kind: input, shape index: {}]
  %s11 = inlined_call_operand.hbm [shape: f32[3,16], index: 11, kind: input, shape index: {}]
  %s12 = inlined_call_operand.hbm [shape: f32[6,32], index: 12, kind: input, shape index: {}]
  %s13 = inlined_call_operand.hbm [shape: bf16[2,4,32,32], index: 13, kind: input, shape index: {}]
  %s14 = inlined_call_operand.hbm [shape: bf16[2,2,32,64], index: 14, kind: input, shape index: {}]
  %s15 = inlined_call_operand.vmem [shape: bf16[2,64,32], index: 15, kind: input, shape index: {}]
  %s16 = inlined_call_operand.hbm [shape: f32[32,128], index: 16, kind: input, shape index: {}]
  %s17 = inlined_call_operand.vmem [shape: f32[16,128], index: 17, kind: output, shape index: {}]
  %s18 = sld [smem:[#allocation0]]
  $region126: #{forward.1} parent=0
    _
  %s20 = ssub.s32 1, %s18
  %s21 = scalar_select 0, %s20, %s18
  $region1: #{forward.1} parent=0
    #allocation2 [shape = 'u8[8192]{0}', space=vmem, size = 0x2000, scoped, tag = 'input window, operand 0, single buffered']
    #allocation3 [shape = 's32[1]{0}', space=sflag, size = 0x4, scoped, tag = 'scoped memory for forward.1']
    #allocation4 [shape = 'u8[49152]{0}', space=vmem, size = 0xc000, scoped, tag = 'input window, operand 3, single buffered']
    #allocation5 [shape = 's32[1]{0}', space=sflag, size = 0x4, scoped, tag = 'scoped memory for forward.1']
    #allocation6 [shape = 'u8[16384]{0}', space=vmem, size = 0x4000, scoped, tag = 'input window, operand 5, single buffered']
    #allocation7 [shape = 'u8[8192]{0}', space=vmem, size = 0x2000, scoped, tag = 'input window, operand 7, single buffered']
    #allocation8 [shape = 's32[1]{0}', space=sflag, size = 0x4, scoped, tag = 'scoped memory for forward.1']
    #allocation9 [shape = 'u8[4096]{0}', space=vmem, size = 0x1000, scoped, tag = 'input window, operand 8, single buffered']
    #allocation10 [shape = 'u8[4096]{0}', space=vmem, size = 0x1000, scoped, tag = 'input window, operand 9, single buffered']
    #allocation11 [shape = 's32[1]{0}', space=sflag, size = 0x4, scoped, tag = 'scoped memory for forward.1']
    #allocation12 [shape = 'u8[8192]{0}', space=vmem, size = 0x2000, scoped, tag = 'input window, operand 10, single buffered']
    #allocation13 [shape = 'u8[2048]{0}', space=vmem, size = 0x800, scoped, tag = 'input window, operand 11, single buffered']
    #allocation14 [shape = 's32[1]{0}', space=sflag, size = 0x4, scoped, tag = 'scoped memory for forward.1']
    #allocation15 [shape = 'u8[4096]{0}', space=vmem, size = 0x1000, scoped, tag = 'input window, operand 12, single buffered']
    #allocation16 [shape = 'u8[65536]{0}', space=vmem, size = 0x10000, scoped, tag = 'input window, operand 13, single buffered']
    #allocation17 [shape = 's32[1]{0}', space=sflag, size = 0x4, scoped, tag = 'scoped memory for forward.1']
    #allocation18 [shape = 'u8[32768]{0}', space=vmem, size = 0x8000, scoped, tag = 'input window, operand 14, single buffered']
    #allocation19 [shape = 'u8[16384]{0}', space=vmem, size = 0x4000, scoped, tag = 'input window, operand 16, single buffered']
    #allocation20 [shape = 's32[1]{0}', space=sflag, size = 0x4, scoped, tag = 'scoped memory for forward.1']
    %22 = vsyncpa [#allocation3], 0
    %23 = vsyncpa [#allocation5], 0
    %24 = vsyncpa [#allocation8], 0
    %25 = vsyncpa [#allocation11], 0
    %26 = vsyncpa [#allocation14], 0
    %27 = vsyncpa [#allocation17], 0
    %28 = vsyncpa [#allocation20], 0
    // Predicated region
    $region2: #{forward.1} parent=1 // pred_check
      _
    $region3: #{forward.1} parent=1 // pred_check_branch
      %30 = sbr.rel (0) target = $region5
    $region4: #{forward.1} parent=1 // pred_region
      %s32 = ssub.s32 256, 256
      %33 = vsyncadd [#allocation3], %s32
      %s34 = sshll.u32 [#allocation2], 4
      %s35 = int_to_ptr.vmem [resolvable:$true] %s34
      %40 = dma.hbm_to_vmem [thread:$0]  %s0, 256, %s35, [#allocation3], 128, 128, 8
    $region5: #{forward.1} parent=1 // pred_fallthru
      _
    // Predicated region
    $region6: #{forward.1} parent=1 // pred_check
      _
    $region7: #{forward.1} parent=1 // pred_check_branch
      %42 = sbr.rel (0) target = $region9
    $region8: #{forward.1} parent=1 // pred_region
      _
    $region9: #{forward.1} parent=1 // pred_fallthru
      _
    // Predicated region
    $region10: #{forward.1} parent=1 // pred_check
      _
    $region11: #{forward.1} parent=1 // pred_check_branch
      %44 = sbr.rel (0) target = $region13
    $region12: #{forward.1} parent=1 // pred_region
      _
    $region13: #{forward.1} parent=1 // pred_fallthru
      _
    // Predicated region
    $region14: #{forward.1} parent=1 // pred_check
      _
    $region15: #{forward.1} parent=1 // pred_check_branch
      %46 = sbr.rel (0) target = $region17
    $region16: #{forward.1} parent=1 // pred_region
      %s48 = ssub.s32 1536, 1536
      %49 = vsyncadd [#allocation5], %s48
      %s50 = sshll.u32 [#allocation4], 4
      %s51 = int_to_ptr.vmem [resolvable:$true] %s50
      %56 = dma.hbm_to_vmem [thread:$0]  %s3, 1536, %s51, [#allocation5], 128, 128, 8
    $region17: #{forward.1} parent=1 // pred_fallthru
      _
    // Predicated region
    $region18: #{forward.1} parent=1 // pred_check
      _
    $region19: #{forward.1} parent=1 // pred_check_branch
      %58 = sbr.rel (0) target = $region21
    $region20: #{forward.1} parent=1 // pred_region
      _
    $region21: #{forward.1} parent=1 // pred_fallthru
      _
    // Predicated region
    $region22: #{forward.1} parent=1 // pred_check
      _
    $region23: #{forward.1} parent=1 // pred_check_branch
      %60 = sbr.rel (0) target = $region25
    $region24: #{forward.1} parent=1 // pred_region
      %s62 = ssub.s32 512, 512
      %63 = vsyncadd [#allocation5], %s62
      %s64 = sshll.u32 [#allocation6], 4
      %s65 = int_to_ptr.vmem [resolvable:$true] %s64
      %70 = dma.hbm_to_vmem [thread:$0]  %s5, 512, %s65, [#allocation5], 128, 128, 8
    $region25: #{forward.1} parent=1 // pred_fallthru
      _
    // Predicated region
    $region26: #{forward.1} parent=1 // pred_check
      _
    $region27: #{forward.1} parent=1 // pred_check_branch
      %72 = sbr.rel (0) target = $region29
    $region28: #{forward.1} parent=1 // pred_region
      _
    $region29: #{forward.1} parent=1 // pred_fallthru
      _
    // Predicated region
    $region30: #{forward.1} parent=1 // pred_check
      _
    $region31: #{forward.1} parent=1 // pred_check_branch
      %74 = sbr.rel (0) target = $region33
    $region32: #{forward.1} parent=1 // pred_region
      %s76 = ssub.s32 256, 256
      %77 = vsyncadd [#allocation8], %s76
      %s78 = sshll.u32 [#allocation7], 4
      %s79 = int_to_ptr.vmem [resolvable:$true] %s78
      %84 = dma.hbm_to_vmem [thread:$0]  %s7, 256, %s79, [#allocation8], 128, 128, 8
    $region33: #{forward.1} parent=1 // pred_fallthru
      _
    // Predicated region
    $region34: #{forward.1} parent=1 // pred_check
      _
    $region35: #{forward.1} parent=1 // pred_check_branch
      %86 = sbr.rel (0) target = $region37
    $region36: #{forward.1} parent=1 // pred_region
      %s88 = ssub.s32 128, 128
      %89 = vsyncadd [#allocation8], %s88
      %s91 = sshll.u32 [#allocation9], 4
      %s92 = int_to_ptr.vmem [resolvable:$true] %s91
      %94 = dma.hbm_to_vmem [thread:$0]  %s8, 128, %s92, [#allocation8]
    $region37: #{forward.1} parent=1 // pred_fallthru
      _
    // Predicated region
    $region38: #{forward.1} parent=1 // pred_check
      _
    $region39: #{forward.1} parent=1 // pred_check_branch
      %96 = sbr.rel (0) target = $region41
    $region40: #{forward.1} parent=1 // pred_region
      %s98 = ssub.s32 128, 128
      %99 = vsyncadd [#allocation11], %s98
      %s101 = sshll.u32 [#allocation10], 4
      %s102 = int_to_ptr.vmem [resolvable:$true] %s101
      %104 = dma.hbm_to_vmem [thread:$0]  %s9, 128, %s102, [#allocation11]
    $region41: #{forward.1} parent=1 // pred_fallthru
      _
    // Predicated region
    $region42: #{forward.1} parent=1 // pred_check
      _
    $region43: #{forward.1} parent=1 // pred_check_branch
      %106 = sbr.rel (0) target = $region45
    $region44: #{forward.1} parent=1 // pred_region
      %s108 = ssub.s32 256, 256
      %109 = vsyncadd [#allocation11], %s108
      %s110 = sshll.u32 [#allocation12], 4
      %s111 = int_to_ptr.vmem [resolvable:$true] %s110
      %116 = dma.hbm_to_vmem [thread:$0]  %s10, 256, %s111, [#allocation11], 128, 128, 8
    $region45: #{forward.1} parent=1 // pred_fallthru
      _
    // Predicated region
    $region46: #{forward.1} parent=1 // pred_check
      _
    $region47: #{forward.1} parent=1 // pred_check_branch
      %118 = sbr.rel (0) target = $region49
    $region48: #{forward.1} parent=1 // pred_region
      %s120 = ssub.s32 64, 64
      %121 = vsyncadd [#allocation14], %s120
      %s123 = sshll.u32 [#allocation13], 4
      %s124 = int_to_ptr.vmem [resolvable:$true] %s123
      %126 = dma.hbm_to_vmem [thread:$0]  %s11, 64, %s124, [#allocation14]
    $region49: #{forward.1} parent=1 // pred_fallthru
      _
    // Predicated region
    $region50: #{forward.1} parent=1 // pred_check
      _
    $region51: #{forward.1} parent=1 // pred_check_branch
      %128 = sbr.rel (0) target = $region53
    $region52: #{forward.1} parent=1 // pred_region
      %s130 = ssub.s32 128, 128
      %131 = vsyncadd [#allocation14], %s130
      %s133 = sshll.u32 [#allocation15], 4
      %s134 = int_to_ptr.vmem [resolvable:$true] %s133
      %136 = dma.hbm_to_vmem [thread:$0]  %s12, 128, %s134, [#allocation14]
    $region53: #{forward.1} parent=1 // pred_fallthru
      _
    // Predicated region
    $region54: #{forward.1} parent=1 // pred_check
      _
    $region55: #{forward.1} parent=1 // pred_check_branch
      %138 = sbr.rel (0) target = $region57
    $region56: #{forward.1} parent=1 // pred_region
      %s140 = ssub.s32 2048, 2048
      %141 = vsyncadd [#allocation17], %s140
      %s142 = sshll.u32 [#allocation16], 4
      %s143 = int_to_ptr.vmem [resolvable:$true] %s142
      %148 = dma.hbm_to_vmem [thread:$0]  %s13, 2048, %s143, [#allocation17], 64, 64, 4
    $region57: #{forward.1} parent=1 // pred_fallthru
      _
    // Predicated region
    $region58: #{forward.1} parent=1 // pred_check
      _
    $region59: #{forward.1} parent=1 // pred_check_branch
      %150 = sbr.rel (0) target = $region61
    $region60: #{forward.1} parent=1 // pred_region
      %s152 = ssub.s32 1024, 1024
      %153 = vsyncadd [#allocation17], %s152
      %s154 = sshll.u32 [#allocation18], 4
      %s155 = int_to_ptr.vmem [resolvable:$true] %s154
      %160 = dma.hbm_to_vmem [thread:$0]  %s14, 1024, %s155, [#allocation17], 64, 64, 4
    $region61: #{forward.1} parent=1 // pred_fallthru
      _
    // Predicated region
    $region62: #{forward.1} parent=1 // pred_check
      _
    $region63: #{forward.1} parent=1 // pred_check_branch
      %162 = sbr.rel (0) target = $region65
    $region64: #{forward.1} parent=1 // pred_region
      _
    $region65: #{forward.1} parent=1 // pred_fallthru
      _
    // Predicated region
    $region66: #{forward.1} parent=1 // pred_check
      _
    $region67: #{forward.1} parent=1 // pred_check_branch
      %164 = sbr.rel (0) target = $region69
    $region68: #{forward.1} parent=1 // pred_region
      %s166 = ssub.s32 512, 512
      %167 = vsyncadd [#allocation20], %s166
      %s168 = sshll.u32 [#allocation19], 4
      %s169 = int_to_ptr.vmem [resolvable:$true] %s168
      %174 = dma.hbm_to_vmem [thread:$0]  %s16, 512, %s169, [#allocation20], 128, 128, 8
    $region69: #{forward.1} parent=1 // pred_fallthru
      _
    // Predicated region
    $region70: #{forward.1} parent=1 // pred_check
      _
    $region71: #{forward.1} parent=1 // pred_check_branch
      %176 = sbr.rel (0) target = $region73
    $region72: #{forward.1} parent=1 // pred_region
      %177 = dma.done [#allocation3], 256
    $region73: #{forward.1} parent=1 // pred_fallthru
      _
    // Predicated region
    $region74: #{forward.1} parent=1 // pred_check
      _
    $region75: #{forward.1} parent=1 // pred_check_branch
      %179 = sbr.rel (0) target = $region77
    $region76: #{forward.1} parent=1 // pred_region
      %180 = dma.done [#allocation5], 1536
    $region77: #{forward.1} parent=1 // pred_fallthru
      _
    // Predicated region
    $region78: #{forward.1} parent=1 // pred_check
      _
    $region79: #{forward.1} parent=1 // pred_check_branch
      %182 = sbr.rel (0) target = $region81
    $region80: #{forward.1} parent=1 // pred_region
      %183 = dma.done [#allocation5], 512
    $region81: #{forward.1} parent=1 // pred_fallthru
      _
    // Predicated region
    $region82: #{forward.1} parent=1 // pred_check
      _
    $region83: #{forward.1} parent=1 // pred_check_branch
      %185 = sbr.rel (0) target = $region85
    $region84: #{forward.1} parent=1 // pred_region
      %186 = dma.done [#allocation8], 256
    $region85: #{forward.1} parent=1 // pred_fallthru
      _
    // Predicated region
    $region86: #{forward.1} parent=1 // pred_check
      _
    $region87: #{forward.1} parent=1 // pred_check_branch
      %188 = sbr.rel (0) target = $region89
    $region88: #{forward.1} parent=1 // pred_region
      %189 = dma.done [#allocation8], 128
    $region89: #{forward.1} parent=1 // pred_fallthru
      _
    // Predicated region
    $region90: #{forward.1} parent=1 // pred_check
      _
    $region91: #{forward.1} parent=1 // pred_check_branch
      %191 = sbr.rel (0) target = $region93
    $region92: #{forward.1} parent=1 // pred_region
      %192 = dma.done [#allocation11], 128
    $region93: #{forward.1} parent=1 // pred_fallthru
      _
    // Predicated region
    $region94: #{forward.1} parent=1 // pred_check
      _
    $region95: #{forward.1} parent=1 // pred_check_branch
      %194 = sbr.rel (0) target = $region97
    $region96: #{forward.1} parent=1 // pred_region
      %195 = dma.done [#allocation11], 256
    $region97: #{forward.1} parent=1 // pred_fallthru
      _
    // Predicated region
    $region98: #{forward.1} parent=1 // pred_check
      _
    $region99: #{forward.1} parent=1 // pred_check_branch
      %197 = sbr.rel (0) target = $region101
    $region100: #{forward.1} parent=1 // pred_region
      %198 = dma.done [#allocation14], 64
    $region101: #{forward.1} parent=1 // pred_fallthru
      _
    // Predicated region
    $region102: #{forward.1} parent=1 // pred_check
      _
    $region103: #{forward.1} parent=1 // pred_check_branch
      %200 = sbr.rel (0) target = $region105
    $region104: #{forward.1} parent=1 // pred_region
      %201 = dma.done [#allocation14], 128
    $region105: #{forward.1} parent=1 // pred_fallthru
      _
    // Predicated region
    $region106: #{forward.1} parent=1 // pred_check
      _
    $region107: #{forward.1} parent=1 // pred_check_branch
      %203 = sbr.rel (0) target = $region109
    $region108: #{forward.1} parent=1 // pred_region
      %204 = dma.done [#allocation17], 2048
    $region109: #{forward.1} parent=1 // pred_fallthru
      _
    // Predicated region
    $region110: #{forward.1} parent=1 // pred_check
      _
    $region111: #{forward.1} parent=1 // pred_check_branch
      %206 = sbr.rel (0) target = $region113
    $region112: #{forward.1} parent=1 // pred_region
      %207 = dma.done [#allocation17], 1024
    $region113: #{forward.1} parent=1 // pred_fallthru
      _
    // Predicated region
    $region114: #{forward.1} parent=1 // pred_check
      _
    $region115: #{forward.1} parent=1 // pred_check_branch
      %209 = sbr.rel (0) target = $region117
    $region116: #{forward.1} parent=1 // pred_region
      %210 = dma.done [#allocation20], 512
    $region117: #{forward.1} parent=1 // pred_fallthru
      _
    %v212 = vld [vmem:[#allocation2] sm:$0xff]
    %v213 = vld [vmem:[#allocation2 + $0x8] sm:$0xff]
    %v214 = vld [vmem:[#allocation9] sm:$0xff]
    %v215 = vld [vmem:[#allocation13] sm:$0x1]
    %v216 = vlaneseq
    %v217 = vshrl.u32 %v216, 7
    %v218 = vsub.s32 0, %v217
    %v219 = vrot.slane %v215, %v218
    %vm220 = vcmask 64512
    %v222 = vsel %vm220, %v212, 0
    %v225 = vsel %vm220, %v213, 0
    %227 = vmatprep.subr.mxu0 0.0
    %228 = vmatpush1.msra.mxu0 %v214
    %229 = vmatprep.subr.mxu0 0.0
    %230 = vmatpush1.msra.mxu0 0.0
    %231 = vmatprep.subr.mxu0 0.0
    %232 = vmatpush1.msra.mxu0 0.0
    %233 = vmatprep.subr.mxu0 0.0
    %234 = vmatpush1.msra.mxu0 0.0
    %235 = vmatprep.subr.mxu0 0.0
    %236 = vmatpush1.msra.mxu0 0.0
    %237 = vmatprep.subr.mxu0 0.0
    %238 = vmatpush1.msra.mxu0 0.0
    %239 = vmatprep.subr.mxu0 0.0
    %240 = vmatpush1.msra.mxu0 0.0
    %241 = vmatprep.subr.mxu0 0.0
    %242 = vmatpush1.msra.mxu0 0.0
    %243 = vmatprep.subr.mxu0 0.0
    %244 = vmatpush1.msra.mxu0 0.0
    %245 = vmatprep.subr.mxu0 0.0
    %246 = vmatpush1.msra.mxu0 0.0
    %247 = vmatprep.subr.mxu0 0.0
    %248 = vmatpush1.msra.mxu0 0.0
    %249 = vmatprep.subr.mxu0 0.0
    %250 = vmatpush1.msra.mxu0 0.0
    %251 = vmatprep.subr.mxu0 0.0
    %252 = vmatpush1.msra.mxu0 0.0
    %253 = vmatprep.subr.mxu0 0.0
    %254 = vmatpush1.msra.mxu0 0.0
    %255 = vmatprep.subr.mxu0 0.0
    %256 = vmatpush1.msra.mxu0 0.0
    %257 = vmatprep.subr.mxu0 0.0
    %258 = vmatpush1.msra.mxu0 0.0
    %259 = vmatprep.subr.mxu0 0.0
    %260 = vmatpush1.msra.mxu0 0.0
    %261 = vmatprep.subr.mxu0 0.0
    %262 = vmatpush1.msra.mxu0 0.0
    %263 = vmatprep.subr.mxu0 0.0
    %264 = vmatpush1.msra.mxu0 0.0
    %265 = vmatprep.subr.mxu0 0.0
    %266 = vmatpush1.msra.mxu0 0.0
    %267 = vmatprep.subr.mxu0 0.0
    %268 = vmatpush1.msra.mxu0 0.0
    %269 = vmatprep.subr.mxu0 0.0
    %270 = vmatpush1.msra.mxu0 0.0
    %271 = vmatprep.subr.mxu0 0.0
    %272 = vmatpush1.msra.mxu0 0.0
    %273 = vmatprep.subr.mxu0 0.0
    %274 = vmatpush1.msra.mxu0 0.0
    %275 = vmatprep.subr.mxu0 0.0
    %276 = vmatpush1.msra.mxu0 0.0
    %277 = vmatprep.subr.mxu0 0.0
    %278 = vmatpush1.msra.mxu0 0.0
    %279 = vmatprep.subr.mxu0 0.0
    %280 = vmatpush1.msra.mxu0 0.0
    %281 = vmatprep.subr.mxu0 0.0
    %282 = vmatpush1.msra.mxu0 0.0
    %283 = vmatprep.subr.mxu0 0.0
    %284 = vmatpush1.msra.mxu0 0.0
    %285 = vmatprep.subr.mxu0 0.0
    %286 = vmatpush1.msra.mxu0 0.0
    %287 = vmatprep.subr.mxu0 0.0
    %288 = vmatpush1.msra.mxu0 0.0
    %289 = vmatprep.subr.mxu0 0.0
    %290 = vmatpush1.msra.mxu0 0.0
    %291 = vmatprep.mubr.f32.mxu0 0.0
    %292 = vmatmul.mubr.f32.gmra.mrb[0].mxu0 %v222
    %v293 = vpop.f32.mrb[0].mxu0
    %v294 = vadd.f32 %v219, %v293
    %v295 = vpop.f32.mrb[0].mxu0
    %296 = vmatprep.mubr.f32.mxu0 0.0
    %297 = vmatmul.mubr.f32.gmra.mrb[0].mxu0 %v225
    %v298 = vpop.f32.mrb[0].mxu0
    %v299 = vadd.f32 %v219, %v298
    %v300 = vpop.f32.mrb[0].mxu0
    %301 = vdwg.mxu0
    %v302 = vld [vmem:[%s2] sm:$0xff]
    %v303 = vld [vmem:[%s2 + $0x8] sm:$0xff]
    %v304 = vld [vmem:[#allocation13 + $0x1] sm:$0x1]
    %306 = vset.pattern.permute.xlu0 0
    %307 = vperm.xlu0 %306, %v302
    %v308 = vpop.permute.xlu0 %307
    %311 = vset.pattern.permute.xlu0 0
    %312 = vperm.xlu0 %311, %v303
    %v313 = vpop.permute.xlu0 %312
    %v315 = vlaneseq
    %v316 = vshrl.u32 %v315, 7
    %v317 = vsub.s32 0, %v316
    %v318 = vrot.slane %v304, %v317
    %v319 = vmul.f32 %v308, %v318
    %v320 = vmul.f32 %v313, %v318
    %v321 = vld [vmem:[#allocation13 + $0x2] sm:$0x1]
    %v322 = vlaneseq
    %v323 = vshrl.u32 %v322, 7
    %v324 = vsub.s32 0, %v323
    %v325 = vrot.slane %v321, %v324
    %v326 = vadd.f32 %v319, %v325
    %v327 = vadd.f32 %v320, %v325
    %v328 = vlaneseq
    %v329 = vand.u32 %v328, 127
    %v330 = vld [vmem:[%s1] sm:$0xff]
    %v331 = vld [vmem:[%s1 + $0x8] sm:$0xff]
    %332 = vset.pattern.permute.xlu0 0
    %333 = vperm.xlu0 %332, %v330
    %v334 = vpop.permute.xlu0 %333
    %335 = vset.pattern.permute.xlu0 0
    %336 = vperm.xlu0 %335, %v331
    %v337 = vpop.permute.xlu0 %336
    %vm338 = vcmp.eq.s32.totalorder %v329, %v334
    %vm339 = vcmp.eq.s32.totalorder %v329, %v337
    %v340 = vsel %vm338, 1, 0
    %v341 = vsel %vm339, 1, 0
    %v342 = vcvt.s32.f32 %v340
    %v343 = vcvt.s32.f32 %v341
    %v344 = vld [vmem:[#allocation10] sm:$0x3f]
    %vm345 = vcmask 48128
    %v347 = vsel %vm345, %v342, 0
    %v350 = vsel %vm345, %v343, 0
    %vm352 = vcmask 1045504
    %v354 = vsel %vm352, %v344, 0
    %356 = vmatprep.subr.mxu0 0.0
    %357 = vmatpush1.msra.mxu0 %v354
    %358 = vmatprep.subr.mxu0 0.0
    %359 = vmatpush1.msra.mxu0 0.0
    %360 = vmatprep.subr.mxu0 0.0
    %361 = vmatpush1.msra.mxu0 0.0
    %362 = vmatprep.subr.mxu0 0.0
    %363 = vmatpush1.msra.mxu0 0.0
    %364 = vmatprep.subr.mxu0 0.0
    %365 = vmatpush1.msra.mxu0 0.0
    %366 = vmatprep.subr.mxu0 0.0
    %367 = vmatpush1.msra.mxu0 0.0
    %368 = vmatprep.subr.mxu0 0.0
    %369 = vmatpush1.msra.mxu0 0.0
    %370 = vmatprep.subr.mxu0 0.0
    %371 = vmatpush1.msra.mxu0 0.0
    %372 = vmatprep.subr.mxu0 0.0
    %373 = vmatpush1.msra.mxu0 0.0
    %374 = vmatprep.subr.mxu0 0.0
    %375 = vmatpush1.msra.mxu0 0.0
    %376 = vmatprep.subr.mxu0 0.0
    %377 = vmatpush1.msra.mxu0 0.0
    %378 = vmatprep.subr.mxu0 0.0
    %379 = vmatpush1.msra.mxu0 0.0
    %380 = vmatprep.subr.mxu0 0.0
    %381 = vmatpush1.msra.mxu0 0.0
    %382 = vmatprep.subr.mxu0 0.0
    %383 = vmatpush1.msra.mxu0 0.0
    %384 = vmatprep.subr.mxu0 0.0
    %385 = vmatpush1.msra.mxu0 0.0
    %386 = vmatprep.subr.mxu0 0.0
    %387 = vmatpush1.msra.mxu0 0.0
    %388 = vmatprep.subr.mxu0 0.0
    %389 = vmatpush1.msra.mxu0 0.0
    %390 = vmatprep.subr.mxu0 0.0
    %391 = vmatpush1.msra.mxu0 0.0
    %392 = vmatprep.subr.mxu0 0.0
    %393 = vmatpush1.msra.mxu0 0.0
    %394 = vmatprep.subr.mxu0 0.0
    %395 = vmatpush1.msra.mxu0 0.0
    %396 = vmatprep.subr.mxu0 0.0
    %397 = vmatpush1.msra.mxu0 0.0
    %398 = vmatprep.subr.mxu0 0.0
    %399 = vmatpush1.msra.mxu0 0.0
    %400 = vmatprep.subr.mxu0 0.0
    %401 = vmatpush1.msra.mxu0 0.0
    %402 = vmatprep.subr.mxu0 0.0
    %403 = vmatpush1.msra.mxu0 0.0
    %404 = vmatprep.subr.mxu0 0.0
    %405 = vmatpush1.msra.mxu0 0.0
    %406 = vmatprep.subr.mxu0 0.0
    %407 = vmatpush1.msra.mxu0 0.0
    %408 = vmatprep.subr.mxu0 0.0
    %409 = vmatpush1.msra.mxu0 0.0
    %410 = vmatprep.subr.mxu0 0.0
    %411 = vmatpush1.msra.mxu0 0.0
    %412 = vmatprep.subr.mxu0 0.0
    %413 = vmatpush1.msra.mxu0 0.0
    %414 = vmatprep.subr.mxu0 0.0
    %415 = vmatpush1.msra.mxu0 0.0
    %416 = vmatprep.subr.mxu0 0.0
    %417 = vmatpush1.msra.mxu0 0.0
    %418 = vmatprep.subr.mxu0 0.0
    %419 = vmatpush1.msra.mxu0 0.0
    %420 = vmatprep.mubr.f32.mxu0 0.0
    %421 = vmatmul.mubr.f32.gmra.mrb[0].mxu0 %v347
    %v422 = vpop.f32.mrb[0].mxu0
    %v423 = vadd.f32 0.0, %v422
    %v424 = vpop.f32.mrb[0].mxu0
    %425 = vmatprep.mubr.f32.mxu0 0.0
    %426 = vmatmul.mubr.f32.gmra.mrb[0].mxu0 %v350
    %v427 = vpop.f32.mrb[0].mxu0
    %v428 = vadd.f32 0.0, %v427
    %v429 = vpop.f32.mrb[0].mxu0
    %430 = vdwg.mxu0
    %v431 = vld [vmem:[%s6] sm:$0xff]
    %v432 = vld [vmem:[%s6 + $0x8] sm:$0xff]
    %v433 = vld [vmem:[%s6 + $0x10] sm:$0xff]
    %v434 = vld [vmem:[%s6 + $0x18] sm:$0xff]
    %v435 = vld [vmem:[%s6 + $0x20] sm:$0xff]
    %v436 = vld [vmem:[%s6 + $0x28] sm:$0xff]
    %s437 = scalar_lea.vmem %s6, 48
    %v438 = vld [vmem:[%s437] sm:$0xff]
    %v439 = vld [vmem:[%s437 + $0x8] sm:$0xff]
    %v440 = vld [vmem:[%s437 + $0x10] sm:$0xff]
    %v441 = vld [vmem:[%s437 + $0x18] sm:$0xff]
    %v442 = vld [vmem:[%s437 + $0x20] sm:$0xff]
    %v443 = vld [vmem:[%s437 + $0x28] sm:$0xff]
    %vm444 = vcmask 130048
    %v446 = vsel %vm444, %v438, 0
    %v449 = vsel %vm444, %v439, 0
    %v452 = vsel %vm444, %v440, 0
    %v455 = vsel %vm444, %v441, 0
    %v458 = vsel %vm444, %v442, 0
    %v461 = vsel %vm444, %v443, 0
    %463 = vmatprep.subr.mxu0 0.0
    %464 = vmatpush1.msra.mxu0 %v423
    %465 = vmatprep.subr.mxu0 0.0
    %466 = vmatpush1.msra.mxu0 %v428
    %467 = vmatprep.subr.mxu0 0.0
    %468 = vmatpush1.msra.mxu0 0.0
    %469 = vmatprep.subr.mxu0 0.0
    %470 = vmatpush1.msra.mxu0 0.0
    %471 = vmatprep.subr.mxu0 0.0
    %472 = vmatpush1.msra.mxu0 0.0
    %473 = vmatprep.subr.mxu0 0.0
    %474 = vmatpush1.msra.mxu0 0.0
    %475 = vmatprep.subr.mxu0 0.0
    %476 = vmatpush1.msra.mxu0 0.0
    %477 = vmatprep.subr.mxu0 0.0
    %478 = vmatpush1.msra.mxu0 0.0
    %479 = vmatprep.subr.mxu0 0.0
    %480 = vmatpush1.msra.mxu0 0.0
    %481 = vmatprep.subr.mxu0 0.0
    %482 = vmatpush1.msra.mxu0 0.0
    %483 = vmatprep.subr.mxu0 0.0
    %484 = vmatpush1.msra.mxu0 0.0
    %485 = vmatprep.subr.mxu0 0.0
    %486 = vmatpush1.msra.mxu0 0.0
    %487 = vmatprep.subr.mxu0 0.0
    %488 = vmatpush1.msra.mxu0 0.0
    %489 = vmatprep.subr.mxu0 0.0
    %490 = vmatpush1.msra.mxu0 0.0
    %491 = vmatprep.subr.mxu0 0.0
    %492 = vmatpush1.msra.mxu0 0.0
    %493 = vmatprep.subr.mxu0 0.0
    %494 = vmatpush1.msra.mxu0 0.0
    %495 = vmatprep.subr.mxu0 0.0
    %496 = vmatpush1.msra.mxu0 0.0
    %497 = vmatprep.subr.mxu0 0.0
    %498 = vmatpush1.msra.mxu0 0.0
    %499 = vmatprep.subr.mxu0 0.0
    %500 = vmatpush1.msra.mxu0 0.0
    %501 = vmatprep.subr.mxu0 0.0
    %502 = vmatpush1.msra.mxu0 0.0
    %503 = vmatprep.subr.mxu0 0.0
    %504 = vmatpush1.msra.mxu0 0.0
    %505 = vmatprep.subr.mxu0 0.0
    %506 = vmatpush1.msra.mxu0 0.0
    %507 = vmatprep.subr.mxu0 0.0
    %508 = vmatpush1.msra.mxu0 0.0
    %509 = vmatprep.subr.mxu0 0.0
    %510 = vmatpush1.msra.mxu0 0.0
    %511 = vmatprep.subr.mxu0 0.0
    %512 = vmatpush1.msra.mxu0 0.0
    %513 = vmatprep.subr.mxu0 0.0
    %514 = vmatpush1.msra.mxu0 0.0
    %515 = vmatprep.subr.mxu0 0.0
    %516 = vmatpush1.msra.mxu0 0.0
    %517 = vmatprep.subr.mxu0 0.0
    %518 = vmatpush1.msra.mxu0 0.0
    %519 = vmatprep.subr.mxu0 0.0
    %520 = vmatpush1.msra.mxu0 0.0
    %521 = vmatprep.subr.mxu0 0.0
    %522 = vmatpush1.msra.mxu0 0.0
    %523 = vmatprep.subr.mxu0 0.0
    %524 = vmatpush1.msra.mxu0 0.0
    %525 = vmatprep.subr.mxu0 0.0
    %526 = vmatpush1.msra.mxu0 0.0
    %527 = vmatprep.mubr.f32.mxu0 0.0
    %528 = vmatmul.mubr.f32.gmra.mrb[0].mxu0 %v446
    %v529 = vpop.f32.mrb[0].mxu0
    %v530 = vadd.f32 0.0, %v529
    %v531 = vpop.f32.mrb[0].mxu0
    %532 = vmatprep.mubr.f32.mxu0 0.0
    %533 = vmatmul.mubr.f32.gmra.mrb[0].mxu0 %v449
    %v534 = vpop.f32.mrb[0].mxu0
    %v535 = vadd.f32 0.0, %v534
    %v536 = vpop.f32.mrb[0].mxu0
    %537 = vmatprep.mubr.f32.mxu0 0.0
    %538 = vmatmul.mubr.f32.gmra.mrb[0].mxu0 %v452
    %v539 = vpop.f32.mrb[0].mxu0
    %v540 = vadd.f32 0.0, %v539
    %v541 = vpop.f32.mrb[0].mxu0
    %542 = vmatprep.mubr.f32.mxu0 0.0
    %543 = vmatmul.mubr.f32.gmra.mrb[0].mxu0 %v455
    %v544 = vpop.f32.mrb[0].mxu0
    %v545 = vadd.f32 0.0, %v544
    %v546 = vpop.f32.mrb[0].mxu0
    %547 = vmatprep.mubr.f32.mxu0 0.0
    %548 = vmatmul.mubr.f32.gmra.mrb[0].mxu0 %v458
    %v549 = vpop.f32.mrb[0].mxu0
    %v550 = vadd.f32 0.0, %v549
    %v551 = vpop.f32.mrb[0].mxu0
    %552 = vmatprep.mubr.f32.mxu0 0.0
    %553 = vmatmul.mubr.f32.gmra.mrb[0].mxu0 %v461
    %v554 = vpop.f32.mrb[0].mxu0
    %v555 = vadd.f32 0.0, %v554
    %v556 = vpop.f32.mrb[0].mxu0
    %557 = vdwg.mxu0
    %v559 = vsel %vm444, %v431, 0
    %v562 = vsel %vm444, %v432, 0
    %v565 = vsel %vm444, %v433, 0
    %v568 = vsel %vm444, %v434, 0
    %v571 = vsel %vm444, %v435, 0
    %v574 = vsel %vm444, %v436, 0
    %576 = vmatprep.subr.mxu0 0.0
    %577 = vmatpush1.msra.mxu0 %v294
    %578 = vmatprep.subr.mxu0 0.0
    %579 = vmatpush1.msra.mxu0 %v299
    %580 = vmatprep.subr.mxu0 0.0
    %581 = vmatpush1.msra.mxu0 0.0
    %582 = vmatprep.subr.mxu0 0.0
    %583 = vmatpush1.msra.mxu0 0.0
    %584 = vmatprep.subr.mxu0 0.0
    %585 = vmatpush1.msra.mxu0 0.0
    %586 = vmatprep.subr.mxu0 0.0
    %587 = vmatpush1.msra.mxu0 0.0
    %588 = vmatprep.subr.mxu0 0.0
    %589 = vmatpush1.msra.mxu0 0.0
    %590 = vmatprep.subr.mxu0 0.0
    %591 = vmatpush1.msra.mxu0 0.0
    %592 = vmatprep.subr.mxu0 0.0
    %593 = vmatpush1.msra.mxu0 0.0
    %594 = vmatprep.subr.mxu0 0.0
    %595 = vmatpush1.msra.mxu0 0.0
    %596 = vmatprep.subr.mxu0 0.0
    %597 = vmatpush1.msra.mxu0 0.0
    %598 = vmatprep.subr.mxu0 0.0
    %599 = vmatpush1.msra.mxu0 0.0
    %600 = vmatprep.subr.mxu0 0.0
    %601 = vmatpush1.msra.mxu0 0.0
    %602 = vmatprep.subr.mxu0 0.0
    %603 = vmatpush1.msra.mxu0 0.0
    %604 = vmatprep.subr.mxu0 0.0
    %605 = vmatpush1.msra.mxu0 0.0
    %606 = vmatprep.subr.mxu0 0.0
    %607 = vmatpush1.msra.mxu0 0.0
    %608 = vmatprep.subr.mxu0 0.0
    %609 = vmatpush1.msra.mxu0 0.0
    %610 = vmatprep.subr.mxu0 0.0
    %611 = vmatpush1.msra.mxu0 0.0
    %612 = vmatprep.subr.mxu0 0.0
    %613 = vmatpush1.msra.mxu0 0.0
    %614 = vmatprep.subr.mxu0 0.0
    %615 = vmatpush1.msra.mxu0 0.0
    %616 = vmatprep.subr.mxu0 0.0
    %617 = vmatpush1.msra.mxu0 0.0
    %618 = vmatprep.subr.mxu0 0.0
    %619 = vmatpush1.msra.mxu0 0.0
    %620 = vmatprep.subr.mxu0 0.0
    %621 = vmatpush1.msra.mxu0 0.0
    %622 = vmatprep.subr.mxu0 0.0
    %623 = vmatpush1.msra.mxu0 0.0
    %624 = vmatprep.subr.mxu0 0.0
    %625 = vmatpush1.msra.mxu0 0.0
    %626 = vmatprep.subr.mxu0 0.0
    %627 = vmatpush1.msra.mxu0 0.0
    %628 = vmatprep.subr.mxu0 0.0
    %629 = vmatpush1.msra.mxu0 0.0
    %630 = vmatprep.subr.mxu0 0.0
    %631 = vmatpush1.msra.mxu0 0.0
    %632 = vmatprep.subr.mxu0 0.0
    %633 = vmatpush1.msra.mxu0 0.0
    %634 = vmatprep.subr.mxu0 0.0
    %635 = vmatpush1.msra.mxu0 0.0
    %636 = vmatprep.subr.mxu0 0.0
    %637 = vmatpush1.msra.mxu0 0.0
    %638 = vmatprep.subr.mxu0 0.0
    %639 = vmatpush1.msra.mxu0 0.0
    %640 = vmatprep.mubr.f32.mxu0 0.0
    %641 = vmatmul.mubr.f32.gmra.mrb[0].mxu0 %v559
    %v642 = vpop.f32.mrb[0].mxu0
    %v643 = vadd.f32 %v530, %v642
    %v644 = vpop.f32.mrb[0].mxu0
    %645 = vmatprep.mubr.f32.mxu0 0.0
    %646 = vmatmul.mubr.f32.gmra.mrb[0].mxu0 %v562
    %v647 = vpop.f32.mrb[0].mxu0
    %v648 = vadd.f32 %v535, %v647
    %v649 = vpop.f32.mrb[0].mxu0
    %650 = vmatprep.mubr.f32.mxu0 0.0
    %651 = vmatmul.mubr.f32.gmra.mrb[0].mxu0 %v565
    %v652 = vpop.f32.mrb[0].mxu0
    %v653 = vadd.f32 %v540, %v652
    %v654 = vpop.f32.mrb[0].mxu0
    %655 = vmatprep.mubr.f32.mxu0 0.0
    %656 = vmatmul.mubr.f32.gmra.mrb[0].mxu0 %v568
    %v657 = vpop.f32.mrb[0].mxu0
    %v658 = vadd.f32 %v545, %v657
    %v659 = vpop.f32.mrb[0].mxu0
    %660 = vmatprep.mubr.f32.mxu0 0.0
    %661 = vmatmul.mubr.f32.gmra.mrb[0].mxu0 %v571
    %v662 = vpop.f32.mrb[0].mxu0
    %v663 = vadd.f32 %v550, %v662
    %v664 = vpop.f32.mrb[0].mxu0
    %665 = vmatprep.mubr.f32.mxu0 0.0
    %666 = vmatmul.mubr.f32.gmra.mrb[0].mxu0 %v574
    %v667 = vpop.f32.mrb[0].mxu0
    %v668 = vadd.f32 %v555, %v667
    %v669 = vpop.f32.mrb[0].mxu0
    %670 = vdwg.mxu0
    %s671 = scalar_lea.vmem %s6, 96
    %v672 = vld [vmem:[%s671] sm:$0xff]
    %v673 = vld [vmem:[%s671 + $0x8] sm:$0xff]
    %v674 = vld [vmem:[%s671 + $0x10] sm:$0xff]
    %v675 = vld [vmem:[%s671 + $0x18] sm:$0xff]
    %v676 = vld [vmem:[%s671 + $0x20] sm:$0xff]
    %v677 = vld [vmem:[%s671 + $0x28] sm:$0xff]
    %v679 = vsel %vm444, %v672, 0
    %v682 = vsel %vm444, %v673, 0
    %v685 = vsel %vm444, %v674, 0
    %v688 = vsel %vm444, %v675, 0
    %v691 = vsel %vm444, %v676, 0
    %v694 = vsel %vm444, %v677, 0
    %696 = vmatprep.subr.mxu0 0.0
    %697 = vmatpush1.msra.mxu0 %v326
    %698 = vmatprep.subr.mxu0 0.0
    %699 = vmatpush1.msra.mxu0 %v327
    %700 = vmatprep.subr.mxu0 0.0
    %701 = vmatpush1.msra.mxu0 0.0
    %702 = vmatprep.subr.mxu0 0.0
    %703 = vmatpush1.msra.mxu0 0.0
    %704 = vmatprep.subr.mxu0 0.0
    %705 = vmatpush1.msra.mxu0 0.0
    %706 = vmatprep.subr.mxu0 0.0
    %707 = vmatpush1.msra.mxu0 0.0
    %708 = vmatprep.subr.mxu0 0.0
    %709 = vmatpush1.msra.mxu0 0.0
    %710 = vmatprep.subr.mxu0 0.0
    %711 = vmatpush1.msra.mxu0 0.0
    %712 = vmatprep.subr.mxu0 0.0
    %713 = vmatpush1.msra.mxu0 0.0
    %714 = vmatprep.subr.mxu0 0.0
    %715 = vmatpush1.msra.mxu0 0.0
    %716 = vmatprep.subr.mxu0 0.0
    %717 = vmatpush1.msra.mxu0 0.0
    %718 = vmatprep.subr.mxu0 0.0
    %719 = vmatpush1.msra.mxu0 0.0
    %720 = vmatprep.subr.mxu0 0.0
    %721 = vmatpush1.msra.mxu0 0.0
    %722 = vmatprep.subr.mxu0 0.0
    %723 = vmatpush1.msra.mxu0 0.0
    %724 = vmatprep.subr.mxu0 0.0
    %725 = vmatpush1.msra.mxu0 0.0
    %726 = vmatprep.subr.mxu0 0.0
    %727 = vmatpush1.msra.mxu0 0.0
    %728 = vmatprep.subr.mxu0 0.0
    %729 = vmatpush1.msra.mxu0 0.0
    %730 = vmatprep.subr.mxu0 0.0
    %731 = vmatpush1.msra.mxu0 0.0
    %732 = vmatprep.subr.mxu0 0.0
    %733 = vmatpush1.msra.mxu0 0.0
    %734 = vmatprep.subr.mxu0 0.0
    %735 = vmatpush1.msra.mxu0 0.0
    %736 = vmatprep.subr.mxu0 0.0
    %737 = vmatpush1.msra.mxu0 0.0
    %738 = vmatprep.subr.mxu0 0.0
    %739 = vmatpush1.msra.mxu0 0.0
    %740 = vmatprep.subr.mxu0 0.0
    %741 = vmatpush1.msra.mxu0 0.0
    %742 = vmatprep.subr.mxu0 0.0
    %743 = vmatpush1.msra.mxu0 0.0
    %744 = vmatprep.subr.mxu0 0.0
    %745 = vmatpush1.msra.mxu0 0.0
    %746 = vmatprep.subr.mxu0 0.0
    %747 = vmatpush1.msra.mxu0 0.0
    %748 = vmatprep.subr.mxu0 0.0
    %749 = vmatpush1.msra.mxu0 0.0
    %750 = vmatprep.subr.mxu0 0.0
    %751 = vmatpush1.msra.mxu0 0.0
    %752 = vmatprep.subr.mxu0 0.0
    %753 = vmatpush1.msra.mxu0 0.0
    %754 = vmatprep.subr.mxu0 0.0
    %755 = vmatpush1.msra.mxu0 0.0
    %756 = vmatprep.subr.mxu0 0.0
    %757 = vmatpush1.msra.mxu0 0.0
    %758 = vmatprep.subr.mxu0 0.0
    %759 = vmatpush1.msra.mxu0 0.0
    %760 = vmatprep.mubr.f32.mxu0 0.0
    %761 = vmatmul.mubr.f32.gmra.mrb[0].mxu0 %v679
    %v762 = vpop.f32.mrb[0].mxu0
    %v763 = vadd.f32 0.0, %v762
    %v764 = vpop.f32.mrb[0].mxu0
    %765 = vmatprep.mubr.f32.mxu0 0.0
    %766 = vmatmul.mubr.f32.gmra.mrb[0].mxu0 %v682
    %v767 = vpop.f32.mrb[0].mxu0
    %v768 = vadd.f32 0.0, %v767
    %v769 = vpop.f32.mrb[0].mxu0
    %770 = vmatprep.mubr.f32.mxu0 0.0
    %771 = vmatmul.mubr.f32.gmra.mrb[0].mxu0 %v685
    %v772 = vpop.f32.mrb[0].mxu0
    %v773 = vadd.f32 0.0, %v772
    %v774 = vpop.f32.mrb[0].mxu0
    %775 = vmatprep.mubr.f32.mxu0 0.0
    %776 = vmatmul.mubr.f32.gmra.mrb[0].mxu0 %v688
    %v777 = vpop.f32.mrb[0].mxu0
    %v778 = vadd.f32 0.0, %v777
    %v779 = vpop.f32.mrb[0].mxu0
    %780 = vmatprep.mubr.f32.mxu0 0.0
    %781 = vmatmul.mubr.f32.gmra.mrb[0].mxu0 %v691
    %v782 = vpop.f32.mrb[0].mxu0
    %v783 = vadd.f32 0.0, %v782
    %v784 = vpop.f32.mrb[0].mxu0
    %785 = vmatprep.mubr.f32.mxu0 0.0
    %786 = vmatmul.mubr.f32.gmra.mrb[0].mxu0 %v694
    %v787 = vpop.f32.mrb[0].mxu0
    %v788 = vadd.f32 0.0, %v787
    %v789 = vpop.f32.mrb[0].mxu0
    %790 = vdwg.mxu0
    %v791 = vadd.f32 %v643, %v763
    %v792 = vadd.f32 %v648, %v768
    %v793 = vadd.f32 %v653, %v773
    %v794 = vadd.f32 %v658, %v778
    %v795 = vadd.f32 %v663, %v783
    %v796 = vadd.f32 %v668, %v788
    %v797 = vld [vmem:[#allocation12] sm:$0xff]
    %v798 = vld [vmem:[#allocation12 + $0x8] sm:$0xff]
    %v799 = vld [vmem:[#allocation15] sm:$0x1]
    %v800 = vlaneseq
    %v801 = vshrl.u32 %v800, 7
    %v802 = vsub.s32 0, %v801
    %v803 = vrot.slane %v799, %v802
    %v805 = vsel %vm444, %v791, 0
    %v808 = vsel %vm444, %v792, 0
    %v811 = vsel %vm444, %v793, 0
    %v814 = vsel %vm444, %v794, 0
    %v817 = vsel %vm444, %v795, 0
    %v820 = vsel %vm444, %v796, 0
    %822 = vmatprep.subr.mxu0 0.0
    %823 = vmatpush1.msra.mxu0 %v797
    %824 = vmatprep.subr.mxu0 0.0
    %825 = vmatpush1.msra.mxu0 %v798
    %826 = vmatprep.subr.mxu0 0.0
    %827 = vmatpush1.msra.mxu0 0.0
    %828 = vmatprep.subr.mxu0 0.0
    %829 = vmatpush1.msra.mxu0 0.0
    %830 = vmatprep.subr.mxu0 0.0
    %831 = vmatpush1.msra.mxu0 0.0
    %832 = vmatprep.subr.mxu0 0.0
    %833 = vmatpush1.msra.mxu0 0.0
    %834 = vmatprep.subr.mxu0 0.0
    %835 = vmatpush1.msra.mxu0 0.0
    %836 = vmatprep.subr.mxu0 0.0
    %837 = vmatpush1.msra.mxu0 0.0
    %838 = vmatprep.subr.mxu0 0.0
    %839 = vmatpush1.msra.mxu0 0.0
    %840 = vmatprep.subr.mxu0 0.0
    %841 = vmatpush1.msra.mxu0 0.0
    %842 = vmatprep.subr.mxu0 0.0
    %843 = vmatpush1.msra.mxu0 0.0
    %844 = vmatprep.subr.mxu0 0.0
    %845 = vmatpush1.msra.mxu0 0.0
    %846 = vmatprep.subr.mxu0 0.0
    %847 = vmatpush1.msra.mxu0 0.0
    %848 = vmatprep.subr.mxu0 0.0
    %849 = vmatpush1.msra.mxu0 0.0
    %850 = vmatprep.subr.mxu0 0.0
    %851 = vmatpush1.msra.mxu0 0.0
    %852 = vmatprep.subr.mxu0 0.0
    %853 = vmatpush1.msra.mxu0 0.0
    %854 = vmatprep.subr.mxu0 0.0
    %855 = vmatpush1.msra.mxu0 0.0
    %856 = vmatprep.subr.mxu0 0.0
    %857 = vmatpush1.msra.mxu0 0.0
    %858 = vmatprep.subr.mxu0 0.0
    %859 = vmatpush1.msra.mxu0 0.0
    %860 = vmatprep.subr.mxu0 0.0
    %861 = vmatpush1.msra.mxu0 0.0
    %862 = vmatprep.subr.mxu0 0.0
    %863 = vmatpush1.msra.mxu0 0.0
    %864 = vmatprep.subr.mxu0 0.0
    %865 = vmatpush1.msra.mxu0 0.0
    %866 = vmatprep.subr.mxu0 0.0
    %867 = vmatpush1.msra.mxu0 0.0
    %868 = vmatprep.subr.mxu0 0.0
    %869 = vmatpush1.msra.mxu0 0.0
    %870 = vmatprep.subr.mxu0 0.0
    %871 = vmatpush1.msra.mxu0 0.0
    %872 = vmatprep.subr.mxu0 0.0
    %873 = vmatpush1.msra.mxu0 0.0
    %874 = vmatprep.subr.mxu0 0.0
    %875 = vmatpush1.msra.mxu0 0.0
    %876 = vmatprep.subr.mxu0 0.0
    %877 = vmatpush1.msra.mxu0 0.0
    %878 = vmatprep.subr.mxu0 0.0
    %879 = vmatpush1.msra.mxu0 0.0
    %880 = vmatprep.subr.mxu0 0.0
    %881 = vmatpush1.msra.mxu0 0.0
    %882 = vmatprep.subr.mxu0 0.0
    %883 = vmatpush1.msra.mxu0 0.0
    %884 = vmatprep.subr.mxu0 0.0
    %885 = vmatpush1.msra.mxu0 0.0
    %886 = vmatprep.mubr.f32.mxu0 0.0
    %887 = vmatmul.mubr.f32.gmra.mrb[0].mxu0 %v805
    %v888 = vpop.f32.mrb[0].mxu0
    %v889 = vadd.f32 %v803, %v888
    %v890 = vpop.f32.mrb[0].mxu0
    %891 = vmatprep.mubr.f32.mxu0 0.0
    %892 = vmatmul.mubr.f32.gmra.mrb[0].mxu0 %v808
    %v893 = vpop.f32.mrb[0].mxu0
    %v894 = vadd.f32 %v803, %v893
    %v895 = vpop.f32.mrb[0].mxu0
    %896 = vmatprep.mubr.f32.mxu0 0.0
    %897 = vmatmul.mubr.f32.gmra.mrb[0].mxu0 %v811
    %v898 = vpop.f32.mrb[0].mxu0
    %v899 = vadd.f32 %v803, %v898
    %v900 = vpop.f32.mrb[0].mxu0
    %901 = vmatprep.mubr.f32.mxu0 0.0
    %902 = vmatmul.mubr.f32.gmra.mrb[0].mxu0 %v814
    %v903 = vpop.f32.mrb[0].mxu0
    %v904 = vadd.f32 %v803, %v903
    %v905 = vpop.f32.mrb[0].mxu0
    %906 = vmatprep.mubr.f32.mxu0 0.0
    %907 = vmatmul.mubr.f32.gmra.mrb[0].mxu0 %v817
    %v908 = vpop.f32.mrb[0].mxu0
    %v909 = vadd.f32 %v803, %v908
    %v910 = vpop.f32.mrb[0].mxu0
    %911 = vmatprep.mubr.f32.mxu0 0.0
    %912 = vmatmul.mubr.f32.gmra.mrb[0].mxu0 %v820
    %v913 = vpop.f32.mrb[0].mxu0
    %v914 = vadd.f32 %v803, %v913
    %v915 = vpop.f32.mrb[0].mxu0
    %916 = vdwg.mxu0
    %v917 = vld [vmem:[#allocation4] sm:$0xff]
    %v918 = vld [vmem:[#allocation4 + $0x8] sm:$0xff]
    %v919 = vld [vmem:[#allocation4 + $0x10] sm:$0xff]
    %v920 = vld [vmem:[#allocation4 + $0x18] sm:$0xff]
    %v921 = vld [vmem:[#allocation4 + $0x20] sm:$0xff]
    %v922 = vld [vmem:[#allocation4 + $0x28] sm:$0xff]
    %s923 = scalar_lea.vmem [#allocation4], 48
    %v924 = vld [vmem:[%s923] sm:$0xff]
    %v925 = vld [vmem:[%s923 + $0x8] sm:$0xff]
    %v926 = vld [vmem:[%s923 + $0x10] sm:$0xff]
    %v927 = vld [vmem:[%s923 + $0x18] sm:$0xff]
    %v928 = vld [vmem:[%s923 + $0x20] sm:$0xff]
    %v929 = vld [vmem:[%s923 + $0x28] sm:$0xff]
    %v930 = vld [vmem:[#allocation6] sm:$0xff]
    %v931 = vld [vmem:[#allocation6 + $0x8] sm:$0xff]
    %v932 = vld [vmem:[#allocation6 + $0x10] sm:$0xff]
    %v933 = vld [vmem:[#allocation6 + $0x18] sm:$0xff]
    %v934 = vld [vmem:[%s4] sm:$0xff]
    %v935 = vld [vmem:[%s4 + $0x8] sm:$0xff]
    %v936 = vld [vmem:[%s4 + $0x10] sm:$0xff]
    %v937 = vld [vmem:[%s4 + $0x18] sm:$0xff]
    %v938 = vld [vmem:[%s4 + $0x20] sm:$0xff]
    %v939 = vld [vmem:[%s4 + $0x28] sm:$0xff]
    %vm940 = vcmp.ge.s32.totalorder %v329, 0
    %vm941 = vcmp.lt.s32.totalorder %v329, 8
    %vm942 = vmand %vm940, %vm941
    %v943 = vsel %vm942, 1, 0
    %v944 = vcvt.s32.f32 %v943
    %vm945 = vcmp.ge.s32.totalorder %v329, 8
    %vm946 = vcmp.lt.s32.totalorder %v329, 16
    %vm947 = vmand %vm945, %vm946
    %v948 = vsel %vm947, 1, 0
    %v949 = vcvt.s32.f32 %v948
    %vm950 = vcmp.ge.s32.totalorder %v329, 16
    %vm951 = vcmp.lt.s32.totalorder %v329, 24
    %vm952 = vmand %vm950, %vm951
    %v953 = vsel %vm952, 1, 0
    %v954 = vcvt.s32.f32 %v953
    %vm955 = vcmp.ge.s32.totalorder %v329, 24
    %vm956 = vcmp.lt.s32.totalorder %v329, 32
    %vm957 = vmand %vm955, %vm956
    %v958 = vsel %vm957, 1, 0
    %v959 = vcvt.s32.f32 %v958
    %v960 = vld [vmem:[#allocation15 + $0x2] sm:$0x1]
    %v961 = vmul.f32 %v889, %v889
    %v962 = vmul.f32 %v894, %v894
    %v963 = vmul.f32 %v899, %v899
    %v964 = vmul.f32 %v904, %v904
    %v965 = vmul.f32 %v909, %v909
    %v966 = vmul.f32 %v914, %v914
    %vm967 = vcmask 261120
    %v968 = vsel %vm967, %v961, 0.0
    %969 = vadd.xlane.f32.xlu0 %v968
    %v970 = vpop.xlane.xlu0 %969
    %v971 = vsel %vm967, %v962, 0.0
    %972 = vadd.xlane.f32.xlu0 %v971
    %v973 = vpop.xlane.xlu0 %972
    %v974 = vsel %vm967, %v963, 0.0
    %975 = vadd.xlane.f32.xlu0 %v974
    %v976 = vpop.xlane.xlu0 %975
    %v977 = vsel %vm967, %v964, 0.0
    %978 = vadd.xlane.f32.xlu0 %v977
    %v979 = vpop.xlane.xlu0 %978
    %v980 = vsel %vm967, %v965, 0.0
    %981 = vadd.xlane.f32.xlu0 %v980
    %v982 = vpop.xlane.xlu0 %981
    %v983 = vsel %vm967, %v966, 0.0
    %984 = vadd.xlane.f32.xlu0 %v983
    %v985 = vpop.xlane.xlu0 %984
    %v986 = vrcp.pop 32.0
    %v987 = vmul.f32 %v970, %v986
    %v988 = vmul.f32 %v973, %v986
    %v989 = vmul.f32 %v976, %v986
    %v990 = vmul.f32 %v979, %v986
    %v991 = vmul.f32 %v982, %v986
    %v992 = vmul.f32 %v985, %v986
    %v993 = vadd.f32 %v987, 1e-05
    %v994 = vadd.f32 %v988, 1e-05
    %v995 = vadd.f32 %v989, 1e-05
    %v996 = vadd.f32 %v990, 1e-05
    %v997 = vadd.f32 %v991, 1e-05
    %v998 = vadd.f32 %v992, 1e-05
    %v999 = vrsqrt.pop %v993
    %v1000 = vrsqrt.pop %v994
    %v1001 = vrsqrt.pop %v995
    %v1002 = vrsqrt.pop %v996
    %v1003 = vrsqrt.pop %v997
    %v1004 = vrsqrt.pop %v998
    %v1005 = vmul.f32 %v889, %v999
    %v1006 = vmul.f32 %v894, %v1000
    %v1007 = vmul.f32 %v899, %v1001
    %v1008 = vmul.f32 %v904, %v1002
    %v1009 = vmul.f32 %v909, %v1003
    %v1010 = vmul.f32 %v914, %v1004
    %v1011 = vlaneseq
    %v1012 = vshrl.u32 %v1011, 7
    %v1013 = vsub.s32 0, %v1012
    %v1014 = vrot.slane %v960, %v1013
    %v1015 = vmul.f32 %v1005, %v1014
    %v1016 = vmul.f32 %v1006, %v1014
    %v1017 = vmul.f32 %v1007, %v1014
    %v1018 = vmul.f32 %v1008, %v1014
    %v1019 = vmul.f32 %v1009, %v1014
    %v1020 = vmul.f32 %v1010, %v1014
    %v1021 = vpack.c.bf16 %v1016, %v1015
    %v1022 = vpack.c.bf16 %v1018, %v1017
    %v1023 = vpack.c.bf16 %v1020, %v1019
    %v1024 = vld [vmem:[#allocation16] sm:$0xf]
    %v1025 = vld [vmem:[#allocation16 + $0x4] sm:$0xf]
    %v1026 = vld [vmem:[#allocation16 + $0x8] sm:$0xf]
    %v1027 = vld [vmem:[#allocation16 + $0xc] sm:$0xf]
    %v1032 = vunpack.c.l.b16 %v1024
    %v1033 = vunpack.c.l.b16 %v1025
    %v1034 = vunpack.c.l.b16 %v1026
    %v1035 = vunpack.c.l.b16 %v1027
    %v1036 = vpack.c.b16 %v1033, %v1032
    %v1037 = vpack.c.b16 %v1035, %v1034
    %v1041 = vsel %vm967, %v1021, 0
    %v1044 = vsel %vm967, %v1022, 0
    %v1047 = vsel %vm967, %v1023, 0
    %1049 = vmatprep.subr.bf16.mxu0 0
    %1050 = vmatpush1.bf16.msra.mxu0 %v1036
    %1051 = vmatprep.subr.bf16.mxu0 0
    %1052 = vmatpush1.bf16.msra.mxu0 %v1037
    %1053 = vmatprep.subr.bf16.mxu0 0
    %1054 = vmatpush1.bf16.msra.mxu0 0
    %1055 = vmatprep.subr.bf16.mxu0 0
    %1056 = vmatpush1.bf16.msra.mxu0 0
    %1057 = vmatprep.subr.bf16.mxu0 0
    %1058 = vmatpush1.bf16.msra.mxu0 0
    %1059 = vmatprep.subr.bf16.mxu0 0
    %1060 = vmatpush1.bf16.msra.mxu0 0
    %1061 = vmatprep.subr.bf16.mxu0 0
    %1062 = vmatpush1.bf16.msra.mxu0 0
    %1063 = vmatprep.subr.bf16.mxu0 0
    %1064 = vmatpush1.bf16.msra.mxu0 0
    %1065 = vmatprep.subr.bf16.mxu0 0
    %1066 = vmatpush1.bf16.msra.mxu0 0
    %1067 = vmatprep.subr.bf16.mxu0 0
    %1068 = vmatpush1.bf16.msra.mxu0 0
    %1069 = vmatprep.subr.bf16.mxu0 0
    %1070 = vmatpush1.bf16.msra.mxu0 0
    %1071 = vmatprep.subr.bf16.mxu0 0
    %1072 = vmatpush1.bf16.msra.mxu0 0
    %1073 = vmatprep.subr.bf16.mxu0 0
    %1074 = vmatpush1.bf16.msra.mxu0 0
    %1075 = vmatprep.subr.bf16.mxu0 0
    %1076 = vmatpush1.bf16.msra.mxu0 0
    %1077 = vmatprep.subr.bf16.mxu0 0
    %1078 = vmatpush1.bf16.msra.mxu0 0
    %1079 = vmatprep.subr.bf16.mxu0 0
    %1080 = vmatpush1.bf16.msra.mxu0 0
    %1081 = vmatprep.mubr.bf16.mxu0 0
    %1082 = vmatmul.mubr.bf16.gmra.mrb[0].mxu0 %v1041
    %v1083 = vpop.f32.mrb[0].mxu0
    %v1084 = vadd.f32 0.0, %v1083
    %v1085 = vpop.f32.mrb[0].mxu0
    %v1086 = vpop.f32.mrb[0].mxu0
    %v1087 = vadd.f32 0.0, %v1086
    %v1088 = vpop.f32.mrb[0].mxu0
    %1089 = vmatprep.mubr.bf16.mxu0 0
    %1090 = vmatmul.mubr.bf16.gmra.mrb[0].mxu0 %v1044
    %v1091 = vpop.f32.mrb[0].mxu0
    %v1092 = vadd.f32 0.0, %v1091
    %v1093 = vpop.f32.mrb[0].mxu0
    %v1094 = vpop.f32.mrb[0].mxu0
    %v1095 = vadd.f32 0.0, %v1094
    %v1096 = vpop.f32.mrb[0].mxu0
    %1097 = vmatprep.mubr.bf16.mxu0 0
    %1098 = vmatmul.mubr.bf16.gmra.mrb[0].mxu0 %v1047
    %v1099 = vpop.f32.mrb[0].mxu0
    %v1100 = vadd.f32 0.0, %v1099
    %v1101 = vpop.f32.mrb[0].mxu0
    %v1102 = vpop.f32.mrb[0].mxu0
    %v1103 = vadd.f32 0.0, %v1102
    %v1104 = vpop.f32.mrb[0].mxu0
    %1105 = vdwg.mxu0
    %v1106 = vmul.f32 %v1084, %v917
    %v1107 = vmul.f32 %v1087, %v918
    %v1108 = vmul.f32 %v1092, %v919
    %v1109 = vmul.f32 %v1095, %v920
    %v1110 = vmul.f32 %v1100, %v921
    %v1111 = vmul.f32 %v1103, %v922
    %v1113 = vsel %vm967, %v1084, 0
    %v1116 = vsel %vm967, %v1087, 0
    %v1119 = vsel %vm967, %v1092, 0
    %v1122 = vsel %vm967, %v1095, 0
    %v1125 = vsel %vm967, %v1100, 0
    %v1128 = vsel %vm967, %v1103, 0
    %1130 = vmatprep.subr.mxu0 0.0
    %1131 = vmatpush1.msra.mxu0 %v930
    %1132 = vmatprep.subr.mxu0 0.0
    %1133 = vmatpush1.msra.mxu0 %v931
    %1134 = vmatprep.subr.mxu0 0.0
    %1135 = vmatpush1.msra.mxu0 %v932
    %1136 = vmatprep.subr.mxu0 0.0
    %1137 = vmatpush1.msra.mxu0 %v933
    %1138 = vmatprep.subr.mxu0 0.0
    %1139 = vmatpush1.msra.mxu0 0.0
    %1140 = vmatprep.subr.mxu0 0.0
    %1141 = vmatpush1.msra.mxu0 0.0
    %1142 = vmatprep.subr.mxu0 0.0
    %1143 = vmatpush1.msra.mxu0 0.0
    %1144 = vmatprep.subr.mxu0 0.0
    %1145 = vmatpush1.msra.mxu0 0.0
    %1146 = vmatprep.subr.mxu0 0.0
    %1147 = vmatpush1.msra.mxu0 0.0
    %1148 = vmatprep.subr.mxu0 0.0
    %1149 = vmatpush1.msra.mxu0 0.0
    %1150 = vmatprep.subr.mxu0 0.0
    %1151 = vmatpush1.msra.mxu0 0.0
    %1152 = vmatprep.subr.mxu0 0.0
    %1153 = vmatpush1.msra.mxu0 0.0
    %1154 = vmatprep.subr.mxu0 0.0
    %1155 = vmatpush1.msra.mxu0 0.0
    %1156 = vmatprep.subr.mxu0 0.0
    %1157 = vmatpush1.msra.mxu0 0.0
    %1158 = vmatprep.subr.mxu0 0.0
    %1159 = vmatpush1.msra.mxu0 0.0
    %1160 = vmatprep.subr.mxu0 0.0
    %1161 = vmatpush1.msra.mxu0 0.0
    %1162 = vmatprep.subr.mxu0 0.0
    %1163 = vmatpush1.msra.mxu0 0.0
    %1164 = vmatprep.subr.mxu0 0.0
    %1165 = vmatpush1.msra.mxu0 0.0
    %1166 = vmatprep.subr.mxu0 0.0
    %1167 = vmatpush1.msra.mxu0 0.0
    %1168 = vmatprep.subr.mxu0 0.0
    %1169 = vmatpush1.msra.mxu0 0.0
    %1170 = vmatprep.subr.mxu0 0.0
    %1171 = vmatpush1.msra.mxu0 0.0
    %1172 = vmatprep.subr.mxu0 0.0
    %1173 = vmatpush1.msra.mxu0 0.0
    %1174 = vmatprep.subr.mxu0 0.0
    %1175 = vmatpush1.msra.mxu0 0.0
    %1176 = vmatprep.subr.mxu0 0.0
    %1177 = vmatpush1.msra.mxu0 0.0
    %1178 = vmatprep.subr.mxu0 0.0
    %1179 = vmatpush1.msra.mxu0 0.0
    %1180 = vmatprep.subr.mxu0 0.0
    %1181 = vmatpush1.msra.mxu0 0.0
    %1182 = vmatprep.subr.mxu0 0.0
    %1183 = vmatpush1.msra.mxu0 0.0
    %1184 = vmatprep.subr.mxu0 0.0
    %1185 = vmatpush1.msra.mxu0 0.0
    %1186 = vmatprep.subr.mxu0 0.0
    %1187 = vmatpush1.msra.mxu0 0.0
    %1188 = vmatprep.subr.mxu0 0.0
    %1189 = vmatpush1.msra.mxu0 0.0
    %1190 = vmatprep.subr.mxu0 0.0
    %1191 = vmatpush1.msra.mxu0 0.0
    %1192 = vmatprep.subr.mxu0 0.0
    %1193 = vmatpush1.msra.mxu0 0.0
    %1194 = vmatprep.mubr.f32.mxu0 0.0
    %1195 = vmatmul.mubr.f32.gmra.mrb[0].mxu0 %v1113
    %v1196 = vpop.f32.mrb[0].mxu0
    %v1197 = vadd.f32 0.0, %v1196
    %v1198 = vpop.f32.mrb[0].mxu0
    %1199 = vmatprep.mubr.f32.mxu0 0.0
    %1200 = vmatmul.mubr.f32.gmra.mrb[0].mxu0 %v1116
    %v1201 = vpop.f32.mrb[0].mxu0
    %v1202 = vadd.f32 0.0, %v1201
    %v1203 = vpop.f32.mrb[0].mxu0
    %1204 = vmatprep.mubr.f32.mxu0 0.0
    %1205 = vmatmul.mubr.f32.gmra.mrb[0].mxu0 %v1119
    %v1206 = vpop.f32.mrb[0].mxu0
    %v1207 = vadd.f32 0.0, %v1206
    %v1208 = vpop.f32.mrb[0].mxu0
    %1209 = vmatprep.mubr.f32.mxu0 0.0
    %1210 = vmatmul.mubr.f32.gmra.mrb[0].mxu0 %v1122
    %v1211 = vpop.f32.mrb[0].mxu0
    %v1212 = vadd.f32 0.0, %v1211
    %v1213 = vpop.f32.mrb[0].mxu0
    %1214 = vmatprep.mubr.f32.mxu0 0.0
    %1215 = vmatmul.mubr.f32.gmra.mrb[0].mxu0 %v1125
    %v1216 = vpop.f32.mrb[0].mxu0
    %v1217 = vadd.f32 0.0, %v1216
    %v1218 = vpop.f32.mrb[0].mxu0
    %1219 = vmatprep.mubr.f32.mxu0 0.0
    %1220 = vmatmul.mubr.f32.gmra.mrb[0].mxu0 %v1128
    %v1221 = vpop.f32.mrb[0].mxu0
    %v1222 = vadd.f32 0.0, %v1221
    %v1223 = vpop.f32.mrb[0].mxu0
    %1224 = vdwg.mxu0
    %v1225 = vmul.f32 %v1197, %v924
    %v1226 = vmul.f32 %v1202, %v925
    %v1227 = vmul.f32 %v1207, %v926
    %v1228 = vmul.f32 %v1212, %v927
    %v1229 = vmul.f32 %v1217, %v928
    %v1230 = vmul.f32 %v1222, %v929
    %v1231 = vadd.f32 %v1106, %v1225
    %v1232 = vadd.f32 %v1107, %v1226
    %v1233 = vadd.f32 %v1108, %v1227
    %v1234 = vadd.f32 %v1109, %v1228
    %v1235 = vadd.f32 %v1110, %v1229
    %v1236 = vadd.f32 %v1111, %v1230
    %s1237 = scalar_lea.vmem [#allocation16], 16
    %v1238 = vld [vmem:[%s1237] sm:$0xf]
    %v1239 = vld [vmem:[%s1237 + $0x4] sm:$0xf]
    %v1240 = vld [vmem:[%s1237 + $0x8] sm:$0xf]
    %v1241 = vld [vmem:[%s1237 + $0xc] sm:$0xf]
    %v1246 = vunpack.c.l.b16 %v1238
    %v1247 = vunpack.c.l.b16 %v1239
    %v1248 = vunpack.c.l.b16 %v1240
    %v1249 = vunpack.c.l.b16 %v1241
    %v1250 = vpack.c.b16 %v1247, %v1246
    %v1251 = vpack.c.b16 %v1249, %v1248
    %1254 = vmatprep.subr.bf16.mxu0 0
    %1255 = vmatpush1.bf16.msra.mxu0 %v1250
    %1256 = vmatprep.subr.bf16.mxu0 0
    %1257 = vmatpush1.bf16.msra.mxu0 %v1251
    %1258 = vmatprep.subr.bf16.mxu0 0
    %1259 = vmatpush1.bf16.msra.mxu0 0
    %1260 = vmatprep.subr.bf16.mxu0 0
    %1261 = vmatpush1.bf16.msra.mxu0 0
    %1262 = vmatprep.subr.bf16.mxu0 0
    %1263 = vmatpush1.bf16.msra.mxu0 0
    %1264 = vmatprep.subr.bf16.mxu0 0
    %1265 = vmatpush1.bf16.msra.mxu0 0
    %1266 = vmatprep.subr.bf16.mxu0 0
    %1267 = vmatpush1.bf16.msra.mxu0 0
    %1268 = vmatprep.subr.bf16.mxu0 0
    %1269 = vmatpush1.bf16.msra.mxu0 0
    %1270 = vmatprep.subr.bf16.mxu0 0
    %1271 = vmatpush1.bf16.msra.mxu0 0
    %1272 = vmatprep.subr.bf16.mxu0 0
    %1273 = vmatpush1.bf16.msra.mxu0 0
    %1274 = vmatprep.subr.bf16.mxu0 0
    %1275 = vmatpush1.bf16.msra.mxu0 0
    %1276 = vmatprep.subr.bf16.mxu0 0
    %1277 = vmatpush1.bf16.msra.mxu0 0
    %1278 = vmatprep.subr.bf16.mxu0 0
    %1279 = vmatpush1.bf16.msra.mxu0 0
    %1280 = vmatprep.subr.bf16.mxu0 0
    %1281 = vmatpush1.bf16.msra.mxu0 0
    %1282 = vmatprep.subr.bf16.mxu0 0
    %1283 = vmatpush1.bf16.msra.mxu0 0
    %1284 = vmatprep.subr.bf16.mxu0 0
    %1285 = vmatpush1.bf16.msra.mxu0 0
    %1286 = vmatprep.mubr.bf16.mxu0 0
    %1287 = vmatmul.mubr.bf16.gmra.mrb[0].mxu0 %v1041
    %v1288 = vpop.f32.mrb[0].mxu0
    %v1289 = vadd.f32 0.0, %v1288
    %v1290 = vpop.f32.mrb[0].mxu0
    %v1291 = vpop.f32.mrb[0].mxu0
    %v1292 = vadd.f32 0.0, %v1291
    %v1293 = vpop.f32.mrb[0].mxu0
    %1294 = vmatprep.mubr.bf16.mxu0 0
    %1295 = vmatmul.mubr.bf16.gmra.mrb[0].mxu0 %v1044
    %v1296 = vpop.f32.mrb[0].mxu0
    %v1297 = vadd.f32 0.0, %v1296
    %v1298 = vpop.f32.mrb[0].mxu0
    %v1299 = vpop.f32.mrb[0].mxu0
    %v1300 = vadd.f32 0.0, %v1299
    %v1301 = vpop.f32.mrb[0].mxu0
    %1302 = vmatprep.mubr.bf16.mxu0 0
    %1303 = vmatmul.mubr.bf16.gmra.mrb[0].mxu0 %v1047
    %v1304 = vpop.f32.mrb[0].mxu0
    %v1305 = vadd.f32 0.0, %v1304
    %v1306 = vpop.f32.mrb[0].mxu0
    %v1307 = vpop.f32.mrb[0].mxu0
    %v1308 = vadd.f32 0.0, %v1307
    %v1309 = vpop.f32.mrb[0].mxu0
    %1310 = vdwg.mxu0
    %v1311 = vmul.f32 %v1289, %v917
    %v1312 = vmul.f32 %v1292, %v918
    %v1313 = vmul.f32 %v1297, %v919
    %v1314 = vmul.f32 %v1300, %v920
    %v1315 = vmul.f32 %v1305, %v921
    %v1316 = vmul.f32 %v1308, %v922
    %v1318 = vsel %vm967, %v1289, 0
    %v1321 = vsel %vm967, %v1292, 0
    %v1324 = vsel %vm967, %v1297, 0
    %v1327 = vsel %vm967, %v1300, 0
    %v1330 = vsel %vm967, %v1305, 0
    %v1333 = vsel %vm967, %v1308, 0
    %1335 = vmatprep.subr.mxu0 0.0
    %1336 = vmatpush1.msra.mxu0 %v930
    %1337 = vmatprep.subr.mxu0 0.0
    %1338 = vmatpush1.msra.mxu0 %v931
    %1339 = vmatprep.subr.mxu0 0.0
    %1340 = vmatpush1.msra.mxu0 %v932
    %1341 = vmatprep.subr.mxu0 0.0
    %1342 = vmatpush1.msra.mxu0 %v933
    %1343 = vmatprep.subr.mxu0 0.0
    %1344 = vmatpush1.msra.mxu0 0.0
    %1345 = vmatprep.subr.mxu0 0.0
    %1346 = vmatpush1.msra.mxu0 0.0
    %1347 = vmatprep.subr.mxu0 0.0
    %1348 = vmatpush1.msra.mxu0 0.0
    %1349 = vmatprep.subr.mxu0 0.0
    %1350 = vmatpush1.msra.mxu0 0.0
    %1351 = vmatprep.subr.mxu0 0.0
    %1352 = vmatpush1.msra.mxu0 0.0
    %1353 = vmatprep.subr.mxu0 0.0
    %1354 = vmatpush1.msra.mxu0 0.0
    %1355 = vmatprep.subr.mxu0 0.0
    %1356 = vmatpush1.msra.mxu0 0.0
    %1357 = vmatprep.subr.mxu0 0.0
    %1358 = vmatpush1.msra.mxu0 0.0
    %1359 = vmatprep.subr.mxu0 0.0
    %1360 = vmatpush1.msra.mxu0 0.0
    %1361 = vmatprep.subr.mxu0 0.0
    %1362 = vmatpush1.msra.mxu0 0.0
    %1363 = vmatprep.subr.mxu0 0.0
    %1364 = vmatpush1.msra.mxu0 0.0
    %1365 = vmatprep.subr.mxu0 0.0
    %1366 = vmatpush1.msra.mxu0 0.0
    %1367 = vmatprep.subr.mxu0 0.0
    %1368 = vmatpush1.msra.mxu0 0.0
    %1369 = vmatprep.subr.mxu0 0.0
    %1370 = vmatpush1.msra.mxu0 0.0
    %1371 = vmatprep.subr.mxu0 0.0
    %1372 = vmatpush1.msra.mxu0 0.0
    %1373 = vmatprep.subr.mxu0 0.0
    %1374 = vmatpush1.msra.mxu0 0.0
    %1375 = vmatprep.subr.mxu0 0.0
    %1376 = vmatpush1.msra.mxu0 0.0
    %1377 = vmatprep.subr.mxu0 0.0
    %1378 = vmatpush1.msra.mxu0 0.0
    %1379 = vmatprep.subr.mxu0 0.0
    %1380 = vmatpush1.msra.mxu0 0.0
    %1381 = vmatprep.subr.mxu0 0.0
    %1382 = vmatpush1.msra.mxu0 0.0
    %1383 = vmatprep.subr.mxu0 0.0
    %1384 = vmatpush1.msra.mxu0 0.0
    %1385 = vmatprep.subr.mxu0 0.0
    %1386 = vmatpush1.msra.mxu0 0.0
    %1387 = vmatprep.subr.mxu0 0.0
    %1388 = vmatpush1.msra.mxu0 0.0
    %1389 = vmatprep.subr.mxu0 0.0
    %1390 = vmatpush1.msra.mxu0 0.0
    %1391 = vmatprep.subr.mxu0 0.0
    %1392 = vmatpush1.msra.mxu0 0.0
    %1393 = vmatprep.subr.mxu0 0.0
    %1394 = vmatpush1.msra.mxu0 0.0
    %1395 = vmatprep.subr.mxu0 0.0
    %1396 = vmatpush1.msra.mxu0 0.0
    %1397 = vmatprep.subr.mxu0 0.0
    %1398 = vmatpush1.msra.mxu0 0.0
    %1399 = vmatprep.mubr.f32.mxu0 0.0
    %1400 = vmatmul.mubr.f32.gmra.mrb[0].mxu0 %v1318
    %v1401 = vpop.f32.mrb[0].mxu0
    %v1402 = vadd.f32 0.0, %v1401
    %v1403 = vpop.f32.mrb[0].mxu0
    %1404 = vmatprep.mubr.f32.mxu0 0.0
    %1405 = vmatmul.mubr.f32.gmra.mrb[0].mxu0 %v1321
    %v1406 = vpop.f32.mrb[0].mxu0
    %v1407 = vadd.f32 0.0, %v1406
    %v1408 = vpop.f32.mrb[0].mxu0
    %1409 = vmatprep.mubr.f32.mxu0 0.0
    %1410 = vmatmul.mubr.f32.gmra.mrb[0].mxu0 %v1324
    %v1411 = vpop.f32.mrb[0].mxu0
    %v1412 = vadd.f32 0.0, %v1411
    %v1413 = vpop.f32.mrb[0].mxu0
    %1414 = vmatprep.mubr.f32.mxu0 0.0
    %1415 = vmatmul.mubr.f32.gmra.mrb[0].mxu0 %v1327
    %v1416 = vpop.f32.mrb[0].mxu0
    %v1417 = vadd.f32 0.0, %v1416
    %v1418 = vpop.f32.mrb[0].mxu0
    %1419 = vmatprep.mubr.f32.mxu0 0.0
    %1420 = vmatmul.mubr.f32.gmra.mrb[0].mxu0 %v1330
    %v1421 = vpop.f32.mrb[0].mxu0
    %v1422 = vadd.f32 0.0, %v1421
    %v1423 = vpop.f32.mrb[0].mxu0
    %1424 = vmatprep.mubr.f32.mxu0 0.0
    %1425 = vmatmul.mubr.f32.gmra.mrb[0].mxu0 %v1333
    %v1426 = vpop.f32.mrb[0].mxu0
    %v1427 = vadd.f32 0.0, %v1426
    %v1428 = vpop.f32.mrb[0].mxu0
    %1429 = vdwg.mxu0
    %v1430 = vmul.f32 %v1402, %v924
    %v1431 = vmul.f32 %v1407, %v925
    %v1432 = vmul.f32 %v1412, %v926
    %v1433 = vmul.f32 %v1417, %v927
    %v1434 = vmul.f32 %v1422, %v928
    %v1435 = vmul.f32 %v1427, %v929
    %v1436 = vadd.f32 %v1311, %v1430
    %v1437 = vadd.f32 %v1312, %v1431
    %v1438 = vadd.f32 %v1313, %v1432
    %v1439 = vadd.f32 %v1314, %v1433
    %v1440 = vadd.f32 %v1315, %v1434
    %v1441 = vadd.f32 %v1316, %v1435
    %s1442 = scalar_lea.vmem [#allocation16], 32
    %v1443 = vld [vmem:[%s1442] sm:$0xf]
    %v1444 = vld [vmem:[%s1442 + $0x4] sm:$0xf]
    %v1445 = vld [vmem:[%s1442 + $0x8] sm:$0xf]
    %v1446 = vld [vmem:[%s1442 + $0xc] sm:$0xf]
    %v1451 = vunpack.c.l.b16 %v1443
    %v1452 = vunpack.c.l.b16 %v1444
    %v1453 = vunpack.c.l.b16 %v1445
    %v1454 = vunpack.c.l.b16 %v1446
    %v1455 = vpack.c.b16 %v1452, %v1451
    %v1456 = vpack.c.b16 %v1454, %v1453
    %1459 = vmatprep.subr.bf16.mxu0 0
    %1460 = vmatpush1.bf16.msra.mxu0 %v1455
    %1461 = vmatprep.subr.bf16.mxu0 0
    %1462 = vmatpush1.bf16.msra.mxu0 %v1456
    %1463 = vmatprep.subr.bf16.mxu0 0
    %1464 = vmatpush1.bf16.msra.mxu0 0
    %1465 = vmatprep.subr.bf16.mxu0 0
    %1466 = vmatpush1.bf16.msra.mxu0 0
    %1467 = vmatprep.subr.bf16.mxu0 0
    %1468 = vmatpush1.bf16.msra.mxu0 0
    %1469 = vmatprep.subr.bf16.mxu0 0
    %1470 = vmatpush1.bf16.msra.mxu0 0
    %1471 = vmatprep.subr.bf16.mxu0 0
    %1472 = vmatpush1.bf16.msra.mxu0 0
    %1473 = vmatprep.subr.bf16.mxu0 0
    %1474 = vmatpush1.bf16.msra.mxu0 0
    %1475 = vmatprep.subr.bf16.mxu0 0
    %1476 = vmatpush1.bf16.msra.mxu0 0
    %1477 = vmatprep.subr.bf16.mxu0 0
    %1478 = vmatpush1.bf16.msra.mxu0 0
    %1479 = vmatprep.subr.bf16.mxu0 0
    %1480 = vmatpush1.bf16.msra.mxu0 0
    %1481 = vmatprep.subr.bf16.mxu0 0
    %1482 = vmatpush1.bf16.msra.mxu0 0
    %1483 = vmatprep.subr.bf16.mxu0 0
    %1484 = vmatpush1.bf16.msra.mxu0 0
    %1485 = vmatprep.subr.bf16.mxu0 0
    %1486 = vmatpush1.bf16.msra.mxu0 0
    %1487 = vmatprep.subr.bf16.mxu0 0
    %1488 = vmatpush1.bf16.msra.mxu0 0
    %1489 = vmatprep.subr.bf16.mxu0 0
    %1490 = vmatpush1.bf16.msra.mxu0 0
    %1491 = vmatprep.mubr.bf16.mxu0 0
    %1492 = vmatmul.mubr.bf16.gmra.mrb[0].mxu0 %v1041
    %v1493 = vpop.f32.mrb[0].mxu0
    %v1494 = vadd.f32 0.0, %v1493
    %v1495 = vpop.f32.mrb[0].mxu0
    %v1496 = vpop.f32.mrb[0].mxu0
    %v1497 = vadd.f32 0.0, %v1496
    %v1498 = vpop.f32.mrb[0].mxu0
    %1499 = vmatprep.mubr.bf16.mxu0 0
    %1500 = vmatmul.mubr.bf16.gmra.mrb[0].mxu0 %v1044
    %v1501 = vpop.f32.mrb[0].mxu0
    %v1502 = vadd.f32 0.0, %v1501
    %v1503 = vpop.f32.mrb[0].mxu0
    %v1504 = vpop.f32.mrb[0].mxu0
    %v1505 = vadd.f32 0.0, %v1504
    %v1506 = vpop.f32.mrb[0].mxu0
    %1507 = vmatprep.mubr.bf16.mxu0 0
    %1508 = vmatmul.mubr.bf16.gmra.mrb[0].mxu0 %v1047
    %v1509 = vpop.f32.mrb[0].mxu0
    %v1510 = vadd.f32 0.0, %v1509
    %v1511 = vpop.f32.mrb[0].mxu0
    %v1512 = vpop.f32.mrb[0].mxu0
    %v1513 = vadd.f32 0.0, %v1512
    %v1514 = vpop.f32.mrb[0].mxu0
    %1515 = vdwg.mxu0
    %v1516 = vpack.c.bf16 %v1437, %v1436
    %v1517 = vpack.c.bf16 %v1439, %v1438
    %v1518 = vpack.c.bf16 %v1441, %v1440
    %v1519 = vmul.f32 %v1231, %v944
    %v1520 = vmul.f32 %v1232, %v944
    %v1521 = vmul.f32 %v1233, %v944
    %v1522 = vmul.f32 %v1234, %v944
    %v1523 = vmul.f32 %v1235, %v944
    %v1524 = vmul.f32 %v1236, %v944
    %v1525 = vpack.c.bf16 %v1520, %v1519
    %v1526 = vpack.c.bf16 %v1522, %v1521
    %v1527 = vpack.c.bf16 %v1524, %v1523
    %v1529 = vsel %vm967, %v1525, 0
    %v1532 = vsel %vm967, %v1526, 0
    %v1535 = vsel %vm967, %v1527, 0
    %v1538 = vsel %vm967, %v1516, 0
    %v1541 = vsel %vm967, %v1517, 0
    %v1544 = vsel %vm967, %v1518, 0
    %1546 = vmatprep.subr.bf16.mxu0 0
    %1547 = vmatpush1.bf16.xpose.msra.mxu0 %v1538
    %1548 = vmatprep.subr.bf16.mxu0 0
    %1549 = vmatpush1.bf16.xpose.msra.mxu0 %v1541
    %1550 = vmatprep.subr.bf16.mxu0 0
    %1551 = vmatpush1.bf16.xpose.msra.mxu0 %v1544
    %1552 = vmatprep.subr.bf16.mxu0 0
    %1553 = vmatpush1.bf16.xpose.msra.mxu0 0
    %1554 = vmatprep.subr.bf16.mxu0 0
    %1555 = vmatpush1.bf16.xpose.msra.mxu0 0
    %1556 = vmatprep.subr.bf16.mxu0 0
    %1557 = vmatpush1.bf16.xpose.msra.mxu0 0
    %1558 = vmatprep.subr.bf16.mxu0 0
    %1559 = vmatpush1.bf16.xpose.msra.mxu0 0
    %1560 = vmatprep.subr.bf16.mxu0 0
    %1561 = vmatpush1.bf16.xpose.msra.mxu0 0
    %1562 = vmatprep.subr.bf16.mxu0 0
    %1563 = vmatpush1.bf16.xpose.msra.mxu0 0
    %1564 = vmatprep.subr.bf16.mxu0 0
    %1565 = vmatpush1.bf16.xpose.msra.mxu0 0
    %1566 = vmatprep.subr.bf16.mxu0 0
    %1567 = vmatpush1.bf16.xpose.msra.mxu0 0
    %1568 = vmatprep.subr.bf16.mxu0 0
    %1569 = vmatpush1.bf16.xpose.msra.mxu0 0
    %1570 = vmatprep.subr.bf16.mxu0 0
    %1571 = vmatpush1.bf16.xpose.msra.mxu0 0
    %1572 = vmatprep.subr.bf16.mxu0 0
    %1573 = vmatpush1.bf16.xpose.msra.mxu0 0
    %1574 = vmatprep.subr.bf16.mxu0 0
    %1575 = vmatpush1.bf16.xpose.msra.mxu0 0
    %1576 = vmatprep.subr.bf16.mxu0 0
    %1577 = vmatpush1.bf16.xpose.msra.mxu0 0
    %1578 = vmatprep.mubr.bf16.mxu0 0
    %1579 = vmatmul.mubr.bf16.gmra.mrb[0].mxu0 %v1529
    %v1580 = vpop.f32.mrb[0].mxu0
    %v1581 = vadd.f32 0.0, %v1580
    %v1582 = vpop.f32.mrb[0].mxu0
    %v1583 = vpop.f32.mrb[0].mxu0
    %v1584 = vadd.f32 0.0, %v1583
    %v1585 = vpop.f32.mrb[0].mxu0
    %1586 = vmatprep.mubr.bf16.mxu0 0
    %1587 = vmatmul.mubr.bf16.gmra.mrb[0].mxu0 %v1532
    %v1588 = vpop.f32.mrb[0].mxu0
    %v1589 = vadd.f32 0.0, %v1588
    %v1590 = vpop.f32.mrb[0].mxu0
    %v1591 = vpop.f32.mrb[0].mxu0
    %v1592 = vadd.f32 0.0, %v1591
    %v1593 = vpop.f32.mrb[0].mxu0
    %1594 = vmatprep.mubr.bf16.mxu0 0
    %1595 = vmatmul.mubr.bf16.gmra.mrb[0].mxu0 %v1535
    %v1596 = vpop.f32.mrb[0].mxu0
    %v1597 = vadd.f32 0.0, %v1596
    %v1598 = vpop.f32.mrb[0].mxu0
    %v1599 = vpop.f32.mrb[0].mxu0
    %v1600 = vadd.f32 0.0, %v1599
    %v1601 = vpop.f32.mrb[0].mxu0
    %1602 = vdwg.mxu0
    %v1603 = vmul.f32 %v1581, 0.35355338
    %v1604 = vmul.f32 %v1584, 0.35355338
    %v1605 = vmul.f32 %v1589, 0.35355338
    %v1606 = vmul.f32 %v1592, 0.35355338
    %v1607 = vmul.f32 %v1597, 0.35355338
    %v1608 = vmul.f32 %v1600, 0.35355338
    %v1609 = vadd.f32 %v1603, %v934
    %v1610 = vadd.f32 %v1604, %v935
    %v1611 = vadd.f32 %v1605, %v936
    %v1612 = vadd.f32 %v1606, %v937
    %v1613 = vadd.f32 %v1607, %v938
    %v1614 = vadd.f32 %v1608, %v939
    %vm1615 = vcmask 392192
    %v1616 = vsel %vm1615, %v1609, -inf
    %1617 = vmax.xlane.f32.xlu0 %v1616
    %v1618 = vpop.xlane.xlu0 %1617
    %v1619 = vsel %vm1615, %v1610, -inf
    %1620 = vmax.xlane.f32.xlu0 %v1619
    %v1621 = vpop.xlane.xlu0 %1620
    %v1622 = vsel %vm1615, %v1611, -inf
    %1623 = vmax.xlane.f32.xlu0 %v1622
    %v1624 = vpop.xlane.xlu0 %1623
    %v1625 = vsel %vm1615, %v1612, -inf
    %1626 = vmax.xlane.f32.xlu0 %v1625
    %v1627 = vpop.xlane.xlu0 %1626
    %v1628 = vsel %vm1615, %v1613, -inf
    %1629 = vmax.xlane.f32.xlu0 %v1628
    %v1630 = vpop.xlane.xlu0 %1629
    %v1631 = vsel %vm1615, %v1614, -inf
    %1632 = vmax.xlane.f32.xlu0 %v1631
    %v1633 = vpop.xlane.xlu0 %1632
    %v1634 = vsub.f32 %v1609, %v1618
    %v1635 = vsub.f32 %v1610, %v1621
    %v1636 = vsub.f32 %v1611, %v1624
    %v1637 = vsub.f32 %v1612, %v1627
    %v1638 = vsub.f32 %v1613, %v1630
    %v1639 = vsub.f32 %v1614, %v1633
    %v1640 = vmul.f32 %v1634, 1.442695
    %v1641 = vpow.pop %v1640
    %v1642 = vmul.f32 %v1635, 1.442695
    %v1643 = vpow.pop %v1642
    %v1644 = vmul.f32 %v1636, 1.442695
    %v1645 = vpow.pop %v1644
    %v1646 = vmul.f32 %v1637, 1.442695
    %v1647 = vpow.pop %v1646
    %v1648 = vmul.f32 %v1638, 1.442695
    %v1649 = vpow.pop %v1648
    %v1650 = vmul.f32 %v1639, 1.442695
    %v1651 = vpow.pop %v1650
    %v1652 = vsel %vm1615, %v1641, 0.0
    %1653 = vadd.xlane.f32.xlu0 %v1652
    %v1654 = vpop.xlane.xlu0 %1653
    %v1655 = vsel %vm1615, %v1643, 0.0
    %1656 = vadd.xlane.f32.xlu0 %v1655
    %v1657 = vpop.xlane.xlu0 %1656
    %v1658 = vsel %vm1615, %v1645, 0.0
    %1659 = vadd.xlane.f32.xlu0 %v1658
    %v1660 = vpop.xlane.xlu0 %1659
    %v1661 = vsel %vm1615, %v1647, 0.0
    %1662 = vadd.xlane.f32.xlu0 %v1661
    %v1663 = vpop.xlane.xlu0 %1662
    %v1664 = vsel %vm1615, %v1649, 0.0
    %1665 = vadd.xlane.f32.xlu0 %v1664
    %v1666 = vpop.xlane.xlu0 %1665
    %v1667 = vsel %vm1615, %v1651, 0.0
    %1668 = vadd.xlane.f32.xlu0 %v1667
    %v1669 = vpop.xlane.xlu0 %1668
    %v1670 = vrcp.pop %v1654
    %v1671 = vrcp.pop %v1657
    %v1672 = vrcp.pop %v1660
    %v1673 = vrcp.pop %v1663
    %v1674 = vrcp.pop %v1666
    %v1675 = vrcp.pop %v1669
    %v1676 = vmul.f32 %v1641, %v1670
    %v1677 = vmul.f32 %v1643, %v1671
    %v1678 = vmul.f32 %v1645, %v1672
    %v1679 = vmul.f32 %v1647, %v1673
    %v1680 = vmul.f32 %v1649, %v1674
    %v1681 = vmul.f32 %v1651, %v1675
    %v1682 = vpack.c.bf16 %v1677, %v1676
    %v1683 = vpack.c.bf16 %v1679, %v1678
    %v1684 = vpack.c.bf16 %v1681, %v1680
    %v1685 = vmul.f32 %v1494, %v944
    %v1686 = vmul.f32 %v1497, %v944
    %v1687 = vmul.f32 %v1502, %v944
    %v1688 = vmul.f32 %v1505, %v944
    %v1689 = vmul.f32 %v1510, %v944
    %v1690 = vmul.f32 %v1513, %v944
    %v1691 = vpack.c.bf16 %v1686, %v1685
    %v1692 = vpack.c.bf16 %v1688, %v1687
    %v1693 = vpack.c.bf16 %v1690, %v1689
    %v1694 = vmul.f32 %v1231, %v949
    %v1695 = vmul.f32 %v1232, %v949
    %v1696 = vmul.f32 %v1233, %v949
    %v1697 = vmul.f32 %v1234, %v949
    %v1698 = vmul.f32 %v1235, %v949
    %v1699 = vmul.f32 %v1236, %v949
    %v1700 = vpack.c.bf16 %v1695, %v1694
    %v1701 = vpack.c.bf16 %v1697, %v1696
    %v1702 = vpack.c.bf16 %v1699, %v1698
    %v1704 = vsel %vm967, %v1700, 0
    %v1707 = vsel %vm967, %v1701, 0
    %v1710 = vsel %vm967, %v1702, 0
    %1712 = vmatprep.subr.bf16.mxu0 0
    %1713 = vmatpush1.bf16.xpose.msra.mxu0 %v1538
    %1714 = vmatprep.subr.bf16.mxu0 0
    %1715 = vmatpush1.bf16.xpose.msra.mxu0 %v1541
    %1716 = vmatprep.subr.bf16.mxu0 0
    %1717 = vmatpush1.bf16.xpose.msra.mxu0 %v1544
    %1718 = vmatprep.subr.bf16.mxu0 0
    %1719 = vmatpush1.bf16.xpose.msra.mxu0 0
    %1720 = vmatprep.subr.bf16.mxu0 0
    %1721 = vmatpush1.bf16.xpose.msra.mxu0 0
    %1722 = vmatprep.subr.bf16.mxu0 0
    %1723 = vmatpush1.bf16.xpose.msra.mxu0 0
    %1724 = vmatprep.subr.bf16.mxu0 0
    %1725 = vmatpush1.bf16.xpose.msra.mxu0 0
    %1726 = vmatprep.subr.bf16.mxu0 0
    %1727 = vmatpush1.bf16.xpose.msra.mxu0 0
    %1728 = vmatprep.subr.bf16.mxu0 0
    %1729 = vmatpush1.bf16.xpose.msra.mxu0 0
    %1730 = vmatprep.subr.bf16.mxu0 0
    %1731 = vmatpush1.bf16.xpose.msra.mxu0 0
    %1732 = vmatprep.subr.bf16.mxu0 0
    %1733 = vmatpush1.bf16.xpose.msra.mxu0 0
    %1734 = vmatprep.subr.bf16.mxu0 0
    %1735 = vmatpush1.bf16.xpose.msra.mxu0 0
    %1736 = vmatprep.subr.bf16.mxu0 0
    %1737 = vmatpush1.bf16.xpose.msra.mxu0 0
    %1738 = vmatprep.subr.bf16.mxu0 0
    %1739 = vmatpush1.bf16.xpose.msra.mxu0 0
    %1740 = vmatprep.subr.bf16.mxu0 0
    %1741 = vmatpush1.bf16.xpose.msra.mxu0 0
    %1742 = vmatprep.subr.bf16.mxu0 0
    %1743 = vmatpush1.bf16.xpose.msra.mxu0 0
    %1744 = vmatprep.mubr.bf16.mxu0 0
    %1745 = vmatmul.mubr.bf16.gmra.mrb[0].mxu0 %v1704
    %v1746 = vpop.f32.mrb[0].mxu0
    %v1747 = vadd.f32 0.0, %v1746
    %v1748 = vpop.f32.mrb[0].mxu0
    %v1749 = vpop.f32.mrb[0].mxu0
    %v1750 = vadd.f32 0.0, %v1749
    %v1751 = vpop.f32.mrb[0].mxu0
    %1752 = vmatprep.mubr.bf16.mxu0 0
    %1753 = vmatmul.mubr.bf16.gmra.mrb[0].mxu0 %v1707
    %v1754 = vpop.f32.mrb[0].mxu0
    %v1755 = vadd.f32 0.0, %v1754
    %v1756 = vpop.f32.mrb[0].mxu0
    %v1757 = vpop.f32.mrb[0].mxu0
    %v1758 = vadd.f32 0.0, %v1757
    %v1759 = vpop.f32.mrb[0].mxu0
    %1760 = vmatprep.mubr.bf16.mxu0 0
    %1761 = vmatmul.mubr.bf16.gmra.mrb[0].mxu0 %v1710
    %v1762 = vpop.f32.mrb[0].mxu0
    %v1763 = vadd.f32 0.0, %v1762
    %v1764 = vpop.f32.mrb[0].mxu0
    %v1765 = vpop.f32.mrb[0].mxu0
    %v1766 = vadd.f32 0.0, %v1765
    %v1767 = vpop.f32.mrb[0].mxu0
    %1768 = vdwg.mxu0
    %v1769 = vmul.f32 %v1747, 0.35355338
    %v1770 = vmul.f32 %v1750, 0.35355338
    %v1771 = vmul.f32 %v1755, 0.35355338
    %v1772 = vmul.f32 %v1758, 0.35355338
    %v1773 = vmul.f32 %v1763, 0.35355338
    %v1774 = vmul.f32 %v1766, 0.35355338
    %v1775 = vadd.f32 %v1769, %v934
    %v1776 = vadd.f32 %v1770, %v935
    %v1777 = vadd.f32 %v1771, %v936
    %v1778 = vadd.f32 %v1772, %v937
    %v1779 = vadd.f32 %v1773, %v938
    %v1780 = vadd.f32 %v1774, %v939
    %v1781 = vsel %vm1615, %v1775, -inf
    %1782 = vmax.xlane.f32.xlu0 %v1781
    %v1783 = vpop.xlane.xlu0 %1782
    %v1784 = vsel %vm1615, %v1776, -inf
    %1785 = vmax.xlane.f32.xlu0 %v1784
    %v1786 = vpop.xlane.xlu0 %1785
    %v1787 = vsel %vm1615, %v1777, -inf
    %1788 = vmax.xlane.f32.xlu0 %v1787
    %v1789 = vpop.xlane.xlu0 %1788
    %v1790 = vsel %vm1615, %v1778, -inf
    %1791 = vmax.xlane.f32.xlu0 %v1790
    %v1792 = vpop.xlane.xlu0 %1791
    %v1793 = vsel %vm1615, %v1779, -inf
    %1794 = vmax.xlane.f32.xlu0 %v1793
    %v1795 = vpop.xlane.xlu0 %1794
    %v1796 = vsel %vm1615, %v1780, -inf
    %1797 = vmax.xlane.f32.xlu0 %v1796
    %v1798 = vpop.xlane.xlu0 %1797
    %v1799 = vsub.f32 %v1775, %v1783
    %v1800 = vsub.f32 %v1776, %v1786
    %v1801 = vsub.f32 %v1777, %v1789
    %v1802 = vsub.f32 %v1778, %v1792
    %v1803 = vsub.f32 %v1779, %v1795
    %v1804 = vsub.f32 %v1780, %v1798
    %v1805 = vmul.f32 %v1799, 1.442695
    %v1806 = vpow.pop %v1805
    %v1807 = vmul.f32 %v1800, 1.442695
    %v1808 = vpow.pop %v1807
    %v1809 = vmul.f32 %v1801, 1.442695
    %v1810 = vpow.pop %v1809
    %v1811 = vmul.f32 %v1802, 1.442695
    %v1812 = vpow.pop %v1811
    %v1813 = vmul.f32 %v1803, 1.442695
    %v1814 = vpow.pop %v1813
    %v1815 = vmul.f32 %v1804, 1.442695
    %v1816 = vpow.pop %v1815
    %v1817 = vsel %vm1615, %v1806, 0.0
    %1818 = vadd.xlane.f32.xlu0 %v1817
    %v1819 = vpop.xlane.xlu0 %1818
    %v1820 = vsel %vm1615, %v1808, 0.0
    %1821 = vadd.xlane.f32.xlu0 %v1820
    %v1822 = vpop.xlane.xlu0 %1821
    %v1823 = vsel %vm1615, %v1810, 0.0
    %1824 = vadd.xlane.f32.xlu0 %v1823
    %v1825 = vpop.xlane.xlu0 %1824
    %v1826 = vsel %vm1615, %v1812, 0.0
    %1827 = vadd.xlane.f32.xlu0 %v1826
    %v1828 = vpop.xlane.xlu0 %1827
    %v1829 = vsel %vm1615, %v1814, 0.0
    %1830 = vadd.xlane.f32.xlu0 %v1829
    %v1831 = vpop.xlane.xlu0 %1830
    %v1832 = vsel %vm1615, %v1816, 0.0
    %1833 = vadd.xlane.f32.xlu0 %v1832
    %v1834 = vpop.xlane.xlu0 %1833
    %v1835 = vrcp.pop %v1819
    %v1836 = vrcp.pop %v1822
    %v1837 = vrcp.pop %v1825
    %v1838 = vrcp.pop %v1828
    %v1839 = vrcp.pop %v1831
    %v1840 = vrcp.pop %v1834
    %v1841 = vmul.f32 %v1806, %v1835
    %v1842 = vmul.f32 %v1808, %v1836
    %v1843 = vmul.f32 %v1810, %v1837
    %v1844 = vmul.f32 %v1812, %v1838
    %v1845 = vmul.f32 %v1814, %v1839
    %v1846 = vmul.f32 %v1816, %v1840
    %v1847 = vpack.c.bf16 %v1842, %v1841
    %v1848 = vpack.c.bf16 %v1844, %v1843
    %v1849 = vpack.c.bf16 %v1846, %v1845
    %v1850 = vmul.f32 %v1494, %v949
    %v1851 = vmul.f32 %v1497, %v949
    %v1852 = vmul.f32 %v1502, %v949
    %v1853 = vmul.f32 %v1505, %v949
    %v1854 = vmul.f32 %v1510, %v949
    %v1855 = vmul.f32 %v1513, %v949
    %v1856 = vpack.c.bf16 %v1851, %v1850
    %v1857 = vpack.c.bf16 %v1853, %v1852
    %v1858 = vpack.c.bf16 %v1855, %v1854
    %v1860 = vsel %vm1615, %v1847, 0
    %v1863 = vsel %vm1615, %v1848, 0
    %v1866 = vsel %vm1615, %v1849, 0
    %1868 = vmatprep.subr.bf16.mxu0 0
    %1869 = vmatpush1.bf16.msra.mxu0 %v1856
    %1870 = vmatprep.subr.bf16.mxu0 0
    %1871 = vmatpush1.bf16.msra.mxu0 %v1857
    %1872 = vmatprep.subr.bf16.mxu0 0
    %1873 = vmatpush1.bf16.msra.mxu0 %v1858
    %1874 = vmatprep.subr.bf16.mxu0 0
    %1875 = vmatpush1.bf16.msra.mxu0 0
    %1876 = vmatprep.subr.bf16.mxu0 0
    %1877 = vmatpush1.bf16.msra.mxu0 0
    %1878 = vmatprep.subr.bf16.mxu0 0
    %1879 = vmatpush1.bf16.msra.mxu0 0
    %1880 = vmatprep.subr.bf16.mxu0 0
    %1881 = vmatpush1.bf16.msra.mxu0 0
    %1882 = vmatprep.subr.bf16.mxu0 0
    %1883 = vmatpush1.bf16.msra.mxu0 0
    %1884 = vmatprep.subr.bf16.mxu0 0
    %1885 = vmatpush1.bf16.msra.mxu0 0
    %1886 = vmatprep.subr.bf16.mxu0 0
    %1887 = vmatpush1.bf16.msra.mxu0 0
    %1888 = vmatprep.subr.bf16.mxu0 0
    %1889 = vmatpush1.bf16.msra.mxu0 0
    %1890 = vmatprep.subr.bf16.mxu0 0
    %1891 = vmatpush1.bf16.msra.mxu0 0
    %1892 = vmatprep.subr.bf16.mxu0 0
    %1893 = vmatpush1.bf16.msra.mxu0 0
    %1894 = vmatprep.subr.bf16.mxu0 0
    %1895 = vmatpush1.bf16.msra.mxu0 0
    %1896 = vmatprep.subr.bf16.mxu0 0
    %1897 = vmatpush1.bf16.msra.mxu0 0
    %1898 = vmatprep.subr.bf16.mxu0 0
    %1899 = vmatpush1.bf16.msra.mxu0 0
    %1900 = vmatprep.mubr.bf16.mxu0 0
    %1901 = vmatmul.mubr.bf16.gmra.mrb[0].mxu0 %v1860
    %v1902 = vpop.f32.mrb[0].mxu0
    %v1903 = vadd.f32 0.0, %v1902
    %v1904 = vpop.f32.mrb[0].mxu0
    %v1905 = vpop.f32.mrb[0].mxu0
    %v1906 = vadd.f32 0.0, %v1905
    %v1907 = vpop.f32.mrb[0].mxu0
    %1908 = vmatprep.mubr.bf16.mxu0 0
    %1909 = vmatmul.mubr.bf16.gmra.mrb[0].mxu0 %v1863
    %v1910 = vpop.f32.mrb[0].mxu0
    %v1911 = vadd.f32 0.0, %v1910
    %v1912 = vpop.f32.mrb[0].mxu0
    %v1913 = vpop.f32.mrb[0].mxu0
    %v1914 = vadd.f32 0.0, %v1913
    %v1915 = vpop.f32.mrb[0].mxu0
    %1916 = vmatprep.mubr.bf16.mxu0 0
    %1917 = vmatmul.mubr.bf16.gmra.mrb[0].mxu0 %v1866
    %v1918 = vpop.f32.mrb[0].mxu0
    %v1919 = vadd.f32 0.0, %v1918
    %v1920 = vpop.f32.mrb[0].mxu0
    %v1921 = vpop.f32.mrb[0].mxu0
    %v1922 = vadd.f32 0.0, %v1921
    %v1923 = vpop.f32.mrb[0].mxu0
    %1924 = vdwg.mxu0
    %v1926 = vsel %vm1615, %v1682, 0
    %v1929 = vsel %vm1615, %v1683, 0
    %v1932 = vsel %vm1615, %v1684, 0
    %1934 = vmatprep.subr.bf16.mxu0 0
    %1935 = vmatpush1.bf16.msra.mxu0 %v1691
    %1936 = vmatprep.subr.bf16.mxu0 0
    %1937 = vmatpush1.bf16.msra.mxu0 %v1692
    %1938 = vmatprep.subr.bf16.mxu0 0
    %1939 = vmatpush1.bf16.msra.mxu0 %v1693
    %1940 = vmatprep.subr.bf16.mxu0 0
    %1941 = vmatpush1.bf16.msra.mxu0 0
    %1942 = vmatprep.subr.bf16.mxu0 0
    %1943 = vmatpush1.bf16.msra.mxu0 0
    %1944 = vmatprep.subr.bf16.mxu0 0
    %1945 = vmatpush1.bf16.msra.mxu0 0
    %1946 = vmatprep.subr.bf16.mxu0 0
    %1947 = vmatpush1.bf16.msra.mxu0 0
    %1948 = vmatprep.subr.bf16.mxu0 0
    %1949 = vmatpush1.bf16.msra.mxu0 0
    %1950 = vmatprep.subr.bf16.mxu0 0
    %1951 = vmatpush1.bf16.msra.mxu0 0
    %1952 = vmatprep.subr.bf16.mxu0 0
    %1953 = vmatpush1.bf16.msra.mxu0 0
    %1954 = vmatprep.subr.bf16.mxu0 0
    %1955 = vmatpush1.bf16.msra.mxu0 0
    %1956 = vmatprep.subr.bf16.mxu0 0
    %1957 = vmatpush1.bf16.msra.mxu0 0
    %1958 = vmatprep.subr.bf16.mxu0 0
    %1959 = vmatpush1.bf16.msra.mxu0 0
    %1960 = vmatprep.subr.bf16.mxu0 0
    %1961 = vmatpush1.bf16.msra.mxu0 0
    %1962 = vmatprep.subr.bf16.mxu0 0
    %1963 = vmatpush1.bf16.msra.mxu0 0
    %1964 = vmatprep.subr.bf16.mxu0 0
    %1965 = vmatpush1.bf16.msra.mxu0 0
    %1966 = vmatprep.mubr.bf16.mxu0 0
    %1967 = vmatmul.mubr.bf16.gmra.mrb[0].mxu0 %v1926
    %v1968 = vpop.f32.mrb[0].mxu0
    %v1969 = vadd.f32 %v1903, %v1968
    %v1970 = vpop.f32.mrb[0].mxu0
    %v1971 = vpop.f32.mrb[0].mxu0
    %v1972 = vadd.f32 %v1906, %v1971
    %v1973 = vpop.f32.mrb[0].mxu0
    %1974 = vmatprep.mubr.bf16.mxu0 0
    %1975 = vmatmul.mubr.bf16.gmra.mrb[0].mxu0 %v1929
    %v1976 = vpop.f32.mrb[0].mxu0
    %v1977 = vadd.f32 %v1911, %v1976
    %v1978 = vpop.f32.mrb[0].mxu0
    %v1979 = vpop.f32.mrb[0].mxu0
    %v1980 = vadd.f32 %v1914, %v1979
    %v1981 = vpop.f32.mrb[0].mxu0
    %1982 = vmatprep.mubr.bf16.mxu0 0
    %1983 = vmatmul.mubr.bf16.gmra.mrb[0].mxu0 %v1932
    %v1984 = vpop.f32.mrb[0].mxu0
    %v1985 = vadd.f32 %v1919, %v1984
    %v1986 = vpop.f32.mrb[0].mxu0
    %v1987 = vpop.f32.mrb[0].mxu0
    %v1988 = vadd.f32 %v1922, %v1987
    %v1989 = vpop.f32.mrb[0].mxu0
    %1990 = vdwg.mxu0
    %v1991 = vmul.f32 %v1231, %v954
    %v1992 = vmul.f32 %v1232, %v954
    %v1993 = vmul.f32 %v1233, %v954
    %v1994 = vmul.f32 %v1234, %v954
    %v1995 = vmul.f32 %v1235, %v954
    %v1996 = vmul.f32 %v1236, %v954
    %v1997 = vpack.c.bf16 %v1992, %v1991
    %v1998 = vpack.c.bf16 %v1994, %v1993
    %v1999 = vpack.c.bf16 %v1996, %v1995
    %v2001 = vsel %vm967, %v1997, 0
    %v2004 = vsel %vm967, %v1998, 0
    %v2007 = vsel %vm967, %v1999, 0
    %2009 = vmatprep.subr.bf16.mxu0 0
    %2010 = vmatpush1.bf16.xpose.msra.mxu0 %v1538
    %2011 = vmatprep.subr.bf16.mxu0 0
    %2012 = vmatpush1.bf16.xpose.msra.mxu0 %v1541
    %2013 = vmatprep.subr.bf16.mxu0 0
    %2014 = vmatpush1.bf16.xpose.msra.mxu0 %v1544
    %2015 = vmatprep.subr.bf16.mxu0 0
    %2016 = vmatpush1.bf16.xpose.msra.mxu0 0
    %2017 = vmatprep.subr.bf16.mxu0 0
    %2018 = vmatpush1.bf16.xpose.msra.mxu0 0
    %2019 = vmatprep.subr.bf16.mxu0 0
    %2020 = vmatpush1.bf16.xpose.msra.mxu0 0
    %2021 = vmatprep.subr.bf16.mxu0 0
    %2022 = vmatpush1.bf16.xpose.msra.mxu0 0
    %2023 = vmatprep.subr.bf16.mxu0 0
    %2024 = vmatpush1.bf16.xpose.msra.mxu0 0
    %2025 = vmatprep.subr.bf16.mxu0 0
    %2026 = vmatpush1.bf16.xpose.msra.mxu0 0
    %2027 = vmatprep.subr.bf16.mxu0 0
    %2028 = vmatpush1.bf16.xpose.msra.mxu0 0
    %2029 = vmatprep.subr.bf16.mxu0 0
    %2030 = vmatpush1.bf16.xpose.msra.mxu0 0
    %2031 = vmatprep.subr.bf16.mxu0 0
    %2032 = vmatpush1.bf16.xpose.msra.mxu0 0
    %2033 = vmatprep.subr.bf16.mxu0 0
    %2034 = vmatpush1.bf16.xpose.msra.mxu0 0
    %2035 = vmatprep.subr.bf16.mxu0 0
    %2036 = vmatpush1.bf16.xpose.msra.mxu0 0
    %2037 = vmatprep.subr.bf16.mxu0 0
    %2038 = vmatpush1.bf16.xpose.msra.mxu0 0
    %2039 = vmatprep.subr.bf16.mxu0 0
    %2040 = vmatpush1.bf16.xpose.msra.mxu0 0
    %2041 = vmatprep.mubr.bf16.mxu0 0
    %2042 = vmatmul.mubr.bf16.gmra.mrb[0].mxu0 %v2001
    %v2043 = vpop.f32.mrb[0].mxu0
    %v2044 = vadd.f32 0.0, %v2043
    %v2045 = vpop.f32.mrb[0].mxu0
    %v2046 = vpop.f32.mrb[0].mxu0
    %v2047 = vadd.f32 0.0, %v2046
    %v2048 = vpop.f32.mrb[0].mxu0
    %2049 = vmatprep.mubr.bf16.mxu0 0
    %2050 = vmatmul.mubr.bf16.gmra.mrb[0].mxu0 %v2004
    %v2051 = vpop.f32.mrb[0].mxu0
    %v2052 = vadd.f32 0.0, %v2051
    %v2053 = vpop.f32.mrb[0].mxu0
    %v2054 = vpop.f32.mrb[0].mxu0
    %v2055 = vadd.f32 0.0, %v2054
    %v2056 = vpop.f32.mrb[0].mxu0
    %2057 = vmatprep.mubr.bf16.mxu0 0
    %2058 = vmatmul.mubr.bf16.gmra.mrb[0].mxu0 %v2007
    %v2059 = vpop.f32.mrb[0].mxu0
    %v2060 = vadd.f32 0.0, %v2059
    %v2061 = vpop.f32.mrb[0].mxu0
    %v2062 = vpop.f32.mrb[0].mxu0
    %v2063 = vadd.f32 0.0, %v2062
    %v2064 = vpop.f32.mrb[0].mxu0
    %2065 = vdwg.mxu0
    %v2066 = vmul.f32 %v2044, 0.35355338
    %v2067 = vmul.f32 %v2047, 0.35355338
    %v2068 = vmul.f32 %v2052, 0.35355338
    %v2069 = vmul.f32 %v2055, 0.35355338
    %v2070 = vmul.f32 %v2060, 0.35355338
    %v2071 = vmul.f32 %v2063, 0.35355338
    %v2072 = vadd.f32 %v2066, %v934
    %v2073 = vadd.f32 %v2067, %v935
    %v2074 = vadd.f32 %v2068, %v936
    %v2075 = vadd.f32 %v2069, %v937
    %v2076 = vadd.f32 %v2070, %v938
    %v2077 = vadd.f32 %v2071, %v939
    %v2078 = vsel %vm1615, %v2072, -inf
    %2079 = vmax.xlane.f32.xlu0 %v2078
    %v2080 = vpop.xlane.xlu0 %2079
    %v2081 = vsel %vm1615, %v2073, -inf
    %2082 = vmax.xlane.f32.xlu0 %v2081
    %v2083 = vpop.xlane.xlu0 %2082
    %v2084 = vsel %vm1615, %v2074, -inf
    %2085 = vmax.xlane.f32.xlu0 %v2084
    %v2086 = vpop.xlane.xlu0 %2085
    %v2087 = vsel %vm1615, %v2075, -inf
    %2088 = vmax.xlane.f32.xlu0 %v2087
    %v2089 = vpop.xlane.xlu0 %2088
    %v2090 = vsel %vm1615, %v2076, -inf
    %2091 = vmax.xlane.f32.xlu0 %v2090
    %v2092 = vpop.xlane.xlu0 %2091
    %v2093 = vsel %vm1615, %v2077, -inf
    %2094 = vmax.xlane.f32.xlu0 %v2093
    %v2095 = vpop.xlane.xlu0 %2094
    %v2096 = vsub.f32 %v2072, %v2080
    %v2097 = vsub.f32 %v2073, %v2083
    %v2098 = vsub.f32 %v2074, %v2086
    %v2099 = vsub.f32 %v2075, %v2089
    %v2100 = vsub.f32 %v2076, %v2092
    %v2101 = vsub.f32 %v2077, %v2095
    %v2102 = vmul.f32 %v2096, 1.442695
    %v2103 = vpow.pop %v2102
    %v2104 = vmul.f32 %v2097, 1.442695
    %v2105 = vpow.pop %v2104
    %v2106 = vmul.f32 %v2098, 1.442695
    %v2107 = vpow.pop %v2106
    %v2108 = vmul.f32 %v2099, 1.442695
    %v2109 = vpow.pop %v2108
    %v2110 = vmul.f32 %v2100, 1.442695
    %v2111 = vpow.pop %v2110
    %v2112 = vmul.f32 %v2101, 1.442695
    %v2113 = vpow.pop %v2112
    %v2114 = vsel %vm1615, %v2103, 0.0
    %2115 = vadd.xlane.f32.xlu0 %v2114
    %v2116 = vpop.xlane.xlu0 %2115
    %v2117 = vsel %vm1615, %v2105, 0.0
    %2118 = vadd.xlane.f32.xlu0 %v2117
    %v2119 = vpop.xlane.xlu0 %2118
    %v2120 = vsel %vm1615, %v2107, 0.0
    %2121 = vadd.xlane.f32.xlu0 %v2120
    %v2122 = vpop.xlane.xlu0 %2121
    %v2123 = vsel %vm1615, %v2109, 0.0
    %2124 = vadd.xlane.f32.xlu0 %v2123
    %v2125 = vpop.xlane.xlu0 %2124
    %v2126 = vsel %vm1615, %v2111, 0.0
    %2127 = vadd.xlane.f32.xlu0 %v2126
    %v2128 = vpop.xlane.xlu0 %2127
    %v2129 = vsel %vm1615, %v2113, 0.0
    %2130 = vadd.xlane.f32.xlu0 %v2129
    %v2131 = vpop.xlane.xlu0 %2130
    %v2132 = vrcp.pop %v2116
    %v2133 = vrcp.pop %v2119
    %v2134 = vrcp.pop %v2122
    %v2135 = vrcp.pop %v2125
    %v2136 = vrcp.pop %v2128
    %v2137 = vrcp.pop %v2131
    %v2138 = vmul.f32 %v2103, %v2132
    %v2139 = vmul.f32 %v2105, %v2133
    %v2140 = vmul.f32 %v2107, %v2134
    %v2141 = vmul.f32 %v2109, %v2135
    %v2142 = vmul.f32 %v2111, %v2136
    %v2143 = vmul.f32 %v2113, %v2137
    %v2144 = vpack.c.bf16 %v2139, %v2138
    %v2145 = vpack.c.bf16 %v2141, %v2140
    %v2146 = vpack.c.bf16 %v2143, %v2142
    %v2147 = vmul.f32 %v1494, %v954
    %v2148 = vmul.f32 %v1497, %v954
    %v2149 = vmul.f32 %v1502, %v954
    %v2150 = vmul.f32 %v1505, %v954
    %v2151 = vmul.f32 %v1510, %v954
    %v2152 = vmul.f32 %v1513, %v954
    %v2153 = vpack.c.bf16 %v2148, %v2147
    %v2154 = vpack.c.bf16 %v2150, %v2149
    %v2155 = vpack.c.bf16 %v2152, %v2151
    %v2157 = vsel %vm1615, %v2144, 0
    %v2160 = vsel %vm1615, %v2145, 0
    %v2163 = vsel %vm1615, %v2146, 0
    %2165 = vmatprep.subr.bf16.mxu0 0
    %2166 = vmatpush1.bf16.msra.mxu0 %v2153
    %2167 = vmatprep.subr.bf16.mxu0 0
    %2168 = vmatpush1.bf16.msra.mxu0 %v2154
    %2169 = vmatprep.subr.bf16.mxu0 0
    %2170 = vmatpush1.bf16.msra.mxu0 %v2155
    %2171 = vmatprep.subr.bf16.mxu0 0
    %2172 = vmatpush1.bf16.msra.mxu0 0
    %2173 = vmatprep.subr.bf16.mxu0 0
    %2174 = vmatpush1.bf16.msra.mxu0 0
    %2175 = vmatprep.subr.bf16.mxu0 0
    %2176 = vmatpush1.bf16.msra.mxu0 0
    %2177 = vmatprep.subr.bf16.mxu0 0
    %2178 = vmatpush1.bf16.msra.mxu0 0
    %2179 = vmatprep.subr.bf16.mxu0 0
    %2180 = vmatpush1.bf16.msra.mxu0 0
    %2181 = vmatprep.subr.bf16.mxu0 0
    %2182 = vmatpush1.bf16.msra.mxu0 0
    %2183 = vmatprep.subr.bf16.mxu0 0
    %2184 = vmatpush1.bf16.msra.mxu0 0
    %2185 = vmatprep.subr.bf16.mxu0 0
    %2186 = vmatpush1.bf16.msra.mxu0 0
    %2187 = vmatprep.subr.bf16.mxu0 0
    %2188 = vmatpush1.bf16.msra.mxu0 0
    %2189 = vmatprep.subr.bf16.mxu0 0
    %2190 = vmatpush1.bf16.msra.mxu0 0
    %2191 = vmatprep.subr.bf16.mxu0 0
    %2192 = vmatpush1.bf16.msra.mxu0 0
    %2193 = vmatprep.subr.bf16.mxu0 0
    %2194 = vmatpush1.bf16.msra.mxu0 0
    %2195 = vmatprep.subr.bf16.mxu0 0
    %2196 = vmatpush1.bf16.msra.mxu0 0
    %2197 = vmatprep.mubr.bf16.mxu0 0
    %2198 = vmatmul.mubr.bf16.gmra.mrb[0].mxu0 %v2157
    %v2199 = vpop.f32.mrb[0].mxu0
    %v2200 = vadd.f32 0.0, %v2199
    %v2201 = vpop.f32.mrb[0].mxu0
    %v2202 = vpop.f32.mrb[0].mxu0
    %v2203 = vadd.f32 0.0, %v2202
    %v2204 = vpop.f32.mrb[0].mxu0
    %2205 = vmatprep.mubr.bf16.mxu0 0
    %2206 = vmatmul.mubr.bf16.gmra.mrb[0].mxu0 %v2160
    %v2207 = vpop.f32.mrb[0].mxu0
    %v2208 = vadd.f32 0.0, %v2207
    %v2209 = vpop.f32.mrb[0].mxu0
    %v2210 = vpop.f32.mrb[0].mxu0
    %v2211 = vadd.f32 0.0, %v2210
    %v2212 = vpop.f32.mrb[0].mxu0
    %2213 = vmatprep.mubr.bf16.mxu0 0
    %2214 = vmatmul.mubr.bf16.gmra.mrb[0].mxu0 %v2163
    %v2215 = vpop.f32.mrb[0].mxu0
    %v2216 = vadd.f32 0.0, %v2215
    %v2217 = vpop.f32.mrb[0].mxu0
    %v2218 = vpop.f32.mrb[0].mxu0
    %v2219 = vadd.f32 0.0, %v2218
    %v2220 = vpop.f32.mrb[0].mxu0
    %2221 = vdwg.mxu0
    %v2222 = vadd.f32 %v1969, %v2200
    %v2223 = vadd.f32 %v1972, %v2203
    %v2224 = vadd.f32 %v1977, %v2208
    %v2225 = vadd.f32 %v1980, %v2211
    %v2226 = vadd.f32 %v1985, %v2216
    %v2227 = vadd.f32 %v1988, %v2219
    %v2228 = vmul.f32 %v1231, %v959
    %v2229 = vmul.f32 %v1232, %v959
    %v2230 = vmul.f32 %v1233, %v959
    %v2231 = vmul.f32 %v1234, %v959
    %v2232 = vmul.f32 %v1235, %v959
    %v2233 = vmul.f32 %v1236, %v959
    %v2234 = vpack.c.bf16 %v2229, %v2228
    %v2235 = vpack.c.bf16 %v2231, %v2230
    %v2236 = vpack.c.bf16 %v2233, %v2232
    %v2238 = vsel %vm967, %v2234, 0
    %v2241 = vsel %vm967, %v2235, 0
    %v2244 = vsel %vm967, %v2236, 0
    %2246 = vmatprep.subr.bf16.mxu0 0
    %2247 = vmatpush1.bf16.xpose.msra.mxu0 %v1538
    %2248 = vmatprep.subr.bf16.mxu0 0
    %2249 = vmatpush1.bf16.xpose.msra.mxu0 %v1541
    %2250 = vmatprep.subr.bf16.mxu0 0
    %2251 = vmatpush1.bf16.xpose.msra.mxu0 %v1544
    %2252 = vmatprep.subr.bf16.mxu0 0
    %2253 = vmatpush1.bf16.xpose.msra.mxu0 0
    %2254 = vmatprep.subr.bf16.mxu0 0
    %2255 = vmatpush1.bf16.xpose.msra.mxu0 0
    %2256 = vmatprep.subr.bf16.mxu0 0
    %2257 = vmatpush1.bf16.xpose.msra.mxu0 0
    %2258 = vmatprep.subr.bf16.mxu0 0
    %2259 = vmatpush1.bf16.xpose.msra.mxu0 0
    %2260 = vmatprep.subr.bf16.mxu0 0
    %2261 = vmatpush1.bf16.xpose.msra.mxu0 0
    %2262 = vmatprep.subr.bf16.mxu0 0
    %2263 = vmatpush1.bf16.xpose.msra.mxu0 0
    %2264 = vmatprep.subr.bf16.mxu0 0
    %2265 = vmatpush1.bf16.xpose.msra.mxu0 0
    %2266 = vmatprep.subr.bf16.mxu0 0
    %2267 = vmatpush1.bf16.xpose.msra.mxu0 0
    %2268 = vmatprep.subr.bf16.mxu0 0
    %2269 = vmatpush1.bf16.xpose.msra.mxu0 0
    %2270 = vmatprep.subr.bf16.mxu0 0
    %2271 = vmatpush1.bf16.xpose.msra.mxu0 0
    %2272 = vmatprep.subr.bf16.mxu0 0
    %2273 = vmatpush1.bf16.xpose.msra.mxu0 0
    %2274 = vmatprep.subr.bf16.mxu0 0
    %2275 = vmatpush1.bf16.xpose.msra.mxu0 0
    %2276 = vmatprep.subr.bf16.mxu0 0
    %2277 = vmatpush1.bf16.xpose.msra.mxu0 0
    %2278 = vmatprep.mubr.bf16.mxu0 0
    %2279 = vmatmul.mubr.bf16.gmra.mrb[0].mxu0 %v2238
    %v2280 = vpop.f32.mrb[0].mxu0
    %v2281 = vadd.f32 0.0, %v2280
    %v2282 = vpop.f32.mrb[0].mxu0
    %v2283 = vpop.f32.mrb[0].mxu0
    %v2284 = vadd.f32 0.0, %v2283
    %v2285 = vpop.f32.mrb[0].mxu0
    %2286 = vmatprep.mubr.bf16.mxu0 0
    %2287 = vmatmul.mubr.bf16.gmra.mrb[0].mxu0 %v2241
    %v2288 = vpop.f32.mrb[0].mxu0
    %v2289 = vadd.f32 0.0, %v2288
    %v2290 = vpop.f32.mrb[0].mxu0
    %v2291 = vpop.f32.mrb[0].mxu0
    %v2292 = vadd.f32 0.0, %v2291
    %v2293 = vpop.f32.mrb[0].mxu0
    %2294 = vmatprep.mubr.bf16.mxu0 0
    %2295 = vmatmul.mubr.bf16.gmra.mrb[0].mxu0 %v2244
    %v2296 = vpop.f32.mrb[0].mxu0
    %v2297 = vadd.f32 0.0, %v2296
    %v2298 = vpop.f32.mrb[0].mxu0
    %v2299 = vpop.f32.mrb[0].mxu0
    %v2300 = vadd.f32 0.0, %v2299
    %v2301 = vpop.f32.mrb[0].mxu0
    %2302 = vdwg.mxu0
    %v2303 = vmul.f32 %v2281, 0.35355338
    %v2304 = vmul.f32 %v2284, 0.35355338
    %v2305 = vmul.f32 %v2289, 0.35355338
    %v2306 = vmul.f32 %v2292, 0.35355338
    %v2307 = vmul.f32 %v2297, 0.35355338
    %v2308 = vmul.f32 %v2300, 0.35355338
    %v2309 = vadd.f32 %v2303, %v934
    %v2310 = vadd.f32 %v2304, %v935
    %v2311 = vadd.f32 %v2305, %v936
    %v2312 = vadd.f32 %v2306, %v937
    %v2313 = vadd.f32 %v2307, %v938
    %v2314 = vadd.f32 %v2308, %v939
    %v2315 = vsel %vm1615, %v2309, -inf
    %2316 = vmax.xlane.f32.xlu0 %v2315
    %v2317 = vpop.xlane.xlu0 %2316
    %v2318 = vsel %vm1615, %v2310, -inf
    %2319 = vmax.xlane.f32.xlu0 %v2318
    %v2320 = vpop.xlane.xlu0 %2319
    %v2321 = vsel %vm1615, %v2311, -inf
    %2322 = vmax.xlane.f32.xlu0 %v2321
    %v2323 = vpop.xlane.xlu0 %2322
    %v2324 = vsel %vm1615, %v2312, -inf
    %2325 = vmax.xlane.f32.xlu0 %v2324
    %v2326 = vpop.xlane.xlu0 %2325
    %v2327 = vsel %vm1615, %v2313, -inf
    %2328 = vmax.xlane.f32.xlu0 %v2327
    %v2329 = vpop.xlane.xlu0 %2328
    %v2330 = vsel %vm1615, %v2314, -inf
    %2331 = vmax.xlane.f32.xlu0 %v2330
    %v2332 = vpop.xlane.xlu0 %2331
    %v2333 = vsub.f32 %v2309, %v2317
    %v2334 = vsub.f32 %v2310, %v2320
    %v2335 = vsub.f32 %v2311, %v2323
    %v2336 = vsub.f32 %v2312, %v2326
    %v2337 = vsub.f32 %v2313, %v2329
    %v2338 = vsub.f32 %v2314, %v2332
    %v2339 = vmul.f32 %v2333, 1.442695
    %v2340 = vpow.pop %v2339
    %v2341 = vmul.f32 %v2334, 1.442695
    %v2342 = vpow.pop %v2341
    %v2343 = vmul.f32 %v2335, 1.442695
    %v2344 = vpow.pop %v2343
    %v2345 = vmul.f32 %v2336, 1.442695
    %v2346 = vpow.pop %v2345
    %v2347 = vmul.f32 %v2337, 1.442695
    %v2348 = vpow.pop %v2347
    %v2349 = vmul.f32 %v2338, 1.442695
    %v2350 = vpow.pop %v2349
    %v2351 = vsel %vm1615, %v2340, 0.0
    %2352 = vadd.xlane.f32.xlu0 %v2351
    %v2353 = vpop.xlane.xlu0 %2352
    %v2354 = vsel %vm1615, %v2342, 0.0
    %2355 = vadd.xlane.f32.xlu0 %v2354
    %v2356 = vpop.xlane.xlu0 %2355
    %v2357 = vsel %vm1615, %v2344, 0.0
    %2358 = vadd.xlane.f32.xlu0 %v2357
    %v2359 = vpop.xlane.xlu0 %2358
    %v2360 = vsel %vm1615, %v2346, 0.0
    %2361 = vadd.xlane.f32.xlu0 %v2360
    %v2362 = vpop.xlane.xlu0 %2361
    %v2363 = vsel %vm1615, %v2348, 0.0
    %2364 = vadd.xlane.f32.xlu0 %v2363
    %v2365 = vpop.xlane.xlu0 %2364
    %v2366 = vsel %vm1615, %v2350, 0.0
    %2367 = vadd.xlane.f32.xlu0 %v2366
    %v2368 = vpop.xlane.xlu0 %2367
    %v2369 = vrcp.pop %v2353
    %v2370 = vrcp.pop %v2356
    %v2371 = vrcp.pop %v2359
    %v2372 = vrcp.pop %v2362
    %v2373 = vrcp.pop %v2365
    %v2374 = vrcp.pop %v2368
    %v2375 = vmul.f32 %v2340, %v2369
    %v2376 = vmul.f32 %v2342, %v2370
    %v2377 = vmul.f32 %v2344, %v2371
    %v2378 = vmul.f32 %v2346, %v2372
    %v2379 = vmul.f32 %v2348, %v2373
    %v2380 = vmul.f32 %v2350, %v2374
    %v2381 = vpack.c.bf16 %v2376, %v2375
    %v2382 = vpack.c.bf16 %v2378, %v2377
    %v2383 = vpack.c.bf16 %v2380, %v2379
    %v2384 = vmul.f32 %v1494, %v959
    %v2385 = vmul.f32 %v1497, %v959
    %v2386 = vmul.f32 %v1502, %v959
    %v2387 = vmul.f32 %v1505, %v959
    %v2388 = vmul.f32 %v1510, %v959
    %v2389 = vmul.f32 %v1513, %v959
    %v2390 = vpack.c.bf16 %v2385, %v2384
    %v2391 = vpack.c.bf16 %v2387, %v2386
    %v2392 = vpack.c.bf16 %v2389, %v2388
    %v2394 = vsel %vm1615, %v2381, 0
    %v2397 = vsel %vm1615, %v2382, 0
    %v2400 = vsel %vm1615, %v2383, 0
    %2402 = vmatprep.subr.bf16.mxu0 0
    %2403 = vmatpush1.bf16.msra.mxu0 %v2390
    %2404 = vmatprep.subr.bf16.mxu0 0
    %2405 = vmatpush1.bf16.msra.mxu0 %v2391
    %2406 = vmatprep.subr.bf16.mxu0 0
    %2407 = vmatpush1.bf16.msra.mxu0 %v2392
    %2408 = vmatprep.subr.bf16.mxu0 0
    %2409 = vmatpush1.bf16.msra.mxu0 0
    %2410 = vmatprep.subr.bf16.mxu0 0
    %2411 = vmatpush1.bf16.msra.mxu0 0
    %2412 = vmatprep.subr.bf16.mxu0 0
    %2413 = vmatpush1.bf16.msra.mxu0 0
    %2414 = vmatprep.subr.bf16.mxu0 0
    %2415 = vmatpush1.bf16.msra.mxu0 0
    %2416 = vmatprep.subr.bf16.mxu0 0
    %2417 = vmatpush1.bf16.msra.mxu0 0
    %2418 = vmatprep.subr.bf16.mxu0 0
    %2419 = vmatpush1.bf16.msra.mxu0 0
    %2420 = vmatprep.subr.bf16.mxu0 0
    %2421 = vmatpush1.bf16.msra.mxu0 0
    %2422 = vmatprep.subr.bf16.mxu0 0
    %2423 = vmatpush1.bf16.msra.mxu0 0
    %2424 = vmatprep.subr.bf16.mxu0 0
    %2425 = vmatpush1.bf16.msra.mxu0 0
    %2426 = vmatprep.subr.bf16.mxu0 0
    %2427 = vmatpush1.bf16.msra.mxu0 0
    %2428 = vmatprep.subr.bf16.mxu0 0
    %2429 = vmatpush1.bf16.msra.mxu0 0
    %2430 = vmatprep.subr.bf16.mxu0 0
    %2431 = vmatpush1.bf16.msra.mxu0 0
    %2432 = vmatprep.subr.bf16.mxu0 0
    %2433 = vmatpush1.bf16.msra.mxu0 0
    %2434 = vmatprep.mubr.bf16.mxu0 0
    %2435 = vmatmul.mubr.bf16.gmra.mrb[0].mxu0 %v2394
    %v2436 = vpop.f32.mrb[0].mxu0
    %v2437 = vadd.f32 0.0, %v2436
    %v2438 = vpop.f32.mrb[0].mxu0
    %v2439 = vpop.f32.mrb[0].mxu0
    %v2440 = vadd.f32 0.0, %v2439
    %v2441 = vpop.f32.mrb[0].mxu0
    %2442 = vmatprep.mubr.bf16.mxu0 0
    %2443 = vmatmul.mubr.bf16.gmra.mrb[0].mxu0 %v2397
    %v2444 = vpop.f32.mrb[0].mxu0
    %v2445 = vadd.f32 0.0, %v2444
    %v2446 = vpop.f32.mrb[0].mxu0
    %v2447 = vpop.f32.mrb[0].mxu0
    %v2448 = vadd.f32 0.0, %v2447
    %v2449 = vpop.f32.mrb[0].mxu0
    %2450 = vmatprep.mubr.bf16.mxu0 0
    %2451 = vmatmul.mubr.bf16.gmra.mrb[0].mxu0 %v2400
    %v2452 = vpop.f32.mrb[0].mxu0
    %v2453 = vadd.f32 0.0, %v2452
    %v2454 = vpop.f32.mrb[0].mxu0
    %v2455 = vpop.f32.mrb[0].mxu0
    %v2456 = vadd.f32 0.0, %v2455
    %v2457 = vpop.f32.mrb[0].mxu0
    %2458 = vdwg.mxu0
    %v2459 = vadd.f32 %v2222, %v2437
    %v2460 = vadd.f32 %v2223, %v2440
    %v2461 = vadd.f32 %v2224, %v2445
    %v2462 = vadd.f32 %v2225, %v2448
    %v2463 = vadd.f32 %v2226, %v2453
    %v2464 = vadd.f32 %v2227, %v2456
    %v2465 = vpack.c.bf16 %v2460, %v2459
    %v2466 = vpack.c.bf16 %v2462, %v2461
    %v2467 = vpack.c.bf16 %v2464, %v2463
    %s2468 = scalar_lea.vmem [#allocation16], 48
    %v2469 = vld [vmem:[%s2468] sm:$0xf]
    %v2470 = vld [vmem:[%s2468 + $0x4] sm:$0xf]
    %v2471 = vld [vmem:[%s2468 + $0x8] sm:$0xf]
    %v2472 = vld [vmem:[%s2468 + $0xc] sm:$0xf]
    %v2477 = vunpack.c.l.b16 %v2469
    %v2478 = vunpack.c.l.b16 %v2470
    %v2479 = vunpack.c.l.b16 %v2471
    %v2480 = vunpack.c.l.b16 %v2472
    %v2481 = vpack.c.b16 %v2478, %v2477
    %v2482 = vpack.c.b16 %v2480, %v2479
    %v2486 = vsel %vm967, %v2465, 0
    %v2489 = vsel %vm967, %v2466, 0
    %v2492 = vsel %vm967, %v2467, 0
    %2494 = vmatprep.subr.bf16.mxu0 0
    %2495 = vmatpush1.bf16.msra.mxu0 %v2481
    %2496 = vmatprep.subr.bf16.mxu0 0
    %2497 = vmatpush1.bf16.msra.mxu0 %v2482
    %2498 = vmatprep.subr.bf16.mxu0 0
    %2499 = vmatpush1.bf16.msra.mxu0 0
    %2500 = vmatprep.subr.bf16.mxu0 0
    %2501 = vmatpush1.bf16.msra.mxu0 0
    %2502 = vmatprep.subr.bf16.mxu0 0
    %2503 = vmatpush1.bf16.msra.mxu0 0
    %2504 = vmatprep.subr.bf16.mxu0 0
    %2505 = vmatpush1.bf16.msra.mxu0 0
    %2506 = vmatprep.subr.bf16.mxu0 0
    %2507 = vmatpush1.bf16.msra.mxu0 0
    %2508 = vmatprep.subr.bf16.mxu0 0
    %2509 = vmatpush1.bf16.msra.mxu0 0
    %2510 = vmatprep.subr.bf16.mxu0 0
    %2511 = vmatpush1.bf16.msra.mxu0 0
    %2512 = vmatprep.subr.bf16.mxu0 0
    %2513 = vmatpush1.bf16.msra.mxu0 0
    %2514 = vmatprep.subr.bf16.mxu0 0
    %2515 = vmatpush1.bf16.msra.mxu0 0
    %2516 = vmatprep.subr.bf16.mxu0 0
    %2517 = vmatpush1.bf16.msra.mxu0 0
    %2518 = vmatprep.subr.bf16.mxu0 0
    %2519 = vmatpush1.bf16.msra.mxu0 0
    %2520 = vmatprep.subr.bf16.mxu0 0
    %2521 = vmatpush1.bf16.msra.mxu0 0
    %2522 = vmatprep.subr.bf16.mxu0 0
    %2523 = vmatpush1.bf16.msra.mxu0 0
    %2524 = vmatprep.subr.bf16.mxu0 0
    %2525 = vmatpush1.bf16.msra.mxu0 0
    %2526 = vmatprep.mubr.bf16.mxu0 0
    %2527 = vmatmul.mubr.bf16.gmra.mrb[0].mxu0 %v2486
    %v2528 = vpop.f32.mrb[0].mxu0
    %v2529 = vadd.f32 0.0, %v2528
    %v2530 = vpop.f32.mrb[0].mxu0
    %v2531 = vpop.f32.mrb[0].mxu0
    %v2532 = vadd.f32 0.0, %v2531
    %v2533 = vpop.f32.mrb[0].mxu0
    %2534 = vmatprep.mubr.bf16.mxu0 0
    %2535 = vmatmul.mubr.bf16.gmra.mrb[0].mxu0 %v2489
    %v2536 = vpop.f32.mrb[0].mxu0
    %v2537 = vadd.f32 0.0, %v2536
    %v2538 = vpop.f32.mrb[0].mxu0
    %v2539 = vpop.f32.mrb[0].mxu0
    %v2540 = vadd.f32 0.0, %v2539
    %v2541 = vpop.f32.mrb[0].mxu0
    %2542 = vmatprep.mubr.bf16.mxu0 0
    %2543 = vmatmul.mubr.bf16.gmra.mrb[0].mxu0 %v2492
    %v2544 = vpop.f32.mrb[0].mxu0
    %v2545 = vadd.f32 0.0, %v2544
    %v2546 = vpop.f32.mrb[0].mxu0
    %v2547 = vpop.f32.mrb[0].mxu0
    %v2548 = vadd.f32 0.0, %v2547
    %v2549 = vpop.f32.mrb[0].mxu0
    %2550 = vdwg.mxu0
    %v2551 = vadd.f32 %v889, %v2529
    %v2552 = vadd.f32 %v894, %v2532
    %v2553 = vadd.f32 %v899, %v2537
    %v2554 = vadd.f32 %v904, %v2540
    %v2555 = vadd.f32 %v909, %v2545
    %v2556 = vadd.f32 %v914, %v2548
    %v2557 = vld [vmem:[#allocation15 + $0x4] sm:$0x1]
    %v2558 = vmul.f32 %v2551, %v2551
    %v2559 = vmul.f32 %v2552, %v2552
    %v2560 = vmul.f32 %v2553, %v2553
    %v2561 = vmul.f32 %v2554, %v2554
    %v2562 = vmul.f32 %v2555, %v2555
    %v2563 = vmul.f32 %v2556, %v2556
    %v2564 = vsel %vm967, %v2558, 0.0
    %2565 = vadd.xlane.f32.xlu0 %v2564
    %v2566 = vpop.xlane.xlu0 %2565
    %v2567 = vsel %vm967, %v2559, 0.0
    %2568 = vadd.xlane.f32.xlu0 %v2567
    %v2569 = vpop.xlane.xlu0 %2568
    %v2570 = vsel %vm967, %v2560, 0.0
    %2571 = vadd.xlane.f32.xlu0 %v2570
    %v2572 = vpop.xlane.xlu0 %2571
    %v2573 = vsel %vm967, %v2561, 0.0
    %2574 = vadd.xlane.f32.xlu0 %v2573
    %v2575 = vpop.xlane.xlu0 %2574
    %v2576 = vsel %vm967, %v2562, 0.0
    %2577 = vadd.xlane.f32.xlu0 %v2576
    %v2578 = vpop.xlane.xlu0 %2577
    %v2579 = vsel %vm967, %v2563, 0.0
    %2580 = vadd.xlane.f32.xlu0 %v2579
    %v2581 = vpop.xlane.xlu0 %2580
    %v2582 = vmul.f32 %v2566, %v986
    %v2583 = vmul.f32 %v2569, %v986
    %v2584 = vmul.f32 %v2572, %v986
    %v2585 = vmul.f32 %v2575, %v986
    %v2586 = vmul.f32 %v2578, %v986
    %v2587 = vmul.f32 %v2581, %v986
    %v2588 = vadd.f32 %v2582, 1e-05
    %v2589 = vadd.f32 %v2583, 1e-05
    %v2590 = vadd.f32 %v2584, 1e-05
    %v2591 = vadd.f32 %v2585, 1e-05
    %v2592 = vadd.f32 %v2586, 1e-05
    %v2593 = vadd.f32 %v2587, 1e-05
    %v2594 = vrsqrt.pop %v2588
    %v2595 = vrsqrt.pop %v2589
    %v2596 = vrsqrt.pop %v2590
    %v2597 = vrsqrt.pop %v2591
    %v2598 = vrsqrt.pop %v2592
    %v2599 = vrsqrt.pop %v2593
    %v2600 = vmul.f32 %v2551, %v2594
    %v2601 = vmul.f32 %v2552, %v2595
    %v2602 = vmul.f32 %v2553, %v2596
    %v2603 = vmul.f32 %v2554, %v2597
    %v2604 = vmul.f32 %v2555, %v2598
    %v2605 = vmul.f32 %v2556, %v2599
    %v2606 = vlaneseq
    %v2607 = vshrl.u32 %v2606, 7
    %v2608 = vsub.s32 0, %v2607
    %v2609 = vrot.slane %v2557, %v2608
    %v2610 = vmul.f32 %v2600, %v2609
    %v2611 = vmul.f32 %v2601, %v2609
    %v2612 = vmul.f32 %v2602, %v2609
    %v2613 = vmul.f32 %v2603, %v2609
    %v2614 = vmul.f32 %v2604, %v2609
    %v2615 = vmul.f32 %v2605, %v2609
    %v2616 = vpack.c.bf16 %v2611, %v2610
    %v2617 = vpack.c.bf16 %v2613, %v2612
    %v2618 = vpack.c.bf16 %v2615, %v2614
    %v2619 = vld [vmem:[#allocation18] sm:$0xf]
    %v2620 = vld [vmem:[#allocation18 + $0x4] sm:$0xf]
    %v2621 = vld [vmem:[#allocation18 + $0x8] sm:$0xf]
    %v2622 = vld [vmem:[#allocation18 + $0xc] sm:$0xf]
    %v2627 = vunpack.c.l.b16 %v2619
    %v2628 = vunpack.c.l.b16 %v2620
    %v2629 = vunpack.c.l.b16 %v2621
    %v2630 = vunpack.c.l.b16 %v2622
    %v2631 = vpack.c.b16 %v2628, %v2627
    %v2632 = vpack.c.b16 %v2630, %v2629
    %v2636 = vsel %vm967, %v2616, 0
    %v2639 = vsel %vm967, %v2617, 0
    %v2642 = vsel %vm967, %v2618, 0
    %2644 = vmatprep.subr.bf16.mxu0 0
    %2645 = vmatpush1.bf16.msra.mxu0 %v2631
    %2646 = vmatprep.subr.bf16.mxu0 0
    %2647 = vmatpush1.bf16.msra.mxu0 %v2632
    %2648 = vmatprep.subr.bf16.mxu0 0
    %2649 = vmatpush1.bf16.msra.mxu0 0
    %2650 = vmatprep.subr.bf16.mxu0 0
    %2651 = vmatpush1.bf16.msra.mxu0 0
    %2652 = vmatprep.subr.bf16.mxu0 0
    %2653 = vmatpush1.bf16.msra.mxu0 0
    %2654 = vmatprep.subr.bf16.mxu0 0
    %2655 = vmatpush1.bf16.msra.mxu0 0
    %2656 = vmatprep.subr.bf16.mxu0 0
    %2657 = vmatpush1.bf16.msra.mxu0 0
    %2658 = vmatprep.subr.bf16.mxu0 0
    %2659 = vmatpush1.bf16.msra.mxu0 0
    %2660 = vmatprep.subr.bf16.mxu0 0
    %2661 = vmatpush1.bf16.msra.mxu0 0
    %2662 = vmatprep.subr.bf16.mxu0 0
    %2663 = vmatpush1.bf16.msra.mxu0 0
    %2664 = vmatprep.subr.bf16.mxu0 0
    %2665 = vmatpush1.bf16.msra.mxu0 0
    %2666 = vmatprep.subr.bf16.mxu0 0
    %2667 = vmatpush1.bf16.msra.mxu0 0
    %2668 = vmatprep.subr.bf16.mxu0 0
    %2669 = vmatpush1.bf16.msra.mxu0 0
    %2670 = vmatprep.subr.bf16.mxu0 0
    %2671 = vmatpush1.bf16.msra.mxu0 0
    %2672 = vmatprep.subr.bf16.mxu0 0
    %2673 = vmatpush1.bf16.msra.mxu0 0
    %2674 = vmatprep.subr.bf16.mxu0 0
    %2675 = vmatpush1.bf16.msra.mxu0 0
    %2676 = vmatprep.mubr.bf16.mxu0 0
    %2677 = vmatmul.mubr.bf16.gmra.mrb[0].mxu0 %v2636
    %v2678 = vpop.f32.mrb[0].mxu0
    %v2679 = vadd.f32 0.0, %v2678
    %v2680 = vpop.f32.mrb[0].mxu0
    %v2681 = vpop.f32.mrb[0].mxu0
    %v2682 = vadd.f32 0.0, %v2681
    %v2683 = vpop.f32.mrb[0].mxu0
    %2684 = vmatprep.mubr.bf16.mxu0 0
    %2685 = vmatmul.mubr.bf16.gmra.mrb[0].mxu0 %v2639
    %v2686 = vpop.f32.mrb[0].mxu0
    %v2687 = vadd.f32 0.0, %v2686
    %v2688 = vpop.f32.mrb[0].mxu0
    %v2689 = vpop.f32.mrb[0].mxu0
    %v2690 = vadd.f32 0.0, %v2689
    %v2691 = vpop.f32.mrb[0].mxu0
    %2692 = vmatprep.mubr.bf16.mxu0 0
    %2693 = vmatmul.mubr.bf16.gmra.mrb[0].mxu0 %v2642
    %v2694 = vpop.f32.mrb[0].mxu0
    %v2695 = vadd.f32 0.0, %v2694
    %v2696 = vpop.f32.mrb[0].mxu0
    %v2697 = vpop.f32.mrb[0].mxu0
    %v2698 = vadd.f32 0.0, %v2697
    %v2699 = vpop.f32.mrb[0].mxu0
    %2700 = vdwg.mxu0
    %s2701 = scalar_lea.vmem [#allocation18], 16
    %v2702 = vld [vmem:[%s2701] sm:$0xf]
    %v2703 = vld [vmem:[%s2701 + $0x4] sm:$0xf]
    %v2704 = vld [vmem:[%s2701 + $0x8] sm:$0xf]
    %v2705 = vld [vmem:[%s2701 + $0xc] sm:$0xf]
    %v2710 = vunpack.c.l.b16 %v2702
    %v2711 = vunpack.c.l.b16 %v2703
    %v2712 = vunpack.c.l.b16 %v2704
    %v2713 = vunpack.c.l.b16 %v2705
    %v2714 = vpack.c.b16 %v2711, %v2710
    %v2715 = vpack.c.b16 %v2713, %v2712
    %2718 = vmatprep.subr.bf16.mxu0 0
    %2719 = vmatpush1.bf16.msra.mxu0 %v2714
    %2720 = vmatprep.subr.bf16.mxu0 0
    %2721 = vmatpush1.bf16.msra.mxu0 %v2715
    %2722 = vmatprep.subr.bf16.mxu0 0
    %2723 = vmatpush1.bf16.msra.mxu0 0
    %2724 = vmatprep.subr.bf16.mxu0 0
    %2725 = vmatpush1.bf16.msra.mxu0 0
    %2726 = vmatprep.subr.bf16.mxu0 0
    %2727 = vmatpush1.bf16.msra.mxu0 0
    %2728 = vmatprep.subr.bf16.mxu0 0
    %2729 = vmatpush1.bf16.msra.mxu0 0
    %2730 = vmatprep.subr.bf16.mxu0 0
    %2731 = vmatpush1.bf16.msra.mxu0 0
    %2732 = vmatprep.subr.bf16.mxu0 0
    %2733 = vmatpush1.bf16.msra.mxu0 0
    %2734 = vmatprep.subr.bf16.mxu0 0
    %2735 = vmatpush1.bf16.msra.mxu0 0
    %2736 = vmatprep.subr.bf16.mxu0 0
    %2737 = vmatpush1.bf16.msra.mxu0 0
    %2738 = vmatprep.subr.bf16.mxu0 0
    %2739 = vmatpush1.bf16.msra.mxu0 0
    %2740 = vmatprep.subr.bf16.mxu0 0
    %2741 = vmatpush1.bf16.msra.mxu0 0
    %2742 = vmatprep.subr.bf16.mxu0 0
    %2743 = vmatpush1.bf16.msra.mxu0 0
    %2744 = vmatprep.subr.bf16.mxu0 0
    %2745 = vmatpush1.bf16.msra.mxu0 0
    %2746 = vmatprep.subr.bf16.mxu0 0
    %2747 = vmatpush1.bf16.msra.mxu0 0
    %2748 = vmatprep.subr.bf16.mxu0 0
    %2749 = vmatpush1.bf16.msra.mxu0 0
    %2750 = vmatprep.mubr.bf16.mxu0 0
    %2751 = vmatmul.mubr.bf16.gmra.mrb[0].mxu0 %v2636
    %v2752 = vpop.f32.mrb[0].mxu0
    %v2753 = vadd.f32 0.0, %v2752
    %v2754 = vpop.f32.mrb[0].mxu0
    %v2755 = vpop.f32.mrb[0].mxu0
    %v2756 = vadd.f32 0.0, %v2755
    %v2757 = vpop.f32.mrb[0].mxu0
    %2758 = vmatprep.mubr.bf16.mxu0 0
    %2759 = vmatmul.mubr.bf16.gmra.mrb[0].mxu0 %v2639
    %v2760 = vpop.f32.mrb[0].mxu0
    %v2761 = vadd.f32 0.0, %v2760
    %v2762 = vpop.f32.mrb[0].mxu0
    %v2763 = vpop.f32.mrb[0].mxu0
    %v2764 = vadd.f32 0.0, %v2763
    %v2765 = vpop.f32.mrb[0].mxu0
    %2766 = vmatprep.mubr.bf16.mxu0 0
    %2767 = vmatmul.mubr.bf16.gmra.mrb[0].mxu0 %v2642
    %v2768 = vpop.f32.mrb[0].mxu0
    %v2769 = vadd.f32 0.0, %v2768
    %v2770 = vpop.f32.mrb[0].mxu0
    %v2771 = vpop.f32.mrb[0].mxu0
    %v2772 = vadd.f32 0.0, %v2771
    %v2773 = vpop.f32.mrb[0].mxu0
    %2774 = vdwg.mxu0
    %v2775 = vxor.u32 %v2679, 2147483648
    %v2776 = vxor.u32 %v2682, 2147483648
    %v2777 = vxor.u32 %v2687, 2147483648
    %v2778 = vxor.u32 %v2690, 2147483648
    %v2779 = vxor.u32 %v2695, 2147483648
    %v2780 = vxor.u32 %v2698, 2147483648
    %v2781 = vmul.f32 %v2775, 1.442695
    %v2782 = vpow.pop %v2781
    %v2783 = vmul.f32 %v2776, 1.442695
    %v2784 = vpow.pop %v2783
    %v2785 = vmul.f32 %v2777, 1.442695
    %v2786 = vpow.pop %v2785
    %v2787 = vmul.f32 %v2778, 1.442695
    %v2788 = vpow.pop %v2787
    %v2789 = vmul.f32 %v2779, 1.442695
    %v2790 = vpow.pop %v2789
    %v2791 = vmul.f32 %v2780, 1.442695
    %v2792 = vpow.pop %v2791
    %v2793 = vadd.f32 %v2782, 1.0
    %v2794 = vadd.f32 %v2784, 1.0
    %v2795 = vadd.f32 %v2786, 1.0
    %v2796 = vadd.f32 %v2788, 1.0
    %v2797 = vadd.f32 %v2790, 1.0
    %v2798 = vadd.f32 %v2792, 1.0
    %v2799 = vrcp.pop %v2793
    %v2800 = vmul.f32 1.0, %v2799
    %v2801 = vrcp.pop %v2794
    %v2802 = vmul.f32 1.0, %v2801
    %v2803 = vrcp.pop %v2795
    %v2804 = vmul.f32 1.0, %v2803
    %v2805 = vrcp.pop %v2796
    %v2806 = vmul.f32 1.0, %v2805
    %v2807 = vrcp.pop %v2797
    %v2808 = vmul.f32 1.0, %v2807
    %v2809 = vrcp.pop %v2798
    %v2810 = vmul.f32 1.0, %v2809
    %v2811 = vmul.f32 %v2679, %v2800
    %v2812 = vmul.f32 %v2682, %v2802
    %v2813 = vmul.f32 %v2687, %v2804
    %v2814 = vmul.f32 %v2690, %v2806
    %v2815 = vmul.f32 %v2695, %v2808
    %v2816 = vmul.f32 %v2698, %v2810
    %v2817 = vmul.f32 %v2811, %v2753
    %v2818 = vmul.f32 %v2812, %v2756
    %v2819 = vmul.f32 %v2813, %v2761
    %v2820 = vmul.f32 %v2814, %v2764
    %v2821 = vmul.f32 %v2815, %v2769
    %v2822 = vmul.f32 %v2816, %v2772
    %v2823 = vpack.c.bf16 %v2818, %v2817
    %v2824 = vpack.c.bf16 %v2820, %v2819
    %v2825 = vpack.c.bf16 %v2822, %v2821
    %v2826 = vld [vmem:[%s15] sm:$0xf]
    %v2827 = vld [vmem:[%s15 + $0x4] sm:$0xf]
    %v2828 = vld [vmem:[%s15 + $0x8] sm:$0xf]
    %v2829 = vld [vmem:[%s15 + $0xc] sm:$0xf]
    %v2830 = vld [vmem:[%s15 + $0x10] sm:$0xf]
    %v2831 = vld [vmem:[%s15 + $0x14] sm:$0xf]
    %v2832 = vld [vmem:[%s15 + $0x18] sm:$0xf]
    %v2833 = vld [vmem:[%s15 + $0x1c] sm:$0xf]
    %v2842 = vunpack.c.l.b16 %v2826
    %v2843 = vunpack.c.l.b16 %v2827
    %v2844 = vunpack.c.l.b16 %v2828
    %v2845 = vunpack.c.l.b16 %v2829
    %v2846 = vunpack.c.l.b16 %v2830
    %v2847 = vunpack.c.l.b16 %v2831
    %v2848 = vunpack.c.l.b16 %v2832
    %v2849 = vunpack.c.l.b16 %v2833
    %v2850 = vpack.c.b16 %v2843, %v2842
    %v2851 = vpack.c.b16 %v2845, %v2844
    %v2852 = vpack.c.b16 %v2847, %v2846
    %v2853 = vpack.c.b16 %v2849, %v2848
    %vm2858 = vcmask 523264
    %v2860 = vsel %vm2858, %v2823, 0
    %v2863 = vsel %vm2858, %v2824, 0
    %v2866 = vsel %vm2858, %v2825, 0
    %2868 = vmatprep.subr.bf16.mxu0 0
    %2869 = vmatpush1.bf16.msra.mxu0 %v2850
    %2870 = vmatprep.subr.bf16.mxu0 0
    %2871 = vmatpush1.bf16.msra.mxu0 %v2851
    %2872 = vmatprep.subr.bf16.mxu0 0
    %2873 = vmatpush1.bf16.msra.mxu0 %v2852
    %2874 = vmatprep.subr.bf16.mxu0 0
    %2875 = vmatpush1.bf16.msra.mxu0 %v2853
    %2876 = vmatprep.subr.bf16.mxu0 0
    %2877 = vmatpush1.bf16.msra.mxu0 0
    %2878 = vmatprep.subr.bf16.mxu0 0
    %2879 = vmatpush1.bf16.msra.mxu0 0
    %2880 = vmatprep.subr.bf16.mxu0 0
    %2881 = vmatpush1.bf16.msra.mxu0 0
    %2882 = vmatprep.subr.bf16.mxu0 0
    %2883 = vmatpush1.bf16.msra.mxu0 0
    %2884 = vmatprep.subr.bf16.mxu0 0
    %2885 = vmatpush1.bf16.msra.mxu0 0
    %2886 = vmatprep.subr.bf16.mxu0 0
    %2887 = vmatpush1.bf16.msra.mxu0 0
    %2888 = vmatprep.subr.bf16.mxu0 0
    %2889 = vmatpush1.bf16.msra.mxu0 0
    %2890 = vmatprep.subr.bf16.mxu0 0
    %2891 = vmatpush1.bf16.msra.mxu0 0
    %2892 = vmatprep.subr.bf16.mxu0 0
    %2893 = vmatpush1.bf16.msra.mxu0 0
    %2894 = vmatprep.subr.bf16.mxu0 0
    %2895 = vmatpush1.bf16.msra.mxu0 0
    %2896 = vmatprep.subr.bf16.mxu0 0
    %2897 = vmatpush1.bf16.msra.mxu0 0
    %2898 = vmatprep.subr.bf16.mxu0 0
    %2899 = vmatpush1.bf16.msra.mxu0 0
    %2900 = vmatprep.mubr.bf16.mxu0 0
    %2901 = vmatmul.mubr.bf16.gmra.mrb[0].mxu0 %v2860
    %v2902 = vpop.f32.mrb[0].mxu0
    %v2903 = vadd.f32 0.0, %v2902
    %v2904 = vpop.f32.mrb[0].mxu0
    %v2905 = vpop.f32.mrb[0].mxu0
    %v2906 = vadd.f32 0.0, %v2905
    %v2907 = vpop.f32.mrb[0].mxu0
    %2908 = vmatprep.mubr.bf16.mxu0 0
    %2909 = vmatmul.mubr.bf16.gmra.mrb[0].mxu0 %v2863
    %v2910 = vpop.f32.mrb[0].mxu0
    %v2911 = vadd.f32 0.0, %v2910
    %v2912 = vpop.f32.mrb[0].mxu0
    %v2913 = vpop.f32.mrb[0].mxu0
    %v2914 = vadd.f32 0.0, %v2913
    %v2915 = vpop.f32.mrb[0].mxu0
    %2916 = vmatprep.mubr.bf16.mxu0 0
    %2917 = vmatmul.mubr.bf16.gmra.mrb[0].mxu0 %v2866
    %v2918 = vpop.f32.mrb[0].mxu0
    %v2919 = vadd.f32 0.0, %v2918
    %v2920 = vpop.f32.mrb[0].mxu0
    %v2921 = vpop.f32.mrb[0].mxu0
    %v2922 = vadd.f32 0.0, %v2921
    %v2923 = vpop.f32.mrb[0].mxu0
    %2924 = vdwg.mxu0
    %v2925 = vadd.f32 %v2551, %v2903
    %v2926 = vadd.f32 %v2552, %v2906
    %v2927 = vadd.f32 %v2553, %v2911
    %v2928 = vadd.f32 %v2554, %v2914
    %v2929 = vadd.f32 %v2555, %v2919
    %v2930 = vadd.f32 %v2556, %v2922
    %v2931 = vld [vmem:[#allocation15 + $0x3] sm:$0x1]
    %v2932 = vmul.f32 %v2925, %v2925
    %v2933 = vmul.f32 %v2926, %v2926
    %v2934 = vmul.f32 %v2927, %v2927
    %v2935 = vmul.f32 %v2928, %v2928
    %v2936 = vmul.f32 %v2929, %v2929
    %v2937 = vmul.f32 %v2930, %v2930
    %v2938 = vsel %vm967, %v2932, 0.0
    %2939 = vadd.xlane.f32.xlu0 %v2938
    %v2940 = vpop.xlane.xlu0 %2939
    %v2941 = vsel %vm967, %v2933, 0.0
    %2942 = vadd.xlane.f32.xlu0 %v2941
    %v2943 = vpop.xlane.xlu0 %2942
    %v2944 = vsel %vm967, %v2934, 0.0
    %2945 = vadd.xlane.f32.xlu0 %v2944
    %v2946 = vpop.xlane.xlu0 %2945
    %v2947 = vsel %vm967, %v2935, 0.0
    %2948 = vadd.xlane.f32.xlu0 %v2947
    %v2949 = vpop.xlane.xlu0 %2948
    %v2950 = vsel %vm967, %v2936, 0.0
    %2951 = vadd.xlane.f32.xlu0 %v2950
    %v2952 = vpop.xlane.xlu0 %2951
    %v2953 = vsel %vm967, %v2937, 0.0
    %2954 = vadd.xlane.f32.xlu0 %v2953
    %v2955 = vpop.xlane.xlu0 %2954
    %v2956 = vmul.f32 %v2940, %v986
    %v2957 = vmul.f32 %v2943, %v986
    %v2958 = vmul.f32 %v2946, %v986
    %v2959 = vmul.f32 %v2949, %v986
    %v2960 = vmul.f32 %v2952, %v986
    %v2961 = vmul.f32 %v2955, %v986
    %v2962 = vadd.f32 %v2956, 1e-05
    %v2963 = vadd.f32 %v2957, 1e-05
    %v2964 = vadd.f32 %v2958, 1e-05
    %v2965 = vadd.f32 %v2959, 1e-05
    %v2966 = vadd.f32 %v2960, 1e-05
    %v2967 = vadd.f32 %v2961, 1e-05
    %v2968 = vrsqrt.pop %v2962
    %v2969 = vrsqrt.pop %v2963
    %v2970 = vrsqrt.pop %v2964
    %v2971 = vrsqrt.pop %v2965
    %v2972 = vrsqrt.pop %v2966
    %v2973 = vrsqrt.pop %v2967
    %v2974 = vmul.f32 %v2925, %v2968
    %v2975 = vmul.f32 %v2926, %v2969
    %v2976 = vmul.f32 %v2927, %v2970
    %v2977 = vmul.f32 %v2928, %v2971
    %v2978 = vmul.f32 %v2929, %v2972
    %v2979 = vmul.f32 %v2930, %v2973
    %v2980 = vlaneseq
    %v2981 = vshrl.u32 %v2980, 7
    %v2982 = vsub.s32 0, %v2981
    %v2983 = vrot.slane %v2931, %v2982
    %v2984 = vmul.f32 %v2974, %v2983
    %v2985 = vmul.f32 %v2975, %v2983
    %v2986 = vmul.f32 %v2976, %v2983
    %v2987 = vmul.f32 %v2977, %v2983
    %v2988 = vmul.f32 %v2978, %v2983
    %v2989 = vmul.f32 %v2979, %v2983
    %v2990 = vpack.c.bf16 %v2985, %v2984
    %v2991 = vpack.c.bf16 %v2987, %v2986
    %v2992 = vpack.c.bf16 %v2989, %v2988
    %s2993 = scalar_lea.vmem [#allocation16], 64
    %v2994 = vld [vmem:[%s2993] sm:$0xf]
    %v2995 = vld [vmem:[%s2993 + $0x4] sm:$0xf]
    %v2996 = vld [vmem:[%s2993 + $0x8] sm:$0xf]
    %v2997 = vld [vmem:[%s2993 + $0xc] sm:$0xf]
    %v3002 = vunpack.c.l.b16 %v2994
    %v3003 = vunpack.c.l.b16 %v2995
    %v3004 = vunpack.c.l.b16 %v2996
    %v3005 = vunpack.c.l.b16 %v2997
    %v3006 = vpack.c.b16 %v3003, %v3002
    %v3007 = vpack.c.b16 %v3005, %v3004
    %v3011 = vsel %vm967, %v2990, 0
    %v3014 = vsel %vm967, %v2991, 0
    %v3017 = vsel %vm967, %v2992, 0
    %3019 = vmatprep.subr.bf16.mxu0 0
    %3020 = vmatpush1.bf16.msra.mxu0 %v3006
    %3021 = vmatprep.subr.bf16.mxu0 0
    %3022 = vmatpush1.bf16.msra.mxu0 %v3007
    %3023 = vmatprep.subr.bf16.mxu0 0
    %3024 = vmatpush1.bf16.msra.mxu0 0
    %3025 = vmatprep.subr.bf16.mxu0 0
    %3026 = vmatpush1.bf16.msra.mxu0 0
    %3027 = vmatprep.subr.bf16.mxu0 0
    %3028 = vmatpush1.bf16.msra.mxu0 0
    %3029 = vmatprep.subr.bf16.mxu0 0
    %3030 = vmatpush1.bf16.msra.mxu0 0
    %3031 = vmatprep.subr.bf16.mxu0 0
    %3032 = vmatpush1.bf16.msra.mxu0 0
    %3033 = vmatprep.subr.bf16.mxu0 0
    %3034 = vmatpush1.bf16.msra.mxu0 0
    %3035 = vmatprep.subr.bf16.mxu0 0
    %3036 = vmatpush1.bf16.msra.mxu0 0
    %3037 = vmatprep.subr.bf16.mxu0 0
    %3038 = vmatpush1.bf16.msra.mxu0 0
    %3039 = vmatprep.subr.bf16.mxu0 0
    %3040 = vmatpush1.bf16.msra.mxu0 0
    %3041 = vmatprep.subr.bf16.mxu0 0
    %3042 = vmatpush1.bf16.msra.mxu0 0
    %3043 = vmatprep.subr.bf16.mxu0 0
    %3044 = vmatpush1.bf16.msra.mxu0 0
    %3045 = vmatprep.subr.bf16.mxu0 0
    %3046 = vmatpush1.bf16.msra.mxu0 0
    %3047 = vmatprep.subr.bf16.mxu0 0
    %3048 = vmatpush1.bf16.msra.mxu0 0
    %3049 = vmatprep.subr.bf16.mxu0 0
    %3050 = vmatpush1.bf16.msra.mxu0 0
    %3051 = vmatprep.mubr.bf16.mxu0 0
    %3052 = vmatmul.mubr.bf16.gmra.mrb[0].mxu0 %v3011
    %v3053 = vpop.f32.mrb[0].mxu0
    %v3054 = vadd.f32 0.0, %v3053
    %v3055 = vpop.f32.mrb[0].mxu0
    %v3056 = vpop.f32.mrb[0].mxu0
    %v3057 = vadd.f32 0.0, %v3056
    %v3058 = vpop.f32.mrb[0].mxu0
    %3059 = vmatprep.mubr.bf16.mxu0 0
    %3060 = vmatmul.mubr.bf16.gmra.mrb[0].mxu0 %v3014
    %v3061 = vpop.f32.mrb[0].mxu0
    %v3062 = vadd.f32 0.0, %v3061
    %v3063 = vpop.f32.mrb[0].mxu0
    %v3064 = vpop.f32.mrb[0].mxu0
    %v3065 = vadd.f32 0.0, %v3064
    %v3066 = vpop.f32.mrb[0].mxu0
    %3067 = vmatprep.mubr.bf16.mxu0 0
    %3068 = vmatmul.mubr.bf16.gmra.mrb[0].mxu0 %v3017
    %v3069 = vpop.f32.mrb[0].mxu0
    %v3070 = vadd.f32 0.0, %v3069
    %v3071 = vpop.f32.mrb[0].mxu0
    %v3072 = vpop.f32.mrb[0].mxu0
    %v3073 = vadd.f32 0.0, %v3072
    %v3074 = vpop.f32.mrb[0].mxu0
    %3075 = vdwg.mxu0
    %v3076 = vmul.f32 %v3054, %v917
    %v3077 = vmul.f32 %v3057, %v918
    %v3078 = vmul.f32 %v3062, %v919
    %v3079 = vmul.f32 %v3065, %v920
    %v3080 = vmul.f32 %v3070, %v921
    %v3081 = vmul.f32 %v3073, %v922
    %v3083 = vsel %vm967, %v3054, 0
    %v3086 = vsel %vm967, %v3057, 0
    %v3089 = vsel %vm967, %v3062, 0
    %v3092 = vsel %vm967, %v3065, 0
    %v3095 = vsel %vm967, %v3070, 0
    %v3098 = vsel %vm967, %v3073, 0
    %3100 = vmatprep.subr.mxu0 0.0
    %3101 = vmatpush1.msra.mxu0 %v930
    %3102 = vmatprep.subr.mxu0 0.0
    %3103 = vmatpush1.msra.mxu0 %v931
    %3104 = vmatprep.subr.mxu0 0.0
    %3105 = vmatpush1.msra.mxu0 %v932
    %3106 = vmatprep.subr.mxu0 0.0
    %3107 = vmatpush1.msra.mxu0 %v933
    %3108 = vmatprep.subr.mxu0 0.0
    %3109 = vmatpush1.msra.mxu0 0.0
    %3110 = vmatprep.subr.mxu0 0.0
    %3111 = vmatpush1.msra.mxu0 0.0
    %3112 = vmatprep.subr.mxu0 0.0
    %3113 = vmatpush1.msra.mxu0 0.0
    %3114 = vmatprep.subr.mxu0 0.0
    %3115 = vmatpush1.msra.mxu0 0.0
    %3116 = vmatprep.subr.mxu0 0.0
    %3117 = vmatpush1.msra.mxu0 0.0
    %3118 = vmatprep.subr.mxu0 0.0
    %3119 = vmatpush1.msra.mxu0 0.0
    %3120 = vmatprep.subr.mxu0 0.0
    %3121 = vmatpush1.msra.mxu0 0.0
    %3122 = vmatprep.subr.mxu0 0.0
    %3123 = vmatpush1.msra.mxu0 0.0
    %3124 = vmatprep.subr.mxu0 0.0
    %3125 = vmatpush1.msra.mxu0 0.0
    %3126 = vmatprep.subr.mxu0 0.0
    %3127 = vmatpush1.msra.mxu0 0.0
    %3128 = vmatprep.subr.mxu0 0.0
    %3129 = vmatpush1.msra.mxu0 0.0
    %3130 = vmatprep.subr.mxu0 0.0
    %3131 = vmatpush1.msra.mxu0 0.0
    %3132 = vmatprep.subr.mxu0 0.0
    %3133 = vmatpush1.msra.mxu0 0.0
    %3134 = vmatprep.subr.mxu0 0.0
    %3135 = vmatpush1.msra.mxu0 0.0
    %3136 = vmatprep.subr.mxu0 0.0
    %3137 = vmatpush1.msra.mxu0 0.0
    %3138 = vmatprep.subr.mxu0 0.0
    %3139 = vmatpush1.msra.mxu0 0.0
    %3140 = vmatprep.subr.mxu0 0.0
    %3141 = vmatpush1.msra.mxu0 0.0
    %3142 = vmatprep.subr.mxu0 0.0
    %3143 = vmatpush1.msra.mxu0 0.0
    %3144 = vmatprep.subr.mxu0 0.0
    %3145 = vmatpush1.msra.mxu0 0.0
    %3146 = vmatprep.subr.mxu0 0.0
    %3147 = vmatpush1.msra.mxu0 0.0
    %3148 = vmatprep.subr.mxu0 0.0
    %3149 = vmatpush1.msra.mxu0 0.0
    %3150 = vmatprep.subr.mxu0 0.0
    %3151 = vmatpush1.msra.mxu0 0.0
    %3152 = vmatprep.subr.mxu0 0.0
    %3153 = vmatpush1.msra.mxu0 0.0
    %3154 = vmatprep.subr.mxu0 0.0
    %3155 = vmatpush1.msra.mxu0 0.0
    %3156 = vmatprep.subr.mxu0 0.0
    %3157 = vmatpush1.msra.mxu0 0.0
    %3158 = vmatprep.subr.mxu0 0.0
    %3159 = vmatpush1.msra.mxu0 0.0
    %3160 = vmatprep.subr.mxu0 0.0
    %3161 = vmatpush1.msra.mxu0 0.0
    %3162 = vmatprep.subr.mxu0 0.0
    %3163 = vmatpush1.msra.mxu0 0.0
    %3164 = vmatprep.mubr.f32.mxu0 0.0
    %3165 = vmatmul.mubr.f32.gmra.mrb[0].mxu0 %v3083
    %v3166 = vpop.f32.mrb[0].mxu0
    %v3167 = vadd.f32 0.0, %v3166
    %v3168 = vpop.f32.mrb[0].mxu0
    %3169 = vmatprep.mubr.f32.mxu0 0.0
    %3170 = vmatmul.mubr.f32.gmra.mrb[0].mxu0 %v3086
    %v3171 = vpop.f32.mrb[0].mxu0
    %v3172 = vadd.f32 0.0, %v3171
    %v3173 = vpop.f32.mrb[0].mxu0
    %3174 = vmatprep.mubr.f32.mxu0 0.0
    %3175 = vmatmul.mubr.f32.gmra.mrb[0].mxu0 %v3089
    %v3176 = vpop.f32.mrb[0].mxu0
    %v3177 = vadd.f32 0.0, %v3176
    %v3178 = vpop.f32.mrb[0].mxu0
    %3179 = vmatprep.mubr.f32.mxu0 0.0
    %3180 = vmatmul.mubr.f32.gmra.mrb[0].mxu0 %v3092
    %v3181 = vpop.f32.mrb[0].mxu0
    %v3182 = vadd.f32 0.0, %v3181
    %v3183 = vpop.f32.mrb[0].mxu0
    %3184 = vmatprep.mubr.f32.mxu0 0.0
    %3185 = vmatmul.mubr.f32.gmra.mrb[0].mxu0 %v3095
    %v3186 = vpop.f32.mrb[0].mxu0
    %v3187 = vadd.f32 0.0, %v3186
    %v3188 = vpop.f32.mrb[0].mxu0
    %3189 = vmatprep.mubr.f32.mxu0 0.0
    %3190 = vmatmul.mubr.f32.gmra.mrb[0].mxu0 %v3098
    %v3191 = vpop.f32.mrb[0].mxu0
    %v3192 = vadd.f32 0.0, %v3191
    %v3193 = vpop.f32.mrb[0].mxu0
    %3194 = vdwg.mxu0
    %v3195 = vmul.f32 %v3167, %v924
    %v3196 = vmul.f32 %v3172, %v925
    %v3197 = vmul.f32 %v3177, %v926
    %v3198 = vmul.f32 %v3182, %v927
    %v3199 = vmul.f32 %v3187, %v928
    %v3200 = vmul.f32 %v3192, %v929
    %v3201 = vadd.f32 %v3076, %v3195
    %v3202 = vadd.f32 %v3077, %v3196
    %v3203 = vadd.f32 %v3078, %v3197
    %v3204 = vadd.f32 %v3079, %v3198
    %v3205 = vadd.f32 %v3080, %v3199
    %v3206 = vadd.f32 %v3081, %v3200
    %s3207 = scalar_lea.vmem [#allocation16], 80
    %v3208 = vld [vmem:[%s3207] sm:$0xf]
    %v3209 = vld [vmem:[%s3207 + $0x4] sm:$0xf]
    %v3210 = vld [vmem:[%s3207 + $0x8] sm:$0xf]
    %v3211 = vld [vmem:[%s3207 + $0xc] sm:$0xf]
    %v3216 = vunpack.c.l.b16 %v3208
    %v3217 = vunpack.c.l.b16 %v3209
    %v3218 = vunpack.c.l.b16 %v3210
    %v3219 = vunpack.c.l.b16 %v3211
    %v3220 = vpack.c.b16 %v3217, %v3216
    %v3221 = vpack.c.b16 %v3219, %v3218
    %3224 = vmatprep.subr.bf16.mxu0 0
    %3225 = vmatpush1.bf16.msra.mxu0 %v3220
    %3226 = vmatprep.subr.bf16.mxu0 0
    %3227 = vmatpush1.bf16.msra.mxu0 %v3221
    %3228 = vmatprep.subr.bf16.mxu0 0
    %3229 = vmatpush1.bf16.msra.mxu0 0
    %3230 = vmatprep.subr.bf16.mxu0 0
    %3231 = vmatpush1.bf16.msra.mxu0 0
    %3232 = vmatprep.subr.bf16.mxu0 0
    %3233 = vmatpush1.bf16.msra.mxu0 0
    %3234 = vmatprep.subr.bf16.mxu0 0
    %3235 = vmatpush1.bf16.msra.mxu0 0
    %3236 = vmatprep.subr.bf16.mxu0 0
    %3237 = vmatpush1.bf16.msra.mxu0 0
    %3238 = vmatprep.subr.bf16.mxu0 0
    %3239 = vmatpush1.bf16.msra.mxu0 0
    %3240 = vmatprep.subr.bf16.mxu0 0
    %3241 = vmatpush1.bf16.msra.mxu0 0
    %3242 = vmatprep.subr.bf16.mxu0 0
    %3243 = vmatpush1.bf16.msra.mxu0 0
    %3244 = vmatprep.subr.bf16.mxu0 0
    %3245 = vmatpush1.bf16.msra.mxu0 0
    %3246 = vmatprep.subr.bf16.mxu0 0
    %3247 = vmatpush1.bf16.msra.mxu0 0
    %3248 = vmatprep.subr.bf16.mxu0 0
    %3249 = vmatpush1.bf16.msra.mxu0 0
    %3250 = vmatprep.subr.bf16.mxu0 0
    %3251 = vmatpush1.bf16.msra.mxu0 0
    %3252 = vmatprep.subr.bf16.mxu0 0
    %3253 = vmatpush1.bf16.msra.mxu0 0
    %3254 = vmatprep.subr.bf16.mxu0 0
    %3255 = vmatpush1.bf16.msra.mxu0 0
    %3256 = vmatprep.mubr.bf16.mxu0 0
    %3257 = vmatmul.mubr.bf16.gmra.mrb[0].mxu0 %v3011
    %v3258 = vpop.f32.mrb[0].mxu0
    %v3259 = vadd.f32 0.0, %v3258
    %v3260 = vpop.f32.mrb[0].mxu0
    %v3261 = vpop.f32.mrb[0].mxu0
    %v3262 = vadd.f32 0.0, %v3261
    %v3263 = vpop.f32.mrb[0].mxu0
    %3264 = vmatprep.mubr.bf16.mxu0 0
    %3265 = vmatmul.mubr.bf16.gmra.mrb[0].mxu0 %v3014
    %v3266 = vpop.f32.mrb[0].mxu0
    %v3267 = vadd.f32 0.0, %v3266
    %v3268 = vpop.f32.mrb[0].mxu0
    %v3269 = vpop.f32.mrb[0].mxu0
    %v3270 = vadd.f32 0.0, %v3269
    %v3271 = vpop.f32.mrb[0].mxu0
    %3272 = vmatprep.mubr.bf16.mxu0 0
    %3273 = vmatmul.mubr.bf16.gmra.mrb[0].mxu0 %v3017
    %v3274 = vpop.f32.mrb[0].mxu0
    %v3275 = vadd.f32 0.0, %v3274
    %v3276 = vpop.f32.mrb[0].mxu0
    %v3277 = vpop.f32.mrb[0].mxu0
    %v3278 = vadd.f32 0.0, %v3277
    %v3279 = vpop.f32.mrb[0].mxu0
    %3280 = vdwg.mxu0
    %v3281 = vmul.f32 %v3259, %v917
    %v3282 = vmul.f32 %v3262, %v918
    %v3283 = vmul.f32 %v3267, %v919
    %v3284 = vmul.f32 %v3270, %v920
    %v3285 = vmul.f32 %v3275, %v921
    %v3286 = vmul.f32 %v3278, %v922
    %v3288 = vsel %vm967, %v3259, 0
    %v3291 = vsel %vm967, %v3262, 0
    %v3294 = vsel %vm967, %v3267, 0
    %v3297 = vsel %vm967, %v3270, 0
    %v3300 = vsel %vm967, %v3275, 0
    %v3303 = vsel %vm967, %v3278, 0
    %3305 = vmatprep.subr.mxu0 0.0
    %3306 = vmatpush1.msra.mxu0 %v930
    %3307 = vmatprep.subr.mxu0 0.0
    %3308 = vmatpush1.msra.mxu0 %v931
    %3309 = vmatprep.subr.mxu0 0.0
    %3310 = vmatpush1.msra.mxu0 %v932
    %3311 = vmatprep.subr.mxu0 0.0
    %3312 = vmatpush1.msra.mxu0 %v933
    %3313 = vmatprep.subr.mxu0 0.0
    %3314 = vmatpush1.msra.mxu0 0.0
    %3315 = vmatprep.subr.mxu0 0.0
    %3316 = vmatpush1.msra.mxu0 0.0
    %3317 = vmatprep.subr.mxu0 0.0
    %3318 = vmatpush1.msra.mxu0 0.0
    %3319 = vmatprep.subr.mxu0 0.0
    %3320 = vmatpush1.msra.mxu0 0.0
    %3321 = vmatprep.subr.mxu0 0.0
    %3322 = vmatpush1.msra.mxu0 0.0
    %3323 = vmatprep.subr.mxu0 0.0
    %3324 = vmatpush1.msra.mxu0 0.0
    %3325 = vmatprep.subr.mxu0 0.0
    %3326 = vmatpush1.msra.mxu0 0.0
    %3327 = vmatprep.subr.mxu0 0.0
    %3328 = vmatpush1.msra.mxu0 0.0
    %3329 = vmatprep.subr.mxu0 0.0
    %3330 = vmatpush1.msra.mxu0 0.0
    %3331 = vmatprep.subr.mxu0 0.0
    %3332 = vmatpush1.msra.mxu0 0.0
    %3333 = vmatprep.subr.mxu0 0.0
    %3334 = vmatpush1.msra.mxu0 0.0
    %3335 = vmatprep.subr.mxu0 0.0
    %3336 = vmatpush1.msra.mxu0 0.0
    %3337 = vmatprep.subr.mxu0 0.0
    %3338 = vmatpush1.msra.mxu0 0.0
    %3339 = vmatprep.subr.mxu0 0.0
    %3340 = vmatpush1.msra.mxu0 0.0
    %3341 = vmatprep.subr.mxu0 0.0
    %3342 = vmatpush1.msra.mxu0 0.0
    %3343 = vmatprep.subr.mxu0 0.0
    %3344 = vmatpush1.msra.mxu0 0.0
    %3345 = vmatprep.subr.mxu0 0.0
    %3346 = vmatpush1.msra.mxu0 0.0
    %3347 = vmatprep.subr.mxu0 0.0
    %3348 = vmatpush1.msra.mxu0 0.0
    %3349 = vmatprep.subr.mxu0 0.0
    %3350 = vmatpush1.msra.mxu0 0.0
    %3351 = vmatprep.subr.mxu0 0.0
    %3352 = vmatpush1.msra.mxu0 0.0
    %3353 = vmatprep.subr.mxu0 0.0
    %3354 = vmatpush1.msra.mxu0 0.0
    %3355 = vmatprep.subr.mxu0 0.0
    %3356 = vmatpush1.msra.mxu0 0.0
    %3357 = vmatprep.subr.mxu0 0.0
    %3358 = vmatpush1.msra.mxu0 0.0
    %3359 = vmatprep.subr.mxu0 0.0
    %3360 = vmatpush1.msra.mxu0 0.0
    %3361 = vmatprep.subr.mxu0 0.0
    %3362 = vmatpush1.msra.mxu0 0.0
    %3363 = vmatprep.subr.mxu0 0.0
    %3364 = vmatpush1.msra.mxu0 0.0
    %3365 = vmatprep.subr.mxu0 0.0
    %3366 = vmatpush1.msra.mxu0 0.0
    %3367 = vmatprep.subr.mxu0 0.0
    %3368 = vmatpush1.msra.mxu0 0.0
    %3369 = vmatprep.mubr.f32.mxu0 0.0
    %3370 = vmatmul.mubr.f32.gmra.mrb[0].mxu0 %v3288
    %v3371 = vpop.f32.mrb[0].mxu0
    %v3372 = vadd.f32 0.0, %v3371
    %v3373 = vpop.f32.mrb[0].mxu0
    %3374 = vmatprep.mubr.f32.mxu0 0.0
    %3375 = vmatmul.mubr.f32.gmra.mrb[0].mxu0 %v3291
    %v3376 = vpop.f32.mrb[0].mxu0
    %v3377 = vadd.f32 0.0, %v3376
    %v3378 = vpop.f32.mrb[0].mxu0
    %3379 = vmatprep.mubr.f32.mxu0 0.0
    %3380 = vmatmul.mubr.f32.gmra.mrb[0].mxu0 %v3294
    %v3381 = vpop.f32.mrb[0].mxu0
    %v3382 = vadd.f32 0.0, %v3381
    %v3383 = vpop.f32.mrb[0].mxu0
    %3384 = vmatprep.mubr.f32.mxu0 0.0
    %3385 = vmatmul.mubr.f32.gmra.mrb[0].mxu0 %v3297
    %v3386 = vpop.f32.mrb[0].mxu0
    %v3387 = vadd.f32 0.0, %v3386
    %v3388 = vpop.f32.mrb[0].mxu0
    %3389 = vmatprep.mubr.f32.mxu0 0.0
    %3390 = vmatmul.mubr.f32.gmra.mrb[0].mxu0 %v3300
    %v3391 = vpop.f32.mrb[0].mxu0
    %v3392 = vadd.f32 0.0, %v3391
    %v3393 = vpop.f32.mrb[0].mxu0
    %3394 = vmatprep.mubr.f32.mxu0 0.0
    %3395 = vmatmul.mubr.f32.gmra.mrb[0].mxu0 %v3303
    %v3396 = vpop.f32.mrb[0].mxu0
    %v3397 = vadd.f32 0.0, %v3396
    %v3398 = vpop.f32.mrb[0].mxu0
    %3399 = vdwg.mxu0
    %v3400 = vmul.f32 %v3372, %v924
    %v3401 = vmul.f32 %v3377, %v925
    %v3402 = vmul.f32 %v3382, %v926
    %v3403 = vmul.f32 %v3387, %v927
    %v3404 = vmul.f32 %v3392, %v928
    %v3405 = vmul.f32 %v3397, %v929
    %v3406 = vadd.f32 %v3281, %v3400
    %v3407 = vadd.f32 %v3282, %v3401
    %v3408 = vadd.f32 %v3283, %v3402
    %v3409 = vadd.f32 %v3284, %v3403
    %v3410 = vadd.f32 %v3285, %v3404
    %v3411 = vadd.f32 %v3286, %v3405
    %s3412 = scalar_lea.vmem [#allocation16], 96
    %v3413 = vld [vmem:[%s3412] sm:$0xf]
    %v3414 = vld [vmem:[%s3412 + $0x4] sm:$0xf]
    %v3415 = vld [vmem:[%s3412 + $0x8] sm:$0xf]
    %v3416 = vld [vmem:[%s3412 + $0xc] sm:$0xf]
    %v3421 = vunpack.c.l.b16 %v3413
    %v3422 = vunpack.c.l.b16 %v3414
    %v3423 = vunpack.c.l.b16 %v3415
    %v3424 = vunpack.c.l.b16 %v3416
    %v3425 = vpack.c.b16 %v3422, %v3421
    %v3426 = vpack.c.b16 %v3424, %v3423
    %3429 = vmatprep.subr.bf16.mxu0 0
    %3430 = vmatpush1.bf16.msra.mxu0 %v3425
    %3431 = vmatprep.subr.bf16.mxu0 0
    %3432 = vmatpush1.bf16.msra.mxu0 %v3426
    %3433 = vmatprep.subr.bf16.mxu0 0
    %3434 = vmatpush1.bf16.msra.mxu0 0
    %3435 = vmatprep.subr.bf16.mxu0 0
    %3436 = vmatpush1.bf16.msra.mxu0 0
    %3437 = vmatprep.subr.bf16.mxu0 0
    %3438 = vmatpush1.bf16.msra.mxu0 0
    %3439 = vmatprep.subr.bf16.mxu0 0
    %3440 = vmatpush1.bf16.msra.mxu0 0
    %3441 = vmatprep.subr.bf16.mxu0 0
    %3442 = vmatpush1.bf16.msra.mxu0 0
    %3443 = vmatprep.subr.bf16.mxu0 0
    %3444 = vmatpush1.bf16.msra.mxu0 0
    %3445 = vmatprep.subr.bf16.mxu0 0
    %3446 = vmatpush1.bf16.msra.mxu0 0
    %3447 = vmatprep.subr.bf16.mxu0 0
    %3448 = vmatpush1.bf16.msra.mxu0 0
    %3449 = vmatprep.subr.bf16.mxu0 0
    %3450 = vmatpush1.bf16.msra.mxu0 0
    %3451 = vmatprep.subr.bf16.mxu0 0
    %3452 = vmatpush1.bf16.msra.mxu0 0
    %3453 = vmatprep.subr.bf16.mxu0 0
    %3454 = vmatpush1.bf16.msra.mxu0 0
    %3455 = vmatprep.subr.bf16.mxu0 0
    %3456 = vmatpush1.bf16.msra.mxu0 0
    %3457 = vmatprep.subr.bf16.mxu0 0
    %3458 = vmatpush1.bf16.msra.mxu0 0
    %3459 = vmatprep.subr.bf16.mxu0 0
    %3460 = vmatpush1.bf16.msra.mxu0 0
    %3461 = vmatprep.mubr.bf16.mxu0 0
    %3462 = vmatmul.mubr.bf16.gmra.mrb[0].mxu0 %v3011
    %v3463 = vpop.f32.mrb[0].mxu0
    %v3464 = vadd.f32 0.0, %v3463
    %v3465 = vpop.f32.mrb[0].mxu0
    %v3466 = vpop.f32.mrb[0].mxu0
    %v3467 = vadd.f32 0.0, %v3466
    %v3468 = vpop.f32.mrb[0].mxu0
    %3469 = vmatprep.mubr.bf16.mxu0 0
    %3470 = vmatmul.mubr.bf16.gmra.mrb[0].mxu0 %v3014
    %v3471 = vpop.f32.mrb[0].mxu0
    %v3472 = vadd.f32 0.0, %v3471
    %v3473 = vpop.f32.mrb[0].mxu0
    %v3474 = vpop.f32.mrb[0].mxu0
    %v3475 = vadd.f32 0.0, %v3474
    %v3476 = vpop.f32.mrb[0].mxu0
    %3477 = vmatprep.mubr.bf16.mxu0 0
    %3478 = vmatmul.mubr.bf16.gmra.mrb[0].mxu0 %v3017
    %v3479 = vpop.f32.mrb[0].mxu0
    %v3480 = vadd.f32 0.0, %v3479
    %v3481 = vpop.f32.mrb[0].mxu0
    %v3482 = vpop.f32.mrb[0].mxu0
    %v3483 = vadd.f32 0.0, %v3482
    %v3484 = vpop.f32.mrb[0].mxu0
    %3485 = vdwg.mxu0
    %v3486 = vpack.c.bf16 %v3407, %v3406
    %v3487 = vpack.c.bf16 %v3409, %v3408
    %v3488 = vpack.c.bf16 %v3411, %v3410
    %v3489 = vmul.f32 %v3201, %v944
    %v3490 = vmul.f32 %v3202, %v944
    %v3491 = vmul.f32 %v3203, %v944
    %v3492 = vmul.f32 %v3204, %v944
    %v3493 = vmul.f32 %v3205, %v944
    %v3494 = vmul.f32 %v3206, %v944
    %v3495 = vpack.c.bf16 %v3490, %v3489
    %v3496 = vpack.c.bf16 %v3492, %v3491
    %v3497 = vpack.c.bf16 %v3494, %v3493
    %v3499 = vsel %vm967, %v3495, 0
    %v3502 = vsel %vm967, %v3496, 0
    %v3505 = vsel %vm967, %v3497, 0
    %v3508 = vsel %vm967, %v3486, 0
    %v3511 = vsel %vm967, %v3487, 0
    %v3514 = vsel %vm967, %v3488, 0
    %3516 = vmatprep.subr.bf16.mxu0 0
    %3517 = vmatpush1.bf16.xpose.msra.mxu0 %v3508
    %3518 = vmatprep.subr.bf16.mxu0 0
    %3519 = vmatpush1.bf16.xpose.msra.mxu0 %v3511
    %3520 = vmatprep.subr.bf16.mxu0 0
    %3521 = vmatpush1.bf16.xpose.msra.mxu0 %v3514
    %3522 = vmatprep.subr.bf16.mxu0 0
    %3523 = vmatpush1.bf16.xpose.msra.mxu0 0
    %3524 = vmatprep.subr.bf16.mxu0 0
    %3525 = vmatpush1.bf16.xpose.msra.mxu0 0
    %3526 = vmatprep.subr.bf16.mxu0 0
    %3527 = vmatpush1.bf16.xpose.msra.mxu0 0
    %3528 = vmatprep.subr.bf16.mxu0 0
    %3529 = vmatpush1.bf16.xpose.msra.mxu0 0
    %3530 = vmatprep.subr.bf16.mxu0 0
    %3531 = vmatpush1.bf16.xpose.msra.mxu0 0
    %3532 = vmatprep.subr.bf16.mxu0 0
    %3533 = vmatpush1.bf16.xpose.msra.mxu0 0
    %3534 = vmatprep.subr.bf16.mxu0 0
    %3535 = vmatpush1.bf16.xpose.msra.mxu0 0
    %3536 = vmatprep.subr.bf16.mxu0 0
    %3537 = vmatpush1.bf16.xpose.msra.mxu0 0
    %3538 = vmatprep.subr.bf16.mxu0 0
    %3539 = vmatpush1.bf16.xpose.msra.mxu0 0
    %3540 = vmatprep.subr.bf16.mxu0 0
    %3541 = vmatpush1.bf16.xpose.msra.mxu0 0
    %3542 = vmatprep.subr.bf16.mxu0 0
    %3543 = vmatpush1.bf16.xpose.msra.mxu0 0
    %3544 = vmatprep.subr.bf16.mxu0 0
    %3545 = vmatpush1.bf16.xpose.msra.mxu0 0
    %3546 = vmatprep.subr.bf16.mxu0 0
    %3547 = vmatpush1.bf16.xpose.msra.mxu0 0
    %3548 = vmatprep.mubr.bf16.mxu0 0
    %3549 = vmatmul.mubr.bf16.gmra.mrb[0].mxu0 %v3499
    %v3550 = vpop.f32.mrb[0].mxu0
    %v3551 = vadd.f32 0.0, %v3550
    %v3552 = vpop.f32.mrb[0].mxu0
    %v3553 = vpop.f32.mrb[0].mxu0
    %v3554 = vadd.f32 0.0, %v3553
    %v3555 = vpop.f32.mrb[0].mxu0
    %3556 = vmatprep.mubr.bf16.mxu0 0
    %3557 = vmatmul.mubr.bf16.gmra.mrb[0].mxu0 %v3502
    %v3558 = vpop.f32.mrb[0].mxu0
    %v3559 = vadd.f32 0.0, %v3558
    %v3560 = vpop.f32.mrb[0].mxu0
    %v3561 = vpop.f32.mrb[0].mxu0
    %v3562 = vadd.f32 0.0, %v3561
    %v3563 = vpop.f32.mrb[0].mxu0
    %3564 = vmatprep.mubr.bf16.mxu0 0
    %3565 = vmatmul.mubr.bf16.gmra.mrb[0].mxu0 %v3505
    %v3566 = vpop.f32.mrb[0].mxu0
    %v3567 = vadd.f32 0.0, %v3566
    %v3568 = vpop.f32.mrb[0].mxu0
    %v3569 = vpop.f32.mrb[0].mxu0
    %v3570 = vadd.f32 0.0, %v3569
    %v3571 = vpop.f32.mrb[0].mxu0
    %3572 = vdwg.mxu0
    %v3573 = vmul.f32 %v3551, 0.35355338
    %v3574 = vmul.f32 %v3554, 0.35355338
    %v3575 = vmul.f32 %v3559, 0.35355338
    %v3576 = vmul.f32 %v3562, 0.35355338
    %v3577 = vmul.f32 %v3567, 0.35355338
    %v3578 = vmul.f32 %v3570, 0.35355338
    %v3579 = vadd.f32 %v3573, %v934
    %v3580 = vadd.f32 %v3574, %v935
    %v3581 = vadd.f32 %v3575, %v936
    %v3582 = vadd.f32 %v3576, %v937
    %v3583 = vadd.f32 %v3577, %v938
    %v3584 = vadd.f32 %v3578, %v939
    %v3585 = vsel %vm1615, %v3579, -inf
    %3586 = vmax.xlane.f32.xlu0 %v3585
    %v3587 = vpop.xlane.xlu0 %3586
    %v3588 = vsel %vm1615, %v3580, -inf
    %3589 = vmax.xlane.f32.xlu0 %v3588
    %v3590 = vpop.xlane.xlu0 %3589
    %v3591 = vsel %vm1615, %v3581, -inf
    %3592 = vmax.xlane.f32.xlu0 %v3591
    %v3593 = vpop.xlane.xlu0 %3592
    %v3594 = vsel %vm1615, %v3582, -inf
    %3595 = vmax.xlane.f32.xlu0 %v3594
    %v3596 = vpop.xlane.xlu0 %3595
    %v3597 = vsel %vm1615, %v3583, -inf
    %3598 = vmax.xlane.f32.xlu0 %v3597
    %v3599 = vpop.xlane.xlu0 %3598
    %v3600 = vsel %vm1615, %v3584, -inf
    %3601 = vmax.xlane.f32.xlu0 %v3600
    %v3602 = vpop.xlane.xlu0 %3601
    %v3603 = vsub.f32 %v3579, %v3587
    %v3604 = vsub.f32 %v3580, %v3590
    %v3605 = vsub.f32 %v3581, %v3593
    %v3606 = vsub.f32 %v3582, %v3596
    %v3607 = vsub.f32 %v3583, %v3599
    %v3608 = vsub.f32 %v3584, %v3602
    %v3609 = vmul.f32 %v3603, 1.442695
    %v3610 = vpow.pop %v3609
    %v3611 = vmul.f32 %v3604, 1.442695
    %v3612 = vpow.pop %v3611
    %v3613 = vmul.f32 %v3605, 1.442695
    %v3614 = vpow.pop %v3613
    %v3615 = vmul.f32 %v3606, 1.442695
    %v3616 = vpow.pop %v3615
    %v3617 = vmul.f32 %v3607, 1.442695
    %v3618 = vpow.pop %v3617
    %v3619 = vmul.f32 %v3608, 1.442695
    %v3620 = vpow.pop %v3619
    %v3621 = vsel %vm1615, %v3610, 0.0
    %3622 = vadd.xlane.f32.xlu0 %v3621
    %v3623 = vpop.xlane.xlu0 %3622
    %v3624 = vsel %vm1615, %v3612, 0.0
    %3625 = vadd.xlane.f32.xlu0 %v3624
    %v3626 = vpop.xlane.xlu0 %3625
    %v3627 = vsel %vm1615, %v3614, 0.0
    %3628 = vadd.xlane.f32.xlu0 %v3627
    %v3629 = vpop.xlane.xlu0 %3628
    %v3630 = vsel %vm1615, %v3616, 0.0
    %3631 = vadd.xlane.f32.xlu0 %v3630
    %v3632 = vpop.xlane.xlu0 %3631
    %v3633 = vsel %vm1615, %v3618, 0.0
    %3634 = vadd.xlane.f32.xlu0 %v3633
    %v3635 = vpop.xlane.xlu0 %3634
    %v3636 = vsel %vm1615, %v3620, 0.0
    %3637 = vadd.xlane.f32.xlu0 %v3636
    %v3638 = vpop.xlane.xlu0 %3637
    %v3639 = vrcp.pop %v3623
    %v3640 = vrcp.pop %v3626
    %v3641 = vrcp.pop %v3629
    %v3642 = vrcp.pop %v3632
    %v3643 = vrcp.pop %v3635
    %v3644 = vrcp.pop %v3638
    %v3645 = vmul.f32 %v3610, %v3639
    %v3646 = vmul.f32 %v3612, %v3640
    %v3647 = vmul.f32 %v3614, %v3641
    %v3648 = vmul.f32 %v3616, %v3642
    %v3649 = vmul.f32 %v3618, %v3643
    %v3650 = vmul.f32 %v3620, %v3644
    %v3651 = vpack.c.bf16 %v3646, %v3645
    %v3652 = vpack.c.bf16 %v3648, %v3647
    %v3653 = vpack.c.bf16 %v3650, %v3649
    %v3654 = vmul.f32 %v3464, %v944
    %v3655 = vmul.f32 %v3467, %v944
    %v3656 = vmul.f32 %v3472, %v944
    %v3657 = vmul.f32 %v3475, %v944
    %v3658 = vmul.f32 %v3480, %v944
    %v3659 = vmul.f32 %v3483, %v944
    %v3660 = vpack.c.bf16 %v3655, %v3654
    %v3661 = vpack.c.bf16 %v3657, %v3656
    %v3662 = vpack.c.bf16 %v3659, %v3658
    %v3663 = vmul.f32 %v3201, %v949
    %v3664 = vmul.f32 %v3202, %v949
    %v3665 = vmul.f32 %v3203, %v949
    %v3666 = vmul.f32 %v3204, %v949
    %v3667 = vmul.f32 %v3205, %v949
    %v3668 = vmul.f32 %v3206, %v949
    %v3669 = vpack.c.bf16 %v3664, %v3663
    %v3670 = vpack.c.bf16 %v3666, %v3665
    %v3671 = vpack.c.bf16 %v3668, %v3667
    %v3673 = vsel %vm967, %v3669, 0
    %v3676 = vsel %vm967, %v3670, 0
    %v3679 = vsel %vm967, %v3671, 0
    %3681 = vmatprep.subr.bf16.mxu0 0
    %3682 = vmatpush1.bf16.xpose.msra.mxu0 %v3508
    %3683 = vmatprep.subr.bf16.mxu0 0
    %3684 = vmatpush1.bf16.xpose.msra.mxu0 %v3511
    %3685 = vmatprep.subr.bf16.mxu0 0
    %3686 = vmatpush1.bf16.xpose.msra.mxu0 %v3514
    %3687 = vmatprep.subr.bf16.mxu0 0
    %3688 = vmatpush1.bf16.xpose.msra.mxu0 0
    %3689 = vmatprep.subr.bf16.mxu0 0
    %3690 = vmatpush1.bf16.xpose.msra.mxu0 0
    %3691 = vmatprep.subr.bf16.mxu0 0
    %3692 = vmatpush1.bf16.xpose.msra.mxu0 0
    %3693 = vmatprep.subr.bf16.mxu0 0
    %3694 = vmatpush1.bf16.xpose.msra.mxu0 0
    %3695 = vmatprep.subr.bf16.mxu0 0
    %3696 = vmatpush1.bf16.xpose.msra.mxu0 0
    %3697 = vmatprep.subr.bf16.mxu0 0
    %3698 = vmatpush1.bf16.xpose.msra.mxu0 0
    %3699 = vmatprep.subr.bf16.mxu0 0
    %3700 = vmatpush1.bf16.xpose.msra.mxu0 0
    %3701 = vmatprep.subr.bf16.mxu0 0
    %3702 = vmatpush1.bf16.xpose.msra.mxu0 0
    %3703 = vmatprep.subr.bf16.mxu0 0
    %3704 = vmatpush1.bf16.xpose.msra.mxu0 0
    %3705 = vmatprep.subr.bf16.mxu0 0
    %3706 = vmatpush1.bf16.xpose.msra.mxu0 0
    %3707 = vmatprep.subr.bf16.mxu0 0
    %3708 = vmatpush1.bf16.xpose.msra.mxu0 0
    %3709 = vmatprep.subr.bf16.mxu0 0
    %3710 = vmatpush1.bf16.xpose.msra.mxu0 0
    %3711 = vmatprep.subr.bf16.mxu0 0
    %3712 = vmatpush1.bf16.xpose.msra.mxu0 0
    %3713 = vmatprep.mubr.bf16.mxu0 0
    %3714 = vmatmul.mubr.bf16.gmra.mrb[0].mxu0 %v3673
    %v3715 = vpop.f32.mrb[0].mxu0
    %v3716 = vadd.f32 0.0, %v3715
    %v3717 = vpop.f32.mrb[0].mxu0
    %v3718 = vpop.f32.mrb[0].mxu0
    %v3719 = vadd.f32 0.0, %v3718
    %v3720 = vpop.f32.mrb[0].mxu0
    %3721 = vmatprep.mubr.bf16.mxu0 0
    %3722 = vmatmul.mubr.bf16.gmra.mrb[0].mxu0 %v3676
    %v3723 = vpop.f32.mrb[0].mxu0
    %v3724 = vadd.f32 0.0, %v3723
    %v3725 = vpop.f32.mrb[0].mxu0
    %v3726 = vpop.f32.mrb[0].mxu0
    %v3727 = vadd.f32 0.0, %v3726
    %v3728 = vpop.f32.mrb[0].mxu0
    %3729 = vmatprep.mubr.bf16.mxu0 0
    %3730 = vmatmul.mubr.bf16.gmra.mrb[0].mxu0 %v3679
    %v3731 = vpop.f32.mrb[0].mxu0
    %v3732 = vadd.f32 0.0, %v3731
    %v3733 = vpop.f32.mrb[0].mxu0
    %v3734 = vpop.f32.mrb[0].mxu0
    %v3735 = vadd.f32 0.0, %v3734
    %v3736 = vpop.f32.mrb[0].mxu0
    %3737 = vdwg.mxu0
    %v3738 = vmul.f32 %v3716, 0.35355338
    %v3739 = vmul.f32 %v3719, 0.35355338
    %v3740 = vmul.f32 %v3724, 0.35355338
    %v3741 = vmul.f32 %v3727, 0.35355338
    %v3742 = vmul.f32 %v3732, 0.35355338
    %v3743 = vmul.f32 %v3735, 0.35355338
    %v3744 = vadd.f32 %v3738, %v934
    %v3745 = vadd.f32 %v3739, %v935
    %v3746 = vadd.f32 %v3740, %v936
    %v3747 = vadd.f32 %v3741, %v937
    %v3748 = vadd.f32 %v3742, %v938
    %v3749 = vadd.f32 %v3743, %v939
    %v3750 = vsel %vm1615, %v3744, -inf
    %3751 = vmax.xlane.f32.xlu0 %v3750
    %v3752 = vpop.xlane.xlu0 %3751
    %v3753 = vsel %vm1615, %v3745, -inf
    %3754 = vmax.xlane.f32.xlu0 %v3753
    %v3755 = vpop.xlane.xlu0 %3754
    %v3756 = vsel %vm1615, %v3746, -inf
    %3757 = vmax.xlane.f32.xlu0 %v3756
    %v3758 = vpop.xlane.xlu0 %3757
    %v3759 = vsel %vm1615, %v3747, -inf
    %3760 = vmax.xlane.f32.xlu0 %v3759
    %v3761 = vpop.xlane.xlu0 %3760
    %v3762 = vsel %vm1615, %v3748, -inf
    %3763 = vmax.xlane.f32.xlu0 %v3762
    %v3764 = vpop.xlane.xlu0 %3763
    %v3765 = vsel %vm1615, %v3749, -inf
    %3766 = vmax.xlane.f32.xlu0 %v3765
    %v3767 = vpop.xlane.xlu0 %3766
    %v3768 = vsub.f32 %v3744, %v3752
    %v3769 = vsub.f32 %v3745, %v3755
    %v3770 = vsub.f32 %v3746, %v3758
    %v3771 = vsub.f32 %v3747, %v3761
    %v3772 = vsub.f32 %v3748, %v3764
    %v3773 = vsub.f32 %v3749, %v3767
    %v3774 = vmul.f32 %v3768, 1.442695
    %v3775 = vpow.pop %v3774
    %v3776 = vmul.f32 %v3769, 1.442695
    %v3777 = vpow.pop %v3776
    %v3778 = vmul.f32 %v3770, 1.442695
    %v3779 = vpow.pop %v3778
    %v3780 = vmul.f32 %v3771, 1.442695
    %v3781 = vpow.pop %v3780
    %v3782 = vmul.f32 %v3772, 1.442695
    %v3783 = vpow.pop %v3782
    %v3784 = vmul.f32 %v3773, 1.442695
    %v3785 = vpow.pop %v3784
    %v3786 = vsel %vm1615, %v3775, 0.0
    %3787 = vadd.xlane.f32.xlu0 %v3786
    %v3788 = vpop.xlane.xlu0 %3787
    %v3789 = vsel %vm1615, %v3777, 0.0
    %3790 = vadd.xlane.f32.xlu0 %v3789
    %v3791 = vpop.xlane.xlu0 %3790
    %v3792 = vsel %vm1615, %v3779, 0.0
    %3793 = vadd.xlane.f32.xlu0 %v3792
    %v3794 = vpop.xlane.xlu0 %3793
    %v3795 = vsel %vm1615, %v3781, 0.0
    %3796 = vadd.xlane.f32.xlu0 %v3795
    %v3797 = vpop.xlane.xlu0 %3796
    %v3798 = vsel %vm1615, %v3783, 0.0
    %3799 = vadd.xlane.f32.xlu0 %v3798
    %v3800 = vpop.xlane.xlu0 %3799
    %v3801 = vsel %vm1615, %v3785, 0.0
    %3802 = vadd.xlane.f32.xlu0 %v3801
    %v3803 = vpop.xlane.xlu0 %3802
    %v3804 = vrcp.pop %v3788
    %v3805 = vrcp.pop %v3791
    %v3806 = vrcp.pop %v3794
    %v3807 = vrcp.pop %v3797
    %v3808 = vrcp.pop %v3800
    %v3809 = vrcp.pop %v3803
    %v3810 = vmul.f32 %v3775, %v3804
    %v3811 = vmul.f32 %v3777, %v3805
    %v3812 = vmul.f32 %v3779, %v3806
    %v3813 = vmul.f32 %v3781, %v3807
    %v3814 = vmul.f32 %v3783, %v3808
    %v3815 = vmul.f32 %v3785, %v3809
    %v3816 = vpack.c.bf16 %v3811, %v3810
    %v3817 = vpack.c.bf16 %v3813, %v3812
    %v3818 = vpack.c.bf16 %v3815, %v3814
    %v3819 = vmul.f32 %v3464, %v949
    %v3820 = vmul.f32 %v3467, %v949
    %v3821 = vmul.f32 %v3472, %v949
    %v3822 = vmul.f32 %v3475, %v949
    %v3823 = vmul.f32 %v3480, %v949
    %v3824 = vmul.f32 %v3483, %v949
    %v3825 = vpack.c.bf16 %v3820, %v3819
    %v3826 = vpack.c.bf16 %v3822, %v3821
    %v3827 = vpack.c.bf16 %v3824, %v3823
    %v3829 = vsel %vm1615, %v3816, 0
    %v3832 = vsel %vm1615, %v3817, 0
    %v3835 = vsel %vm1615, %v3818, 0
    %3837 = vmatprep.subr.bf16.mxu0 0
    %3838 = vmatpush1.bf16.msra.mxu0 %v3825
    %3839 = vmatprep.subr.bf16.mxu0 0
    %3840 = vmatpush1.bf16.msra.mxu0 %v3826
    %3841 = vmatprep.subr.bf16.mxu0 0
    %3842 = vmatpush1.bf16.msra.mxu0 %v3827
    %3843 = vmatprep.subr.bf16.mxu0 0
    %3844 = vmatpush1.bf16.msra.mxu0 0
    %3845 = vmatprep.subr.bf16.mxu0 0
    %3846 = vmatpush1.bf16.msra.mxu0 0
    %3847 = vmatprep.subr.bf16.mxu0 0
    %3848 = vmatpush1.bf16.msra.mxu0 0
    %3849 = vmatprep.subr.bf16.mxu0 0
    %3850 = vmatpush1.bf16.msra.mxu0 0
    %3851 = vmatprep.subr.bf16.mxu0 0
    %3852 = vmatpush1.bf16.msra.mxu0 0
    %3853 = vmatprep.subr.bf16.mxu0 0
    %3854 = vmatpush1.bf16.msra.mxu0 0
    %3855 = vmatprep.subr.bf16.mxu0 0
    %3856 = vmatpush1.bf16.msra.mxu0 0
    %3857 = vmatprep.subr.bf16.mxu0 0
    %3858 = vmatpush1.bf16.msra.mxu0 0
    %3859 = vmatprep.subr.bf16.mxu0 0
    %3860 = vmatpush1.bf16.msra.mxu0 0
    %3861 = vmatprep.subr.bf16.mxu0 0
    %3862 = vmatpush1.bf16.msra.mxu0 0
    %3863 = vmatprep.subr.bf16.mxu0 0
    %3864 = vmatpush1.bf16.msra.mxu0 0
    %3865 = vmatprep.subr.bf16.mxu0 0
    %3866 = vmatpush1.bf16.msra.mxu0 0
    %3867 = vmatprep.subr.bf16.mxu0 0
    %3868 = vmatpush1.bf16.msra.mxu0 0
    %3869 = vmatprep.mubr.bf16.mxu0 0
    %3870 = vmatmul.mubr.bf16.gmra.mrb[0].mxu0 %v3829
    %v3871 = vpop.f32.mrb[0].mxu0
    %v3872 = vadd.f32 0.0, %v3871
    %v3873 = vpop.f32.mrb[0].mxu0
    %v3874 = vpop.f32.mrb[0].mxu0
    %v3875 = vadd.f32 0.0, %v3874
    %v3876 = vpop.f32.mrb[0].mxu0
    %3877 = vmatprep.mubr.bf16.mxu0 0
    %3878 = vmatmul.mubr.bf16.gmra.mrb[0].mxu0 %v3832
    %v3879 = vpop.f32.mrb[0].mxu0
    %v3880 = vadd.f32 0.0, %v3879
    %v3881 = vpop.f32.mrb[0].mxu0
    %v3882 = vpop.f32.mrb[0].mxu0
    %v3883 = vadd.f32 0.0, %v3882
    %v3884 = vpop.f32.mrb[0].mxu0
    %3885 = vmatprep.mubr.bf16.mxu0 0
    %3886 = vmatmul.mubr.bf16.gmra.mrb[0].mxu0 %v3835
    %v3887 = vpop.f32.mrb[0].mxu0
    %v3888 = vadd.f32 0.0, %v3887
    %v3889 = vpop.f32.mrb[0].mxu0
    %v3890 = vpop.f32.mrb[0].mxu0
    %v3891 = vadd.f32 0.0, %v3890
    %v3892 = vpop.f32.mrb[0].mxu0
    %3893 = vdwg.mxu0
    %v3895 = vsel %vm1615, %v3651, 0
    %v3898 = vsel %vm1615, %v3652, 0
    %v3901 = vsel %vm1615, %v3653, 0
    %3903 = vmatprep.subr.bf16.mxu0 0
    %3904 = vmatpush1.bf16.msra.mxu0 %v3660
    %3905 = vmatprep.subr.bf16.mxu0 0
    %3906 = vmatpush1.bf16.msra.mxu0 %v3661
    %3907 = vmatprep.subr.bf16.mxu0 0
    %3908 = vmatpush1.bf16.msra.mxu0 %v3662
    %3909 = vmatprep.subr.bf16.mxu0 0
    %3910 = vmatpush1.bf16.msra.mxu0 0
    %3911 = vmatprep.subr.bf16.mxu0 0
    %3912 = vmatpush1.bf16.msra.mxu0 0
    %3913 = vmatprep.subr.bf16.mxu0 0
    %3914 = vmatpush1.bf16.msra.mxu0 0
    %3915 = vmatprep.subr.bf16.mxu0 0
    %3916 = vmatpush1.bf16.msra.mxu0 0
    %3917 = vmatprep.subr.bf16.mxu0 0
    %3918 = vmatpush1.bf16.msra.mxu0 0
    %3919 = vmatprep.subr.bf16.mxu0 0
    %3920 = vmatpush1.bf16.msra.mxu0 0
    %3921 = vmatprep.subr.bf16.mxu0 0
    %3922 = vmatpush1.bf16.msra.mxu0 0
    %3923 = vmatprep.subr.bf16.mxu0 0
    %3924 = vmatpush1.bf16.msra.mxu0 0
    %3925 = vmatprep.subr.bf16.mxu0 0
    %3926 = vmatpush1.bf16.msra.mxu0 0
    %3927 = vmatprep.subr.bf16.mxu0 0
    %3928 = vmatpush1.bf16.msra.mxu0 0
    %3929 = vmatprep.subr.bf16.mxu0 0
    %3930 = vmatpush1.bf16.msra.mxu0 0
    %3931 = vmatprep.subr.bf16.mxu0 0
    %3932 = vmatpush1.bf16.msra.mxu0 0
    %3933 = vmatprep.subr.bf16.mxu0 0
    %3934 = vmatpush1.bf16.msra.mxu0 0
    %3935 = vmatprep.mubr.bf16.mxu0 0
    %3936 = vmatmul.mubr.bf16.gmra.mrb[0].mxu0 %v3895
    %v3937 = vpop.f32.mrb[0].mxu0
    %v3938 = vadd.f32 %v3872, %v3937
    %v3939 = vpop.f32.mrb[0].mxu0
    %v3940 = vpop.f32.mrb[0].mxu0
    %v3941 = vadd.f32 %v3875, %v3940
    %v3942 = vpop.f32.mrb[0].mxu0
    %3943 = vmatprep.mubr.bf16.mxu0 0
    %3944 = vmatmul.mubr.bf16.gmra.mrb[0].mxu0 %v3898
    %v3945 = vpop.f32.mrb[0].mxu0
    %v3946 = vadd.f32 %v3880, %v3945
    %v3947 = vpop.f32.mrb[0].mxu0
    %v3948 = vpop.f32.mrb[0].mxu0
    %v3949 = vadd.f32 %v3883, %v3948
    %v3950 = vpop.f32.mrb[0].mxu0
    %3951 = vmatprep.mubr.bf16.mxu0 0
    %3952 = vmatmul.mubr.bf16.gmra.mrb[0].mxu0 %v3901
    %v3953 = vpop.f32.mrb[0].mxu0
    %v3954 = vadd.f32 %v3888, %v3953
    %v3955 = vpop.f32.mrb[0].mxu0
    %v3956 = vpop.f32.mrb[0].mxu0
    %v3957 = vadd.f32 %v3891, %v3956
    %v3958 = vpop.f32.mrb[0].mxu0
    %3959 = vdwg.mxu0
    %v3960 = vmul.f32 %v3201, %v954
    %v3961 = vmul.f32 %v3202, %v954
    %v3962 = vmul.f32 %v3203, %v954
    %v3963 = vmul.f32 %v3204, %v954
    %v3964 = vmul.f32 %v3205, %v954
    %v3965 = vmul.f32 %v3206, %v954
    %v3966 = vpack.c.bf16 %v3961, %v3960
    %v3967 = vpack.c.bf16 %v3963, %v3962
    %v3968 = vpack.c.bf16 %v3965, %v3964
    %v3970 = vsel %vm967, %v3966, 0
    %v3973 = vsel %vm967, %v3967, 0
    %v3976 = vsel %vm967, %v3968, 0
    %3978 = vmatprep.subr.bf16.mxu0 0
    %3979 = vmatpush1.bf16.xpose.msra.mxu0 %v3508
    %3980 = vmatprep.subr.bf16.mxu0 0
    %3981 = vmatpush1.bf16.xpose.msra.mxu0 %v3511
    %3982 = vmatprep.subr.bf16.mxu0 0
    %3983 = vmatpush1.bf16.xpose.msra.mxu0 %v3514
    %3984 = vmatprep.subr.bf16.mxu0 0
    %3985 = vmatpush1.bf16.xpose.msra.mxu0 0
    %3986 = vmatprep.subr.bf16.mxu0 0
    %3987 = vmatpush1.bf16.xpose.msra.mxu0 0
    %3988 = vmatprep.subr.bf16.mxu0 0
    %3989 = vmatpush1.bf16.xpose.msra.mxu0 0
    %3990 = vmatprep.subr.bf16.mxu0 0
    %3991 = vmatpush1.bf16.xpose.msra.mxu0 0
    %3992 = vmatprep.subr.bf16.mxu0 0
    %3993 = vmatpush1.bf16.xpose.msra.mxu0 0
    %3994 = vmatprep.subr.bf16.mxu0 0
    %3995 = vmatpush1.bf16.xpose.msra.mxu0 0
    %3996 = vmatprep.subr.bf16.mxu0 0
    %3997 = vmatpush1.bf16.xpose.msra.mxu0 0
    %3998 = vmatprep.subr.bf16.mxu0 0
    %3999 = vmatpush1.bf16.xpose.msra.mxu0 0
    %4000 = vmatprep.subr.bf16.mxu0 0
    %4001 = vmatpush1.bf16.xpose.msra.mxu0 0
    %4002 = vmatprep.subr.bf16.mxu0 0
    %4003 = vmatpush1.bf16.xpose.msra.mxu0 0
    %4004 = vmatprep.subr.bf16.mxu0 0
    %4005 = vmatpush1.bf16.xpose.msra.mxu0 0
    %4006 = vmatprep.subr.bf16.mxu0 0
    %4007 = vmatpush1.bf16.xpose.msra.mxu0 0
    %4008 = vmatprep.subr.bf16.mxu0 0
    %4009 = vmatpush1.bf16.xpose.msra.mxu0 0
    %4010 = vmatprep.mubr.bf16.mxu0 0
    %4011 = vmatmul.mubr.bf16.gmra.mrb[0].mxu0 %v3970
    %v4012 = vpop.f32.mrb[0].mxu0
    %v4013 = vadd.f32 0.0, %v4012
    %v4014 = vpop.f32.mrb[0].mxu0
    %v4015 = vpop.f32.mrb[0].mxu0
    %v4016 = vadd.f32 0.0, %v4015
    %v4017 = vpop.f32.mrb[0].mxu0
    %4018 = vmatprep.mubr.bf16.mxu0 0
    %4019 = vmatmul.mubr.bf16.gmra.mrb[0].mxu0 %v3973
    %v4020 = vpop.f32.mrb[0].mxu0
    %v4021 = vadd.f32 0.0, %v4020
    %v4022 = vpop.f32.mrb[0].mxu0
    %v4023 = vpop.f32.mrb[0].mxu0
    %v4024 = vadd.f32 0.0, %v4023
    %v4025 = vpop.f32.mrb[0].mxu0
    %4026 = vmatprep.mubr.bf16.mxu0 0
    %4027 = vmatmul.mubr.bf16.gmra.mrb[0].mxu0 %v3976
    %v4028 = vpop.f32.mrb[0].mxu0
    %v4029 = vadd.f32 0.0, %v4028
    %v4030 = vpop.f32.mrb[0].mxu0
    %v4031 = vpop.f32.mrb[0].mxu0
    %v4032 = vadd.f32 0.0, %v4031
    %v4033 = vpop.f32.mrb[0].mxu0
    %4034 = vdwg.mxu0
    %v4035 = vmul.f32 %v4013, 0.35355338
    %v4036 = vmul.f32 %v4016, 0.35355338
    %v4037 = vmul.f32 %v4021, 0.35355338
    %v4038 = vmul.f32 %v4024, 0.35355338
    %v4039 = vmul.f32 %v4029, 0.35355338
    %v4040 = vmul.f32 %v4032, 0.35355338
    %v4041 = vadd.f32 %v4035, %v934
    %v4042 = vadd.f32 %v4036, %v935
    %v4043 = vadd.f32 %v4037, %v936
    %v4044 = vadd.f32 %v4038, %v937
    %v4045 = vadd.f32 %v4039, %v938
    %v4046 = vadd.f32 %v4040, %v939
    %v4047 = vsel %vm1615, %v4041, -inf
    %4048 = vmax.xlane.f32.xlu0 %v4047
    %v4049 = vpop.xlane.xlu0 %4048
    %v4050 = vsel %vm1615, %v4042, -inf
    %4051 = vmax.xlane.f32.xlu0 %v4050
    %v4052 = vpop.xlane.xlu0 %4051
    %v4053 = vsel %vm1615, %v4043, -inf
    %4054 = vmax.xlane.f32.xlu0 %v4053
    %v4055 = vpop.xlane.xlu0 %4054
    %v4056 = vsel %vm1615, %v4044, -inf
    %4057 = vmax.xlane.f32.xlu0 %v4056
    %v4058 = vpop.xlane.xlu0 %4057
    %v4059 = vsel %vm1615, %v4045, -inf
    %4060 = vmax.xlane.f32.xlu0 %v4059
    %v4061 = vpop.xlane.xlu0 %4060
    %v4062 = vsel %vm1615, %v4046, -inf
    %4063 = vmax.xlane.f32.xlu0 %v4062
    %v4064 = vpop.xlane.xlu0 %4063
    %v4065 = vsub.f32 %v4041, %v4049
    %v4066 = vsub.f32 %v4042, %v4052
    %v4067 = vsub.f32 %v4043, %v4055
    %v4068 = vsub.f32 %v4044, %v4058
    %v4069 = vsub.f32 %v4045, %v4061
    %v4070 = vsub.f32 %v4046, %v4064
    %v4071 = vmul.f32 %v4065, 1.442695
    %v4072 = vpow.pop %v4071
    %v4073 = vmul.f32 %v4066, 1.442695
    %v4074 = vpow.pop %v4073
    %v4075 = vmul.f32 %v4067, 1.442695
    %v4076 = vpow.pop %v4075
    %v4077 = vmul.f32 %v4068, 1.442695
    %v4078 = vpow.pop %v4077
    %v4079 = vmul.f32 %v4069, 1.442695
    %v4080 = vpow.pop %v4079
    %v4081 = vmul.f32 %v4070, 1.442695
    %v4082 = vpow.pop %v4081
    %v4083 = vsel %vm1615, %v4072, 0.0
    %4084 = vadd.xlane.f32.xlu0 %v4083
    %v4085 = vpop.xlane.xlu0 %4084
    %v4086 = vsel %vm1615, %v4074, 0.0
    %4087 = vadd.xlane.f32.xlu0 %v4086
    %v4088 = vpop.xlane.xlu0 %4087
    %v4089 = vsel %vm1615, %v4076, 0.0
    %4090 = vadd.xlane.f32.xlu0 %v4089
    %v4091 = vpop.xlane.xlu0 %4090
    %v4092 = vsel %vm1615, %v4078, 0.0
    %4093 = vadd.xlane.f32.xlu0 %v4092
    %v4094 = vpop.xlane.xlu0 %4093
    %v4095 = vsel %vm1615, %v4080, 0.0
    %4096 = vadd.xlane.f32.xlu0 %v4095
    %v4097 = vpop.xlane.xlu0 %4096
    %v4098 = vsel %vm1615, %v4082, 0.0
    %4099 = vadd.xlane.f32.xlu0 %v4098
    %v4100 = vpop.xlane.xlu0 %4099
    %v4101 = vrcp.pop %v4085
    %v4102 = vrcp.pop %v4088
    %v4103 = vrcp.pop %v4091
    %v4104 = vrcp.pop %v4094
    %v4105 = vrcp.pop %v4097
    %v4106 = vrcp.pop %v4100
    %v4107 = vmul.f32 %v4072, %v4101
    %v4108 = vmul.f32 %v4074, %v4102
    %v4109 = vmul.f32 %v4076, %v4103
    %v4110 = vmul.f32 %v4078, %v4104
    %v4111 = vmul.f32 %v4080, %v4105
    %v4112 = vmul.f32 %v4082, %v4106
    %v4113 = vpack.c.bf16 %v4108, %v4107
    %v4114 = vpack.c.bf16 %v4110, %v4109
    %v4115 = vpack.c.bf16 %v4112, %v4111
    %v4116 = vmul.f32 %v3464, %v954
    %v4117 = vmul.f32 %v3467, %v954
    %v4118 = vmul.f32 %v3472, %v954
    %v4119 = vmul.f32 %v3475, %v954
    %v4120 = vmul.f32 %v3480, %v954
    %v4121 = vmul.f32 %v3483, %v954
    %v4122 = vpack.c.bf16 %v4117, %v4116
    %v4123 = vpack.c.bf16 %v4119, %v4118
    %v4124 = vpack.c.bf16 %v4121, %v4120
    %v4126 = vsel %vm1615, %v4113, 0
    %v4129 = vsel %vm1615, %v4114, 0
    %v4132 = vsel %vm1615, %v4115, 0
    %4134 = vmatprep.subr.bf16.mxu0 0
    %4135 = vmatpush1.bf16.msra.mxu0 %v4122
    %4136 = vmatprep.subr.bf16.mxu0 0
    %4137 = vmatpush1.bf16.msra.mxu0 %v4123
    %4138 = vmatprep.subr.bf16.mxu0 0
    %4139 = vmatpush1.bf16.msra.mxu0 %v4124
    %4140 = vmatprep.subr.bf16.mxu0 0
    %4141 = vmatpush1.bf16.msra.mxu0 0
    %4142 = vmatprep.subr.bf16.mxu0 0
    %4143 = vmatpush1.bf16.msra.mxu0 0
    %4144 = vmatprep.subr.bf16.mxu0 0
    %4145 = vmatpush1.bf16.msra.mxu0 0
    %4146 = vmatprep.subr.bf16.mxu0 0
    %4147 = vmatpush1.bf16.msra.mxu0 0
    %4148 = vmatprep.subr.bf16.mxu0 0
    %4149 = vmatpush1.bf16.msra.mxu0 0
    %4150 = vmatprep.subr.bf16.mxu0 0
    %4151 = vmatpush1.bf16.msra.mxu0 0
    %4152 = vmatprep.subr.bf16.mxu0 0
    %4153 = vmatpush1.bf16.msra.mxu0 0
    %4154 = vmatprep.subr.bf16.mxu0 0
    %4155 = vmatpush1.bf16.msra.mxu0 0
    %4156 = vmatprep.subr.bf16.mxu0 0
    %4157 = vmatpush1.bf16.msra.mxu0 0
    %4158 = vmatprep.subr.bf16.mxu0 0
    %4159 = vmatpush1.bf16.msra.mxu0 0
    %4160 = vmatprep.subr.bf16.mxu0 0
    %4161 = vmatpush1.bf16.msra.mxu0 0
    %4162 = vmatprep.subr.bf16.mxu0 0
    %4163 = vmatpush1.bf16.msra.mxu0 0
    %4164 = vmatprep.subr.bf16.mxu0 0
    %4165 = vmatpush1.bf16.msra.mxu0 0
    %4166 = vmatprep.mubr.bf16.mxu0 0
    %4167 = vmatmul.mubr.bf16.gmra.mrb[0].mxu0 %v4126
    %v4168 = vpop.f32.mrb[0].mxu0
    %v4169 = vadd.f32 0.0, %v4168
    %v4170 = vpop.f32.mrb[0].mxu0
    %v4171 = vpop.f32.mrb[0].mxu0
    %v4172 = vadd.f32 0.0, %v4171
    %v4173 = vpop.f32.mrb[0].mxu0
    %4174 = vmatprep.mubr.bf16.mxu0 0
    %4175 = vmatmul.mubr.bf16.gmra.mrb[0].mxu0 %v4129
    %v4176 = vpop.f32.mrb[0].mxu0
    %v4177 = vadd.f32 0.0, %v4176
    %v4178 = vpop.f32.mrb[0].mxu0
    %v4179 = vpop.f32.mrb[0].mxu0
    %v4180 = vadd.f32 0.0, %v4179
    %v4181 = vpop.f32.mrb[0].mxu0
    %4182 = vmatprep.mubr.bf16.mxu0 0
    %4183 = vmatmul.mubr.bf16.gmra.mrb[0].mxu0 %v4132
    %v4184 = vpop.f32.mrb[0].mxu0
    %v4185 = vadd.f32 0.0, %v4184
    %v4186 = vpop.f32.mrb[0].mxu0
    %v4187 = vpop.f32.mrb[0].mxu0
    %v4188 = vadd.f32 0.0, %v4187
    %v4189 = vpop.f32.mrb[0].mxu0
    %4190 = vdwg.mxu0
    %v4191 = vadd.f32 %v3938, %v4169
    %v4192 = vadd.f32 %v3941, %v4172
    %v4193 = vadd.f32 %v3946, %v4177
    %v4194 = vadd.f32 %v3949, %v4180
    %v4195 = vadd.f32 %v3954, %v4185
    %v4196 = vadd.f32 %v3957, %v4188
    %v4197 = vmul.f32 %v3201, %v959
    %v4198 = vmul.f32 %v3202, %v959
    %v4199 = vmul.f32 %v3203, %v959
    %v4200 = vmul.f32 %v3204, %v959
    %v4201 = vmul.f32 %v3205, %v959
    %v4202 = vmul.f32 %v3206, %v959
    %v4203 = vpack.c.bf16 %v4198, %v4197
    %v4204 = vpack.c.bf16 %v4200, %v4199
    %v4205 = vpack.c.bf16 %v4202, %v4201
    %v4207 = vsel %vm967, %v4203, 0
    %v4210 = vsel %vm967, %v4204, 0
    %v4213 = vsel %vm967, %v4205, 0
    %4215 = vmatprep.subr.bf16.mxu0 0
    %4216 = vmatpush1.bf16.xpose.msra.mxu0 %v3508
    %4217 = vmatprep.subr.bf16.mxu0 0
    %4218 = vmatpush1.bf16.xpose.msra.mxu0 %v3511
    %4219 = vmatprep.subr.bf16.mxu0 0
    %4220 = vmatpush1.bf16.xpose.msra.mxu0 %v3514
    %4221 = vmatprep.subr.bf16.mxu0 0
    %4222 = vmatpush1.bf16.xpose.msra.mxu0 0
    %4223 = vmatprep.subr.bf16.mxu0 0
    %4224 = vmatpush1.bf16.xpose.msra.mxu0 0
    %4225 = vmatprep.subr.bf16.mxu0 0
    %4226 = vmatpush1.bf16.xpose.msra.mxu0 0
    %4227 = vmatprep.subr.bf16.mxu0 0
    %4228 = vmatpush1.bf16.xpose.msra.mxu0 0
    %4229 = vmatprep.subr.bf16.mxu0 0
    %4230 = vmatpush1.bf16.xpose.msra.mxu0 0
    %4231 = vmatprep.subr.bf16.mxu0 0
    %4232 = vmatpush1.bf16.xpose.msra.mxu0 0
    %4233 = vmatprep.subr.bf16.mxu0 0
    %4234 = vmatpush1.bf16.xpose.msra.mxu0 0
    %4235 = vmatprep.subr.bf16.mxu0 0
    %4236 = vmatpush1.bf16.xpose.msra.mxu0 0
    %4237 = vmatprep.subr.bf16.mxu0 0
    %4238 = vmatpush1.bf16.xpose.msra.mxu0 0
    %4239 = vmatprep.subr.bf16.mxu0 0
    %4240 = vmatpush1.bf16.xpose.msra.mxu0 0
    %4241 = vmatprep.subr.bf16.mxu0 0
    %4242 = vmatpush1.bf16.xpose.msra.mxu0 0
    %4243 = vmatprep.subr.bf16.mxu0 0
    %4244 = vmatpush1.bf16.xpose.msra.mxu0 0
    %4245 = vmatprep.subr.bf16.mxu0 0
    %4246 = vmatpush1.bf16.xpose.msra.mxu0 0
    %4247 = vmatprep.mubr.bf16.mxu0 0
    %4248 = vmatmul.mubr.bf16.gmra.mrb[0].mxu0 %v4207
    %v4249 = vpop.f32.mrb[0].mxu0
    %v4250 = vadd.f32 0.0, %v4249
    %v4251 = vpop.f32.mrb[0].mxu0
    %v4252 = vpop.f32.mrb[0].mxu0
    %v4253 = vadd.f32 0.0, %v4252
    %v4254 = vpop.f32.mrb[0].mxu0
    %4255 = vmatprep.mubr.bf16.mxu0 0
    %4256 = vmatmul.mubr.bf16.gmra.mrb[0].mxu0 %v4210
    %v4257 = vpop.f32.mrb[0].mxu0
    %v4258 = vadd.f32 0.0, %v4257
    %v4259 = vpop.f32.mrb[0].mxu0
    %v4260 = vpop.f32.mrb[0].mxu0
    %v4261 = vadd.f32 0.0, %v4260
    %v4262 = vpop.f32.mrb[0].mxu0
    %4263 = vmatprep.mubr.bf16.mxu0 0
    %4264 = vmatmul.mubr.bf16.gmra.mrb[0].mxu0 %v4213
    %v4265 = vpop.f32.mrb[0].mxu0
    %v4266 = vadd.f32 0.0, %v4265
    %v4267 = vpop.f32.mrb[0].mxu0
    %v4268 = vpop.f32.mrb[0].mxu0
    %v4269 = vadd.f32 0.0, %v4268
    %v4270 = vpop.f32.mrb[0].mxu0
    %4271 = vdwg.mxu0
    %v4272 = vmul.f32 %v4250, 0.35355338
    %v4273 = vmul.f32 %v4253, 0.35355338
    %v4274 = vmul.f32 %v4258, 0.35355338
    %v4275 = vmul.f32 %v4261, 0.35355338
    %v4276 = vmul.f32 %v4266, 0.35355338
    %v4277 = vmul.f32 %v4269, 0.35355338
    %v4278 = vadd.f32 %v4272, %v934
    %v4279 = vadd.f32 %v4273, %v935
    %v4280 = vadd.f32 %v4274, %v936
    %v4281 = vadd.f32 %v4275, %v937
    %v4282 = vadd.f32 %v4276, %v938
    %v4283 = vadd.f32 %v4277, %v939
    %v4284 = vsel %vm1615, %v4278, -inf
    %4285 = vmax.xlane.f32.xlu0 %v4284
    %v4286 = vpop.xlane.xlu0 %4285
    %v4287 = vsel %vm1615, %v4279, -inf
    %4288 = vmax.xlane.f32.xlu0 %v4287
    %v4289 = vpop.xlane.xlu0 %4288
    %v4290 = vsel %vm1615, %v4280, -inf
    %4291 = vmax.xlane.f32.xlu0 %v4290
    %v4292 = vpop.xlane.xlu0 %4291
    %v4293 = vsel %vm1615, %v4281, -inf
    %4294 = vmax.xlane.f32.xlu0 %v4293
    %v4295 = vpop.xlane.xlu0 %4294
    %v4296 = vsel %vm1615, %v4282, -inf
    %4297 = vmax.xlane.f32.xlu0 %v4296
    %v4298 = vpop.xlane.xlu0 %4297
    %v4299 = vsel %vm1615, %v4283, -inf
    %4300 = vmax.xlane.f32.xlu0 %v4299
    %v4301 = vpop.xlane.xlu0 %4300
    %v4302 = vsub.f32 %v4278, %v4286
    %v4303 = vsub.f32 %v4279, %v4289
    %v4304 = vsub.f32 %v4280, %v4292
    %v4305 = vsub.f32 %v4281, %v4295
    %v4306 = vsub.f32 %v4282, %v4298
    %v4307 = vsub.f32 %v4283, %v4301
    %v4308 = vmul.f32 %v4302, 1.442695
    %v4309 = vpow.pop %v4308
    %v4310 = vmul.f32 %v4303, 1.442695
    %v4311 = vpow.pop %v4310
    %v4312 = vmul.f32 %v4304, 1.442695
    %v4313 = vpow.pop %v4312
    %v4314 = vmul.f32 %v4305, 1.442695
    %v4315 = vpow.pop %v4314
    %v4316 = vmul.f32 %v4306, 1.442695
    %v4317 = vpow.pop %v4316
    %v4318 = vmul.f32 %v4307, 1.442695
    %v4319 = vpow.pop %v4318
    %v4320 = vsel %vm1615, %v4309, 0.0
    %4321 = vadd.xlane.f32.xlu0 %v4320
    %v4322 = vpop.xlane.xlu0 %4321
    %v4323 = vsel %vm1615, %v4311, 0.0
    %4324 = vadd.xlane.f32.xlu0 %v4323
    %v4325 = vpop.xlane.xlu0 %4324
    %v4326 = vsel %vm1615, %v4313, 0.0
    %4327 = vadd.xlane.f32.xlu0 %v4326
    %v4328 = vpop.xlane.xlu0 %4327
    %v4329 = vsel %vm1615, %v4315, 0.0
    %4330 = vadd.xlane.f32.xlu0 %v4329
    %v4331 = vpop.xlane.xlu0 %4330
    %v4332 = vsel %vm1615, %v4317, 0.0
    %4333 = vadd.xlane.f32.xlu0 %v4332
    %v4334 = vpop.xlane.xlu0 %4333
    %v4335 = vsel %vm1615, %v4319, 0.0
    %4336 = vadd.xlane.f32.xlu0 %v4335
    %v4337 = vpop.xlane.xlu0 %4336
    %v4338 = vrcp.pop %v4322
    %v4339 = vrcp.pop %v4325
    %v4340 = vrcp.pop %v4328
    %v4341 = vrcp.pop %v4331
    %v4342 = vrcp.pop %v4334
    %v4343 = vrcp.pop %v4337
    %v4344 = vmul.f32 %v4309, %v4338
    %v4345 = vmul.f32 %v4311, %v4339
    %v4346 = vmul.f32 %v4313, %v4340
    %v4347 = vmul.f32 %v4315, %v4341
    %v4348 = vmul.f32 %v4317, %v4342
    %v4349 = vmul.f32 %v4319, %v4343
    %v4350 = vpack.c.bf16 %v4345, %v4344
    %v4351 = vpack.c.bf16 %v4347, %v4346
    %v4352 = vpack.c.bf16 %v4349, %v4348
    %v4353 = vmul.f32 %v3464, %v959
    %v4354 = vmul.f32 %v3467, %v959
    %v4355 = vmul.f32 %v3472, %v959
    %v4356 = vmul.f32 %v3475, %v959
    %v4357 = vmul.f32 %v3480, %v959
    %v4358 = vmul.f32 %v3483, %v959
    %v4359 = vpack.c.bf16 %v4354, %v4353
    %v4360 = vpack.c.bf16 %v4356, %v4355
    %v4361 = vpack.c.bf16 %v4358, %v4357
    %v4363 = vsel %vm1615, %v4350, 0
    %v4366 = vsel %vm1615, %v4351, 0
    %v4369 = vsel %vm1615, %v4352, 0
    %4371 = vmatprep.subr.bf16.mxu0 0
    %4372 = vmatpush1.bf16.msra.mxu0 %v4359
    %4373 = vmatprep.subr.bf16.mxu0 0
    %4374 = vmatpush1.bf16.msra.mxu0 %v4360
    %4375 = vmatprep.subr.bf16.mxu0 0
    %4376 = vmatpush1.bf16.msra.mxu0 %v4361
    %4377 = vmatprep.subr.bf16.mxu0 0
    %4378 = vmatpush1.bf16.msra.mxu0 0
    %4379 = vmatprep.subr.bf16.mxu0 0
    %4380 = vmatpush1.bf16.msra.mxu0 0
    %4381 = vmatprep.subr.bf16.mxu0 0
    %4382 = vmatpush1.bf16.msra.mxu0 0
    %4383 = vmatprep.subr.bf16.mxu0 0
    %4384 = vmatpush1.bf16.msra.mxu0 0
    %4385 = vmatprep.subr.bf16.mxu0 0
    %4386 = vmatpush1.bf16.msra.mxu0 0
    %4387 = vmatprep.subr.bf16.mxu0 0
    %4388 = vmatpush1.bf16.msra.mxu0 0
    %4389 = vmatprep.subr.bf16.mxu0 0
    %4390 = vmatpush1.bf16.msra.mxu0 0
    %4391 = vmatprep.subr.bf16.mxu0 0
    %4392 = vmatpush1.bf16.msra.mxu0 0
    %4393 = vmatprep.subr.bf16.mxu0 0
    %4394 = vmatpush1.bf16.msra.mxu0 0
    %4395 = vmatprep.subr.bf16.mxu0 0
    %4396 = vmatpush1.bf16.msra.mxu0 0
    %4397 = vmatprep.subr.bf16.mxu0 0
    %4398 = vmatpush1.bf16.msra.mxu0 0
    %4399 = vmatprep.subr.bf16.mxu0 0
    %4400 = vmatpush1.bf16.msra.mxu0 0
    %4401 = vmatprep.subr.bf16.mxu0 0
    %4402 = vmatpush1.bf16.msra.mxu0 0
    %4403 = vmatprep.mubr.bf16.mxu0 0
    %4404 = vmatmul.mubr.bf16.gmra.mrb[0].mxu0 %v4363
    %v4405 = vpop.f32.mrb[0].mxu0
    %v4406 = vadd.f32 0.0, %v4405
    %v4407 = vpop.f32.mrb[0].mxu0
    %v4408 = vpop.f32.mrb[0].mxu0
    %v4409 = vadd.f32 0.0, %v4408
    %v4410 = vpop.f32.mrb[0].mxu0
    %4411 = vmatprep.mubr.bf16.mxu0 0
    %4412 = vmatmul.mubr.bf16.gmra.mrb[0].mxu0 %v4366
    %v4413 = vpop.f32.mrb[0].mxu0
    %v4414 = vadd.f32 0.0, %v4413
    %v4415 = vpop.f32.mrb[0].mxu0
    %v4416 = vpop.f32.mrb[0].mxu0
    %v4417 = vadd.f32 0.0, %v4416
    %v4418 = vpop.f32.mrb[0].mxu0
    %4419 = vmatprep.mubr.bf16.mxu0 0
    %4420 = vmatmul.mubr.bf16.gmra.mrb[0].mxu0 %v4369
    %v4421 = vpop.f32.mrb[0].mxu0
    %v4422 = vadd.f32 0.0, %v4421
    %v4423 = vpop.f32.mrb[0].mxu0
    %v4424 = vpop.f32.mrb[0].mxu0
    %v4425 = vadd.f32 0.0, %v4424
    %v4426 = vpop.f32.mrb[0].mxu0
    %4427 = vdwg.mxu0
    %v4428 = vadd.f32 %v4191, %v4406
    %v4429 = vadd.f32 %v4192, %v4409
    %v4430 = vadd.f32 %v4193, %v4414
    %v4431 = vadd.f32 %v4194, %v4417
    %v4432 = vadd.f32 %v4195, %v4422
    %v4433 = vadd.f32 %v4196, %v4425
    %v4434 = vpack.c.bf16 %v4429, %v4428
    %v4435 = vpack.c.bf16 %v4431, %v4430
    %v4436 = vpack.c.bf16 %v4433, %v4432
    %s4437 = scalar_lea.vmem [#allocation16], 112
    %v4438 = vld [vmem:[%s4437] sm:$0xf]
    %v4439 = vld [vmem:[%s4437 + $0x4] sm:$0xf]
    %v4440 = vld [vmem:[%s4437 + $0x8] sm:$0xf]
    %v4441 = vld [vmem:[%s4437 + $0xc] sm:$0xf]
    %v4446 = vunpack.c.l.b16 %v4438
    %v4447 = vunpack.c.l.b16 %v4439
    %v4448 = vunpack.c.l.b16 %v4440
    %v4449 = vunpack.c.l.b16 %v4441
    %v4450 = vpack.c.b16 %v4447, %v4446
    %v4451 = vpack.c.b16 %v4449, %v4448
    %v4455 = vsel %vm967, %v4434, 0
    %v4458 = vsel %vm967, %v4435, 0
    %v4461 = vsel %vm967, %v4436, 0
    %4463 = vmatprep.subr.bf16.mxu0 0
    %4464 = vmatpush1.bf16.msra.mxu0 %v4450
    %4465 = vmatprep.subr.bf16.mxu0 0
    %4466 = vmatpush1.bf16.msra.mxu0 %v4451
    %4467 = vmatprep.subr.bf16.mxu0 0
    %4468 = vmatpush1.bf16.msra.mxu0 0
    %4469 = vmatprep.subr.bf16.mxu0 0
    %4470 = vmatpush1.bf16.msra.mxu0 0
    %4471 = vmatprep.subr.bf16.mxu0 0
    %4472 = vmatpush1.bf16.msra.mxu0 0
    %4473 = vmatprep.subr.bf16.mxu0 0
    %4474 = vmatpush1.bf16.msra.mxu0 0
    %4475 = vmatprep.subr.bf16.mxu0 0
    %4476 = vmatpush1.bf16.msra.mxu0 0
    %4477 = vmatprep.subr.bf16.mxu0 0
    %4478 = vmatpush1.bf16.msra.mxu0 0
    %4479 = vmatprep.subr.bf16.mxu0 0
    %4480 = vmatpush1.bf16.msra.mxu0 0
    %4481 = vmatprep.subr.bf16.mxu0 0
    %4482 = vmatpush1.bf16.msra.mxu0 0
    %4483 = vmatprep.subr.bf16.mxu0 0
    %4484 = vmatpush1.bf16.msra.mxu0 0
    %4485 = vmatprep.subr.bf16.mxu0 0
    %4486 = vmatpush1.bf16.msra.mxu0 0
    %4487 = vmatprep.subr.bf16.mxu0 0
    %4488 = vmatpush1.bf16.msra.mxu0 0
    %4489 = vmatprep.subr.bf16.mxu0 0
    %4490 = vmatpush1.bf16.msra.mxu0 0
    %4491 = vmatprep.subr.bf16.mxu0 0
    %4492 = vmatpush1.bf16.msra.mxu0 0
    %4493 = vmatprep.subr.bf16.mxu0 0
    %4494 = vmatpush1.bf16.msra.mxu0 0
    %4495 = vmatprep.mubr.bf16.mxu0 0
    %4496 = vmatmul.mubr.bf16.gmra.mrb[0].mxu0 %v4455
    %v4497 = vpop.f32.mrb[0].mxu0
    %v4498 = vadd.f32 0.0, %v4497
    %v4499 = vpop.f32.mrb[0].mxu0
    %v4500 = vpop.f32.mrb[0].mxu0
    %v4501 = vadd.f32 0.0, %v4500
    %v4502 = vpop.f32.mrb[0].mxu0
    %4503 = vmatprep.mubr.bf16.mxu0 0
    %4504 = vmatmul.mubr.bf16.gmra.mrb[0].mxu0 %v4458
    %v4505 = vpop.f32.mrb[0].mxu0
    %v4506 = vadd.f32 0.0, %v4505
    %v4507 = vpop.f32.mrb[0].mxu0
    %v4508 = vpop.f32.mrb[0].mxu0
    %v4509 = vadd.f32 0.0, %v4508
    %v4510 = vpop.f32.mrb[0].mxu0
    %4511 = vmatprep.mubr.bf16.mxu0 0
    %4512 = vmatmul.mubr.bf16.gmra.mrb[0].mxu0 %v4461
    %v4513 = vpop.f32.mrb[0].mxu0
    %v4514 = vadd.f32 0.0, %v4513
    %v4515 = vpop.f32.mrb[0].mxu0
    %v4516 = vpop.f32.mrb[0].mxu0
    %v4517 = vadd.f32 0.0, %v4516
    %v4518 = vpop.f32.mrb[0].mxu0
    %4519 = vdwg.mxu0
    %v4520 = vadd.f32 %v2925, %v4498
    %v4521 = vadd.f32 %v2926, %v4501
    %v4522 = vadd.f32 %v2927, %v4506
    %v4523 = vadd.f32 %v2928, %v4509
    %v4524 = vadd.f32 %v2929, %v4514
    %v4525 = vadd.f32 %v2930, %v4517
    %v4526 = vld [vmem:[#allocation15 + $0x5] sm:$0x1]
    %v4527 = vmul.f32 %v4520, %v4520
    %v4528 = vmul.f32 %v4521, %v4521
    %v4529 = vmul.f32 %v4522, %v4522
    %v4530 = vmul.f32 %v4523, %v4523
    %v4531 = vmul.f32 %v4524, %v4524
    %v4532 = vmul.f32 %v4525, %v4525
    %v4533 = vsel %vm967, %v4527, 0.0
    %4534 = vadd.xlane.f32.xlu0 %v4533
    %v4535 = vpop.xlane.xlu0 %4534
    %v4536 = vsel %vm967, %v4528, 0.0
    %4537 = vadd.xlane.f32.xlu0 %v4536
    %v4538 = vpop.xlane.xlu0 %4537
    %v4539 = vsel %vm967, %v4529, 0.0
    %4540 = vadd.xlane.f32.xlu0 %v4539
    %v4541 = vpop.xlane.xlu0 %4540
    %v4542 = vsel %vm967, %v4530, 0.0
    %4543 = vadd.xlane.f32.xlu0 %v4542
    %v4544 = vpop.xlane.xlu0 %4543
    %v4545 = vsel %vm967, %v4531, 0.0
    %4546 = vadd.xlane.f32.xlu0 %v4545
    %v4547 = vpop.xlane.xlu0 %4546
    %v4548 = vsel %vm967, %v4532, 0.0
    %4549 = vadd.xlane.f32.xlu0 %v4548
    %v4550 = vpop.xlane.xlu0 %4549
    %v4551 = vmul.f32 %v4535, %v986
    %v4552 = vmul.f32 %v4538, %v986
    %v4553 = vmul.f32 %v4541, %v986
    %v4554 = vmul.f32 %v4544, %v986
    %v4555 = vmul.f32 %v4547, %v986
    %v4556 = vmul.f32 %v4550, %v986
    %v4557 = vadd.f32 %v4551, 1e-05
    %v4558 = vadd.f32 %v4552, 1e-05
    %v4559 = vadd.f32 %v4553, 1e-05
    %v4560 = vadd.f32 %v4554, 1e-05
    %v4561 = vadd.f32 %v4555, 1e-05
    %v4562 = vadd.f32 %v4556, 1e-05
    %v4563 = vrsqrt.pop %v4557
    %v4564 = vrsqrt.pop %v4558
    %v4565 = vrsqrt.pop %v4559
    %v4566 = vrsqrt.pop %v4560
    %v4567 = vrsqrt.pop %v4561
    %v4568 = vrsqrt.pop %v4562
    %v4569 = vmul.f32 %v4520, %v4563
    %v4570 = vmul.f32 %v4521, %v4564
    %v4571 = vmul.f32 %v4522, %v4565
    %v4572 = vmul.f32 %v4523, %v4566
    %v4573 = vmul.f32 %v4524, %v4567
    %v4574 = vmul.f32 %v4525, %v4568
    %v4575 = vlaneseq
    %v4576 = vshrl.u32 %v4575, 7
    %v4577 = vsub.s32 0, %v4576
    %v4578 = vrot.slane %v4526, %v4577
    %v4579 = vmul.f32 %v4569, %v4578
    %v4580 = vmul.f32 %v4570, %v4578
    %v4581 = vmul.f32 %v4571, %v4578
    %v4582 = vmul.f32 %v4572, %v4578
    %v4583 = vmul.f32 %v4573, %v4578
    %v4584 = vmul.f32 %v4574, %v4578
    %v4585 = vpack.c.bf16 %v4580, %v4579
    %v4586 = vpack.c.bf16 %v4582, %v4581
    %v4587 = vpack.c.bf16 %v4584, %v4583
    %s4588 = scalar_lea.vmem [#allocation18], 32
    %v4589 = vld [vmem:[%s4588] sm:$0xf]
    %v4590 = vld [vmem:[%s4588 + $0x4] sm:$0xf]
    %v4591 = vld [vmem:[%s4588 + $0x8] sm:$0xf]
    %v4592 = vld [vmem:[%s4588 + $0xc] sm:$0xf]
    %v4597 = vunpack.c.l.b16 %v4589
    %v4598 = vunpack.c.l.b16 %v4590
    %v4599 = vunpack.c.l.b16 %v4591
    %v4600 = vunpack.c.l.b16 %v4592
    %v4601 = vpack.c.b16 %v4598, %v4597
    %v4602 = vpack.c.b16 %v4600, %v4599
    %v4606 = vsel %vm967, %v4585, 0
    %v4609 = vsel %vm967, %v4586, 0
    %v4612 = vsel %vm967, %v4587, 0
    %4614 = vmatprep.subr.bf16.mxu0 0
    %4615 = vmatpush1.bf16.msra.mxu0 %v4601
    %4616 = vmatprep.subr.bf16.mxu0 0
    %4617 = vmatpush1.bf16.msra.mxu0 %v4602
    %4618 = vmatprep.subr.bf16.mxu0 0
    %4619 = vmatpush1.bf16.msra.mxu0 0
    %4620 = vmatprep.subr.bf16.mxu0 0
    %4621 = vmatpush1.bf16.msra.mxu0 0
    %4622 = vmatprep.subr.bf16.mxu0 0
    %4623 = vmatpush1.bf16.msra.mxu0 0
    %4624 = vmatprep.subr.bf16.mxu0 0
    %4625 = vmatpush1.bf16.msra.mxu0 0
    %4626 = vmatprep.subr.bf16.mxu0 0
    %4627 = vmatpush1.bf16.msra.mxu0 0
    %4628 = vmatprep.subr.bf16.mxu0 0
    %4629 = vmatpush1.bf16.msra.mxu0 0
    %4630 = vmatprep.subr.bf16.mxu0 0
    %4631 = vmatpush1.bf16.msra.mxu0 0
    %4632 = vmatprep.subr.bf16.mxu0 0
    %4633 = vmatpush1.bf16.msra.mxu0 0
    %4634 = vmatprep.subr.bf16.mxu0 0
    %4635 = vmatpush1.bf16.msra.mxu0 0
    %4636 = vmatprep.subr.bf16.mxu0 0
    %4637 = vmatpush1.bf16.msra.mxu0 0
    %4638 = vmatprep.subr.bf16.mxu0 0
    %4639 = vmatpush1.bf16.msra.mxu0 0
    %4640 = vmatprep.subr.bf16.mxu0 0
    %4641 = vmatpush1.bf16.msra.mxu0 0
    %4642 = vmatprep.subr.bf16.mxu0 0
    %4643 = vmatpush1.bf16.msra.mxu0 0
    %4644 = vmatprep.subr.bf16.mxu0 0
    %4645 = vmatpush1.bf16.msra.mxu0 0
    %4646 = vmatprep.mubr.bf16.mxu0 0
    %4647 = vmatmul.mubr.bf16.gmra.mrb[0].mxu0 %v4606
    %v4648 = vpop.f32.mrb[0].mxu0
    %v4649 = vadd.f32 0.0, %v4648
    %v4650 = vpop.f32.mrb[0].mxu0
    %v4651 = vpop.f32.mrb[0].mxu0
    %v4652 = vadd.f32 0.0, %v4651
    %v4653 = vpop.f32.mrb[0].mxu0
    %4654 = vmatprep.mubr.bf16.mxu0 0
    %4655 = vmatmul.mubr.bf16.gmra.mrb[0].mxu0 %v4609
    %v4656 = vpop.f32.mrb[0].mxu0
    %v4657 = vadd.f32 0.0, %v4656
    %v4658 = vpop.f32.mrb[0].mxu0
    %v4659 = vpop.f32.mrb[0].mxu0
    %v4660 = vadd.f32 0.0, %v4659
    %v4661 = vpop.f32.mrb[0].mxu0
    %4662 = vmatprep.mubr.bf16.mxu0 0
    %4663 = vmatmul.mubr.bf16.gmra.mrb[0].mxu0 %v4612
    %v4664 = vpop.f32.mrb[0].mxu0
    %v4665 = vadd.f32 0.0, %v4664
    %v4666 = vpop.f32.mrb[0].mxu0
    %v4667 = vpop.f32.mrb[0].mxu0
    %v4668 = vadd.f32 0.0, %v4667
    %v4669 = vpop.f32.mrb[0].mxu0
    %4670 = vdwg.mxu0
    %s4671 = scalar_lea.vmem [#allocation18], 48
    %v4672 = vld [vmem:[%s4671] sm:$0xf]
    %v4673 = vld [vmem:[%s4671 + $0x4] sm:$0xf]
    %v4674 = vld [vmem:[%s4671 + $0x8] sm:$0xf]
    %v4675 = vld [vmem:[%s4671 + $0xc] sm:$0xf]
    %v4680 = vunpack.c.l.b16 %v4672
    %v4681 = vunpack.c.l.b16 %v4673
    %v4682 = vunpack.c.l.b16 %v4674
    %v4683 = vunpack.c.l.b16 %v4675
    %v4684 = vpack.c.b16 %v4681, %v4680
    %v4685 = vpack.c.b16 %v4683, %v4682
    %4688 = vmatprep.subr.bf16.mxu0 0
    %4689 = vmatpush1.bf16.msra.mxu0 %v4684
    %4690 = vmatprep.subr.bf16.mxu0 0
    %4691 = vmatpush1.bf16.msra.mxu0 %v4685
    %4692 = vmatprep.subr.bf16.mxu0 0
    %4693 = vmatpush1.bf16.msra.mxu0 0
    %4694 = vmatprep.subr.bf16.mxu0 0
    %4695 = vmatpush1.bf16.msra.mxu0 0
    %4696 = vmatprep.subr.bf16.mxu0 0
    %4697 = vmatpush1.bf16.msra.mxu0 0
    %4698 = vmatprep.subr.bf16.mxu0 0
    %4699 = vmatpush1.bf16.msra.mxu0 0
    %4700 = vmatprep.subr.bf16.mxu0 0
    %4701 = vmatpush1.bf16.msra.mxu0 0
    %4702 = vmatprep.subr.bf16.mxu0 0
    %4703 = vmatpush1.bf16.msra.mxu0 0
    %4704 = vmatprep.subr.bf16.mxu0 0
    %4705 = vmatpush1.bf16.msra.mxu0 0
    %4706 = vmatprep.subr.bf16.mxu0 0
    %4707 = vmatpush1.bf16.msra.mxu0 0
    %4708 = vmatprep.subr.bf16.mxu0 0
    %4709 = vmatpush1.bf16.msra.mxu0 0
    %4710 = vmatprep.subr.bf16.mxu0 0
    %4711 = vmatpush1.bf16.msra.mxu0 0
    %4712 = vmatprep.subr.bf16.mxu0 0
    %4713 = vmatpush1.bf16.msra.mxu0 0
    %4714 = vmatprep.subr.bf16.mxu0 0
    %4715 = vmatpush1.bf16.msra.mxu0 0
    %4716 = vmatprep.subr.bf16.mxu0 0
    %4717 = vmatpush1.bf16.msra.mxu0 0
    %4718 = vmatprep.subr.bf16.mxu0 0
    %4719 = vmatpush1.bf16.msra.mxu0 0
    %4720 = vmatprep.mubr.bf16.mxu0 0
    %4721 = vmatmul.mubr.bf16.gmra.mrb[0].mxu0 %v4606
    %v4722 = vpop.f32.mrb[0].mxu0
    %v4723 = vadd.f32 0.0, %v4722
    %v4724 = vpop.f32.mrb[0].mxu0
    %v4725 = vpop.f32.mrb[0].mxu0
    %v4726 = vadd.f32 0.0, %v4725
    %v4727 = vpop.f32.mrb[0].mxu0
    %4728 = vmatprep.mubr.bf16.mxu0 0
    %4729 = vmatmul.mubr.bf16.gmra.mrb[0].mxu0 %v4609
    %v4730 = vpop.f32.mrb[0].mxu0
    %v4731 = vadd.f32 0.0, %v4730
    %v4732 = vpop.f32.mrb[0].mxu0
    %v4733 = vpop.f32.mrb[0].mxu0
    %v4734 = vadd.f32 0.0, %v4733
    %v4735 = vpop.f32.mrb[0].mxu0
    %4736 = vmatprep.mubr.bf16.mxu0 0
    %4737 = vmatmul.mubr.bf16.gmra.mrb[0].mxu0 %v4612
    %v4738 = vpop.f32.mrb[0].mxu0
    %v4739 = vadd.f32 0.0, %v4738
    %v4740 = vpop.f32.mrb[0].mxu0
    %v4741 = vpop.f32.mrb[0].mxu0
    %v4742 = vadd.f32 0.0, %v4741
    %v4743 = vpop.f32.mrb[0].mxu0
    %4744 = vdwg.mxu0
    %v4745 = vxor.u32 %v4649, 2147483648
    %v4746 = vxor.u32 %v4652, 2147483648
    %v4747 = vxor.u32 %v4657, 2147483648
    %v4748 = vxor.u32 %v4660, 2147483648
    %v4749 = vxor.u32 %v4665, 2147483648
    %v4750 = vxor.u32 %v4668, 2147483648
    %v4751 = vmul.f32 %v4745, 1.442695
    %v4752 = vpow.pop %v4751
    %v4753 = vmul.f32 %v4746, 1.442695
    %v4754 = vpow.pop %v4753
    %v4755 = vmul.f32 %v4747, 1.442695
    %v4756 = vpow.pop %v4755
    %v4757 = vmul.f32 %v4748, 1.442695
    %v4758 = vpow.pop %v4757
    %v4759 = vmul.f32 %v4749, 1.442695
    %v4760 = vpow.pop %v4759
    %v4761 = vmul.f32 %v4750, 1.442695
    %v4762 = vpow.pop %v4761
    %v4763 = vadd.f32 %v4752, 1.0
    %v4764 = vadd.f32 %v4754, 1.0
    %v4765 = vadd.f32 %v4756, 1.0
    %v4766 = vadd.f32 %v4758, 1.0
    %v4767 = vadd.f32 %v4760, 1.0
    %v4768 = vadd.f32 %v4762, 1.0
    %v4769 = vrcp.pop %v4763
    %v4770 = vmul.f32 1.0, %v4769
    %v4771 = vrcp.pop %v4764
    %v4772 = vmul.f32 1.0, %v4771
    %v4773 = vrcp.pop %v4765
    %v4774 = vmul.f32 1.0, %v4773
    %v4775 = vrcp.pop %v4766
    %v4776 = vmul.f32 1.0, %v4775
    %v4777 = vrcp.pop %v4767
    %v4778 = vmul.f32 1.0, %v4777
    %v4779 = vrcp.pop %v4768
    %v4780 = vmul.f32 1.0, %v4779
    %v4781 = vmul.f32 %v4649, %v4770
    %v4782 = vmul.f32 %v4652, %v4772
    %v4783 = vmul.f32 %v4657, %v4774
    %v4784 = vmul.f32 %v4660, %v4776
    %v4785 = vmul.f32 %v4665, %v4778
    %v4786 = vmul.f32 %v4668, %v4780
    %v4787 = vmul.f32 %v4781, %v4723
    %v4788 = vmul.f32 %v4782, %v4726
    %v4789 = vmul.f32 %v4783, %v4731
    %v4790 = vmul.f32 %v4784, %v4734
    %v4791 = vmul.f32 %v4785, %v4739
    %v4792 = vmul.f32 %v4786, %v4742
    %v4793 = vpack.c.bf16 %v4788, %v4787
    %v4794 = vpack.c.bf16 %v4790, %v4789
    %v4795 = vpack.c.bf16 %v4792, %v4791
    %s4796 = scalar_lea.vmem %s15, 32
    %v4797 = vld [vmem:[%s4796] sm:$0xf]
    %v4798 = vld [vmem:[%s4796 + $0x4] sm:$0xf]
    %v4799 = vld [vmem:[%s4796 + $0x8] sm:$0xf]
    %v4800 = vld [vmem:[%s4796 + $0xc] sm:$0xf]
    %v4801 = vld [vmem:[%s4796 + $0x10] sm:$0xf]
    %v4802 = vld [vmem:[%s4796 + $0x14] sm:$0xf]
    %v4803 = vld [vmem:[%s4796 + $0x18] sm:$0xf]
    %v4804 = vld [vmem:[%s4796 + $0x1c] sm:$0xf]
    %v4813 = vunpack.c.l.b16 %v4797
    %v4814 = vunpack.c.l.b16 %v4798
    %v4815 = vunpack.c.l.b16 %v4799
    %v4816 = vunpack.c.l.b16 %v4800
    %v4817 = vunpack.c.l.b16 %v4801
    %v4818 = vunpack.c.l.b16 %v4802
    %v4819 = vunpack.c.l.b16 %v4803
    %v4820 = vunpack.c.l.b16 %v4804
    %v4821 = vpack.c.b16 %v4814, %v4813
    %v4822 = vpack.c.b16 %v4816, %v4815
    %v4823 = vpack.c.b16 %v4818, %v4817
    %v4824 = vpack.c.b16 %v4820, %v4819
    %v4830 = vsel %vm2858, %v4793, 0
    %v4833 = vsel %vm2858, %v4794, 0
    %v4836 = vsel %vm2858, %v4795, 0
    %4838 = vmatprep.subr.bf16.mxu0 0
    %4839 = vmatpush1.bf16.msra.mxu0 %v4821
    %4840 = vmatprep.subr.bf16.mxu0 0
    %4841 = vmatpush1.bf16.msra.mxu0 %v4822
    %4842 = vmatprep.subr.bf16.mxu0 0
    %4843 = vmatpush1.bf16.msra.mxu0 %v4823
    %4844 = vmatprep.subr.bf16.mxu0 0
    %4845 = vmatpush1.bf16.msra.mxu0 %v4824
    %4846 = vmatprep.subr.bf16.mxu0 0
    %4847 = vmatpush1.bf16.msra.mxu0 0
    %4848 = vmatprep.subr.bf16.mxu0 0
    %4849 = vmatpush1.bf16.msra.mxu0 0
    %4850 = vmatprep.subr.bf16.mxu0 0
    %4851 = vmatpush1.bf16.msra.mxu0 0
    %4852 = vmatprep.subr.bf16.mxu0 0
    %4853 = vmatpush1.bf16.msra.mxu0 0
    %4854 = vmatprep.subr.bf16.mxu0 0
    %4855 = vmatpush1.bf16.msra.mxu0 0
    %4856 = vmatprep.subr.bf16.mxu0 0
    %4857 = vmatpush1.bf16.msra.mxu0 0
    %4858 = vmatprep.subr.bf16.mxu0 0
    %4859 = vmatpush1.bf16.msra.mxu0 0
    %4860 = vmatprep.subr.bf16.mxu0 0
    %4861 = vmatpush1.bf16.msra.mxu0 0
    %4862 = vmatprep.subr.bf16.mxu0 0
    %4863 = vmatpush1.bf16.msra.mxu0 0
    %4864 = vmatprep.subr.bf16.mxu0 0
    %4865 = vmatpush1.bf16.msra.mxu0 0
    %4866 = vmatprep.subr.bf16.mxu0 0
    %4867 = vmatpush1.bf16.msra.mxu0 0
    %4868 = vmatprep.subr.bf16.mxu0 0
    %4869 = vmatpush1.bf16.msra.mxu0 0
    %4870 = vmatprep.mubr.bf16.mxu0 0
    %4871 = vmatmul.mubr.bf16.gmra.mrb[0].mxu0 %v4830
    %v4872 = vpop.f32.mrb[0].mxu0
    %v4873 = vadd.f32 0.0, %v4872
    %v4874 = vpop.f32.mrb[0].mxu0
    %v4875 = vpop.f32.mrb[0].mxu0
    %v4876 = vadd.f32 0.0, %v4875
    %v4877 = vpop.f32.mrb[0].mxu0
    %4878 = vmatprep.mubr.bf16.mxu0 0
    %4879 = vmatmul.mubr.bf16.gmra.mrb[0].mxu0 %v4833
    %v4880 = vpop.f32.mrb[0].mxu0
    %v4881 = vadd.f32 0.0, %v4880
    %v4882 = vpop.f32.mrb[0].mxu0
    %v4883 = vpop.f32.mrb[0].mxu0
    %v4884 = vadd.f32 0.0, %v4883
    %v4885 = vpop.f32.mrb[0].mxu0
    %4886 = vmatprep.mubr.bf16.mxu0 0
    %4887 = vmatmul.mubr.bf16.gmra.mrb[0].mxu0 %v4836
    %v4888 = vpop.f32.mrb[0].mxu0
    %v4889 = vadd.f32 0.0, %v4888
    %v4890 = vpop.f32.mrb[0].mxu0
    %v4891 = vpop.f32.mrb[0].mxu0
    %v4892 = vadd.f32 0.0, %v4891
    %v4893 = vpop.f32.mrb[0].mxu0
    %4894 = vdwg.mxu0
    %v4895 = vadd.f32 %v4520, %v4873
    %v4896 = vadd.f32 %v4521, %v4876
    %v4897 = vadd.f32 %v4522, %v4881
    %v4898 = vadd.f32 %v4523, %v4884
    %v4899 = vadd.f32 %v4524, %v4889
    %v4900 = vadd.f32 %v4525, %v4892
    %v4901 = vld [vmem:[#allocation7] sm:$0xff]
    %v4902 = vld [vmem:[#allocation7 + $0x8] sm:$0xff]
    %v4904 = vsel %vm1615, %v4901, 0
    %v4907 = vsel %vm1615, %v4902, 0
    %4909 = vmatprep.subr.mxu0 0.0
    %4910 = vmatpush1.msra.mxu0 %v4895
    %4911 = vmatprep.subr.mxu0 0.0
    %4912 = vmatpush1.msra.mxu0 %v4896
    %4913 = vmatprep.subr.mxu0 0.0
    %4914 = vmatpush1.msra.mxu0 %v4897
    %4915 = vmatprep.subr.mxu0 0.0
    %4916 = vmatpush1.msra.mxu0 %v4898
    %4917 = vmatprep.subr.mxu0 0.0
    %4918 = vmatpush1.msra.mxu0 %v4899
    %4919 = vmatprep.subr.mxu0 0.0
    %4920 = vmatpush1.msra.mxu0 %v4900
    %4921 = vmatprep.subr.mxu0 0.0
    %4922 = vmatpush1.msra.mxu0 0.0
    %4923 = vmatprep.subr.mxu0 0.0
    %4924 = vmatpush1.msra.mxu0 0.0
    %4925 = vmatprep.subr.mxu0 0.0
    %4926 = vmatpush1.msra.mxu0 0.0
    %4927 = vmatprep.subr.mxu0 0.0
    %4928 = vmatpush1.msra.mxu0 0.0
    %4929 = vmatprep.subr.mxu0 0.0
    %4930 = vmatpush1.msra.mxu0 0.0
    %4931 = vmatprep.subr.mxu0 0.0
    %4932 = vmatpush1.msra.mxu0 0.0
    %4933 = vmatprep.subr.mxu0 0.0
    %4934 = vmatpush1.msra.mxu0 0.0
    %4935 = vmatprep.subr.mxu0 0.0
    %4936 = vmatpush1.msra.mxu0 0.0
    %4937 = vmatprep.subr.mxu0 0.0
    %4938 = vmatpush1.msra.mxu0 0.0
    %4939 = vmatprep.subr.mxu0 0.0
    %4940 = vmatpush1.msra.mxu0 0.0
    %4941 = vmatprep.subr.mxu0 0.0
    %4942 = vmatpush1.msra.mxu0 0.0
    %4943 = vmatprep.subr.mxu0 0.0
    %4944 = vmatpush1.msra.mxu0 0.0
    %4945 = vmatprep.subr.mxu0 0.0
    %4946 = vmatpush1.msra.mxu0 0.0
    %4947 = vmatprep.subr.mxu0 0.0
    %4948 = vmatpush1.msra.mxu0 0.0
    %4949 = vmatprep.subr.mxu0 0.0
    %4950 = vmatpush1.msra.mxu0 0.0
    %4951 = vmatprep.subr.mxu0 0.0
    %4952 = vmatpush1.msra.mxu0 0.0
    %4953 = vmatprep.subr.mxu0 0.0
    %4954 = vmatpush1.msra.mxu0 0.0
    %4955 = vmatprep.subr.mxu0 0.0
    %4956 = vmatpush1.msra.mxu0 0.0
    %4957 = vmatprep.subr.mxu0 0.0
    %4958 = vmatpush1.msra.mxu0 0.0
    %4959 = vmatprep.subr.mxu0 0.0
    %4960 = vmatpush1.msra.mxu0 0.0
    %4961 = vmatprep.subr.mxu0 0.0
    %4962 = vmatpush1.msra.mxu0 0.0
    %4963 = vmatprep.subr.mxu0 0.0
    %4964 = vmatpush1.msra.mxu0 0.0
    %4965 = vmatprep.subr.mxu0 0.0
    %4966 = vmatpush1.msra.mxu0 0.0
    %4967 = vmatprep.subr.mxu0 0.0
    %4968 = vmatpush1.msra.mxu0 0.0
    %4969 = vmatprep.subr.mxu0 0.0
    %4970 = vmatpush1.msra.mxu0 0.0
    %4971 = vmatprep.subr.mxu0 0.0
    %4972 = vmatpush1.msra.mxu0 0.0
    %4973 = vmatprep.mubr.f32.mxu0 0.0
    %4974 = vmatmul.mubr.f32.gmra.mrb[0].mxu0 %v4904
    %v4975 = vpop.f32.mrb[0].mxu0
    %v4976 = vadd.f32 0.0, %v4975
    %v4977 = vpop.f32.mrb[0].mxu0
    %4978 = vmatprep.mubr.f32.mxu0 0.0
    %4979 = vmatmul.mubr.f32.gmra.mrb[0].mxu0 %v4907
    %v4980 = vpop.f32.mrb[0].mxu0
    %v4981 = vadd.f32 0.0, %v4980
    %v4982 = vpop.f32.mrb[0].mxu0
    %4983 = vdwg.mxu0
    %v4984 = vld [vmem:[#allocation15 + $0x1] sm:$0x1]
    %v4985 = vmul.f32 %v4976, %v4976
    %v4986 = vmul.f32 %v4981, %v4981
    %v4987 = vsel %vm967, %v4985, 0.0
    %4988 = vadd.xlane.f32.xlu0 %v4987
    %v4989 = vpop.xlane.xlu0 %4988
    %v4990 = vsel %vm967, %v4986, 0.0
    %4991 = vadd.xlane.f32.xlu0 %v4990
    %v4992 = vpop.xlane.xlu0 %4991
    %v4993 = vmul.f32 %v4989, %v986
    %v4994 = vmul.f32 %v4992, %v986
    %v4995 = vadd.f32 %v4993, 1e-05
    %v4996 = vadd.f32 %v4994, 1e-05
    %v4997 = vrsqrt.pop %v4995
    %v4998 = vrsqrt.pop %v4996
    %v4999 = vmul.f32 %v4976, %v4997
    %v5000 = vmul.f32 %v4981, %v4998
    %v5001 = vlaneseq
    %v5002 = vshrl.u32 %v5001, 7
    %v5003 = vsub.s32 0, %v5002
    %v5004 = vrot.slane %v4984, %v5003
    %v5005 = vmul.f32 %v4999, %v5004
    %v5006 = vmul.f32 %v5000, %v5004
    %v5007 = vld [vmem:[#allocation19] sm:$0xff]
    %v5008 = vld [vmem:[#allocation19 + $0x8] sm:$0xff]
    %v5009 = vld [vmem:[#allocation19 + $0x10] sm:$0xff]
    %v5010 = vld [vmem:[#allocation19 + $0x18] sm:$0xff]
    %v5012 = vsel %vm967, %v5005, 0
    %v5015 = vsel %vm967, %v5006, 0
    %5017 = vmatprep.subr.mxu0 0.0
    %5018 = vmatpush1.msra.mxu0 %v5007
    %5019 = vmatprep.subr.mxu0 0.0
    %5020 = vmatpush1.msra.mxu0 %v5008
    %5021 = vmatprep.subr.mxu0 0.0
    %5022 = vmatpush1.msra.mxu0 %v5009
    %5023 = vmatprep.subr.mxu0 0.0
    %5024 = vmatpush1.msra.mxu0 %v5010
    %5025 = vmatprep.subr.mxu0 0.0
    %5026 = vmatpush1.msra.mxu0 0.0
    %5027 = vmatprep.subr.mxu0 0.0
    %5028 = vmatpush1.msra.mxu0 0.0
    %5029 = vmatprep.subr.mxu0 0.0
    %5030 = vmatpush1.msra.mxu0 0.0
    %5031 = vmatprep.subr.mxu0 0.0
    %5032 = vmatpush1.msra.mxu0 0.0
    %5033 = vmatprep.subr.mxu0 0.0
    %5034 = vmatpush1.msra.mxu0 0.0
    %5035 = vmatprep.subr.mxu0 0.0
    %5036 = vmatpush1.msra.mxu0 0.0
    %5037 = vmatprep.subr.mxu0 0.0
    %5038 = vmatpush1.msra.mxu0 0.0
    %5039 = vmatprep.subr.mxu0 0.0
    %5040 = vmatpush1.msra.mxu0 0.0
    %5041 = vmatprep.subr.mxu0 0.0
    %5042 = vmatpush1.msra.mxu0 0.0
    %5043 = vmatprep.subr.mxu0 0.0
    %5044 = vmatpush1.msra.mxu0 0.0
    %5045 = vmatprep.subr.mxu0 0.0
    %5046 = vmatpush1.msra.mxu0 0.0
    %5047 = vmatprep.subr.mxu0 0.0
    %5048 = vmatpush1.msra.mxu0 0.0
    %5049 = vmatprep.subr.mxu0 0.0
    %5050 = vmatpush1.msra.mxu0 0.0
    %5051 = vmatprep.subr.mxu0 0.0
    %5052 = vmatpush1.msra.mxu0 0.0
    %5053 = vmatprep.subr.mxu0 0.0
    %5054 = vmatpush1.msra.mxu0 0.0
    %5055 = vmatprep.subr.mxu0 0.0
    %5056 = vmatpush1.msra.mxu0 0.0
    %5057 = vmatprep.subr.mxu0 0.0
    %5058 = vmatpush1.msra.mxu0 0.0
    %5059 = vmatprep.subr.mxu0 0.0
    %5060 = vmatpush1.msra.mxu0 0.0
    %5061 = vmatprep.subr.mxu0 0.0
    %5062 = vmatpush1.msra.mxu0 0.0
    %5063 = vmatprep.subr.mxu0 0.0
    %5064 = vmatpush1.msra.mxu0 0.0
    %5065 = vmatprep.subr.mxu0 0.0
    %5066 = vmatpush1.msra.mxu0 0.0
    %5067 = vmatprep.subr.mxu0 0.0
    %5068 = vmatpush1.msra.mxu0 0.0
    %5069 = vmatprep.subr.mxu0 0.0
    %5070 = vmatpush1.msra.mxu0 0.0
    %5071 = vmatprep.subr.mxu0 0.0
    %5072 = vmatpush1.msra.mxu0 0.0
    %5073 = vmatprep.subr.mxu0 0.0
    %5074 = vmatpush1.msra.mxu0 0.0
    %5075 = vmatprep.subr.mxu0 0.0
    %5076 = vmatpush1.msra.mxu0 0.0
    %5077 = vmatprep.subr.mxu0 0.0
    %5078 = vmatpush1.msra.mxu0 0.0
    %5079 = vmatprep.subr.mxu0 0.0
    %5080 = vmatpush1.msra.mxu0 0.0
    %5081 = vmatprep.mubr.f32.mxu0 0.0
    %5082 = vmatmul.mubr.f32.gmra.mrb[0].mxu0 %v5012
    %v5083 = vpop.f32.mrb[0].mxu0
    %v5084 = vadd.f32 0.0, %v5083
    %v5085 = vpop.f32.mrb[0].mxu0
    %5086 = vmatprep.mubr.f32.mxu0 0.0
    %5087 = vmatmul.mubr.f32.gmra.mrb[0].mxu0 %v5015
    %v5088 = vpop.f32.mrb[0].mxu0
    %v5089 = vadd.f32 0.0, %v5088
    %v5090 = vpop.f32.mrb[0].mxu0
    %5091 = vdwg.mxu0
    %5092 = vst [vmem:[%s17] sm:$0xff] %v5084
    %5093 = vst [vmem:[%s17 + $0x8] sm:$0xff] %v5089
    // Predicated region
    $region118: #{forward.1} parent=1 // pred_check
      _
    $region119: #{forward.1} parent=1 // pred_check_branch
      %5095 = sbr.rel (0) target = $region121
    $region120: #{forward.1} parent=1 // pred_region
      _
    $region121: #{forward.1} parent=1 // pred_fallthru
      _
    // Predicated region
    $region122: #{forward.1} parent=1 // pred_check
      _
    $region123: #{forward.1} parent=1 // pred_check_branch
      %5097 = sbr.rel (0) target = $region125
    $region124: #{forward.1} parent=1 // pred_region
      _
    $region125: #{forward.1} parent=1 // pred_fallthru
      _
    %5098 = vsyncpa [#allocation3], 1
    %5099 = vsyncpa [#allocation5], 1
    %5100 = vsyncpa [#allocation8], 1
    %5101 = vsyncpa [#allocation11], 1
    %5102 = vsyncpa [#allocation14], 1
    %5103 = vsyncpa [#allocation17], 1
    %5104 = vsyncpa [#allocation20], 1

</llo_original>
